<compile_context>
chip_gen: v6e
topology: v6e:2x2x1
jax: 0.10.0
libtpu: 0.0.40
codegen_flags: <defaults>
</compile_context>

<pallas_src>
import math
import jax
import jax.numpy as jnp
from jax.experimental import pallas as pl
from jax.experimental.pallas import tpu as pltpu

# ---- model dimensions (small, deterministic synthetic setup) ----------------
B, S, D = 2, 8, 32          # batch, seq len, d_model (= "features")
H = 4                       # attention heads
DK = D // H                 # per-head dim
F = 64                      # feed-forward hidden dim
L = 2                       # number of encoder blocks in the ModuleList
T = B * S                   # folded token axis (batch fused into tokens)
EPS = 1e-6
NEG_INF = -1e9

# ---- packed f32 vector layout: shape (VTOTAL, 1), all offsets multiples of 8
# per layer l (stride VSTRIDE): [bqkv(3D) | bo(D) | b1(F) | b2(D) | n1a | n1b | n2a | n2b]
OFF_BQKV = 0
OFF_BO = OFF_BQKV + 3 * D
OFF_B1 = OFF_BO + D
OFF_B2 = OFF_B1 + F
OFF_N1A = OFF_B2 + D
OFF_N1B = OFF_N1A + D
OFF_N2A = OFF_N1B + D
OFF_N2B = OFF_N2A + D
VSTRIDE = OFF_N2B + D
OFF_FNA = L * VSTRIDE
OFF_FNB = OFF_FNA + D
VTOTAL = OFF_FNB + D

# ---- packed bf16 weight layout along rows of wa[l]: [WqkvT(3D) | WoT(D) | W1T(F)]
WOFF_QKV = 0
WOFF_WO = WOFF_QKV + 3 * D
WOFF_W1 = WOFF_WO + D
WROWS = WOFF_W1 + F


def _layernorm_t(xt, alpha, bias):
    # PyTorch LayerNormalisation on the transposed layout (features = axis 0):
    # alpha * (x - mean) / (std + eps) + bias, with UNBIASED std (divide by D-1)
    # and eps added to the std (not the variance).
    mean = jnp.mean(xt, axis=0, keepdims=True)                          # (1, T)
    var = jnp.sum((xt - mean) ** 2, axis=0, keepdims=True) * (1.0 / (D - 1))
    inv = pl.reciprocal(jnp.sqrt(var) + EPS, approx=False)              # EUP, exact
    return alpha * (xt - mean) * inv + bias                             # alpha/bias: (D, 1)


def encoder_kernel(x_ref, maskb_ref, wa_ref, w2_ref, vec_ref, out_ref):
    xT = x_ref[...]                 # (D, T) f32 — features on sublanes, tokens on lanes
    mask_bias = maskb_ref[...]      # (T, T) f32 — key padding + cross-batch -inf, shared by heads

    for l in range(L):              # static unroll over encoder blocks
        base = l * VSTRIDE
        wa = wa_ref[l]              # (WROWS, D) bf16, packed [WqkvT | WoT | W1T]

        # ---- residual 1: x + SelfAttention(norm1(x), mask) -------------------
        n1a = vec_ref[base + OFF_N1A: base + OFF_N1A + D, :]
        n1b = vec_ref[base + OFF_N1B: base + OFF_N1B + D, :]
        xn = _layernorm_t(xT, n1a, n1b).astype(jnp.bfloat16)            # (D, T)

        # Fused Q/K/V projection: ONE 2-D matmul; 1/sqrt(DK) folded into Q rows.
        qkv = jnp.dot(wa[WOFF_QKV:WOFF_QKV + 3 * D], xn,
                      preferred_element_type=jnp.float32)               # (3D, T) f32
        qkv = qkv + vec_ref[base + OFF_BQKV: base + OFF_BQKV + 3 * D, :]

        # Per-head attention; splits are 8-aligned sublane slices; both batches
        # share the (T, T) score matrix (the additive mask removes cross-batch).
        attn_parts = []
        for h in range(H):          # static unroll, H = 4
            qh = qkv[h * DK:(h + 1) * DK, :]                            # (DK, T) f32
            kh = qkv[D + h * DK: D + (h + 1) * DK, :]
            vh = qkv[2 * D + h * DK: 2 * D + (h + 1) * DK, :]
            s = jnp.dot(qh.T, kh, preferred_element_type=jnp.float32) + mask_bias  # (T, T)
            m = jnp.max(s, axis=-1, keepdims=True)
            e = jnp.exp(s - m)
            p = e * pl.reciprocal(jnp.sum(e, axis=-1, keepdims=True), approx=False)
            # attn_h^T: contraction over keys (last dims of both operands).
            attn_parts.append(jnp.einsum('dk,qk->dq', vh, p,
                                         preferred_element_type=jnp.float32))      # (DK, T)
        attnT = jnp.concatenate(attn_parts, axis=0)                     # (D, T) f32

        # Output projection: one full-depth matmul, no per-head sum.
        oT = jnp.dot(wa[WOFF_WO:WOFF_WO + D], attnT.astype(jnp.bfloat16),
                     preferred_element_type=jnp.float32)                # (D, T)
        xT = xT + oT + vec_ref[base + OFF_BO: base + OFF_BO + D, :]     # dropout = identity (eval)

        # ---- residual 2: x + FFN(norm2(x)) ------------------------------------
        n2a = vec_ref[base + OFF_N2A: base + OFF_N2A + D, :]
        n2b = vec_ref[base + OFF_N2B: base + OFF_N2B + D, :]
        xn2 = _layernorm_t(xT, n2a, n2b).astype(jnp.bfloat16)           # (D, T)
        hid = jnp.dot(wa[WOFF_W1:WOFF_W1 + F], xn2,
                      preferred_element_type=jnp.float32)               # (F, T)
        hid = jnp.maximum(hid + vec_ref[base + OFF_B1: base + OFF_B1 + F, :], 0.0)
        ff = jnp.dot(w2_ref[l], hid.astype(jnp.bfloat16),
                     preferred_element_type=jnp.float32)                # (D, T)
        xT = xT + ff + vec_ref[base + OFF_B2: base + OFF_B2 + D, :]

    # --- Encoder.forward final step: self.norm(x) ------------------------------
    fna = vec_ref[OFF_FNA:OFF_FNA + D, :]
    fnb = vec_ref[OFF_FNB:OFF_FNB + D, :]
    out_ref[...] = _layernorm_t(xT, fna, fnb)                           # (D, T) f32


def encoder_forward(x, mask, params):
    (wq, bq, wk, bk, wv, bv, wo, bo,
     w1, b1, w2, b2, n1a, n1b, n2a, n2b, fna, fnb) = params

    scale = 1.0 / math.sqrt(DK)
    tr = lambda w: jnp.swapaxes(w, 1, 2)           # (L, in, out) -> (L, out, in)
    col = lambda v: jnp.swapaxes(v, 1, 2)          # (L, 1, X)    -> (L, X, 1)

    # Packed transposed bf16 weights: rows = [Q | K | V | Wo | W1] output features.
    wa = jnp.concatenate([tr(wq) * scale, tr(wk), tr(wv), tr(wo), tr(w1)],
                         axis=1).astype(jnp.bfloat16)                   # (L, WROWS, D)
    w2t = tr(w2).astype(jnp.bfloat16)                                   # (L, D, F)

    # Packed f32 column vectors (biases + LayerNorm params): one DMA.
    per_layer = jnp.concatenate(
        [col(bq) * scale, col(bk), col(bv), col(bo), col(b1), col(b2),
         col(n1a), col(n1b), col(n2a), col(n2b)], axis=1)               # (L, VSTRIDE, 1)
    vecs = jnp.concatenate([per_layer.reshape(L * VSTRIDE, 1),
                            fna.reshape(D, 1), fnb.reshape(D, 1)],
                           axis=0).astype(jnp.float32)                  # (VTOTAL, 1)

    # Additive attention mask over the folded token axis (NOT replicated by H):
    # -1e9 for masked keys and for cross-batch (query, key) pairs, else 0.
    tok = jnp.arange(T)
    bi, si = tok // S, tok % S
    attend = mask[bi[:, None], si[:, None], si[None, :]] != 0           # (T, T)
    same_b = bi[:, None] == bi[None, :]
    mask_bias = jnp.where(same_b & attend, 0.0, NEG_INF).astype(jnp.float32)

    xT = x.reshape(T, D).T                                              # (D, T) f32

    vmem = pl.BlockSpec(memory_space=pltpu.MemorySpace.VMEM)
    outT = pl.pallas_call(
        encoder_kernel,
        out_shape=jax.ShapeDtypeStruct((D, T), jnp.float32),
        in_specs=[vmem] * 5,
        out_specs=vmem,
    )(xT, mask_bias, wa, w2t, vecs)
    return outT.T.reshape(B, S, D)


def make_params(key):
    ks = jax.random.split(key, 12)

    def init(k, shape, s=0.05):
        return jax.random.normal(k, shape, dtype=jnp.float32) * s

    wq = init(ks[0], (L, D, D)); bq = init(ks[1], (L, 1, D))
    wk = init(ks[2], (L, D, D)); bk = init(ks[3], (L, 1, D))
    wv = init(ks[4], (L, D, D)); bv = init(ks[5], (L, 1, D))
    wo = init(ks[6], (L, D, D)); bo = init(ks[7], (L, 1, D))
    w1 = init(ks[8], (L, D, F)); b1 = init(ks[9], (L, 1, F))
    w2 = init(ks[10], (L, F, D)); b2 = init(ks[11], (L, 1, D))
    # LayerNormalisation params init as in the module: alpha=ones, bias=zeros
    n1a = jnp.ones((L, 1, D), jnp.float32); n1b = jnp.zeros((L, 1, D), jnp.float32)
    n2a = jnp.ones((L, 1, D), jnp.float32); n2b = jnp.zeros((L, 1, D), jnp.float32)
    fna = jnp.ones((1, D), jnp.float32);    fnb = jnp.zeros((1, D), jnp.float32)
    return (wq, bq, wk, bk, wv, bv, wo, bo,
            w1, b1, w2, b2, n1a, n1b, n2a, n2b, fna, fnb)


if __name__ == "__main__":
    key = jax.random.PRNGKey(0)
    kx, kp = jax.random.split(key)

    x = jax.random.normal(kx, (B, S, D), dtype=jnp.float32)

    # padding-style source mask: batch 0 attends to all 8 keys, batch 1 to 6.
    lengths = jnp.array([8, 6], dtype=jnp.int32)
    key_valid = (jnp.arange(S)[None, :] < lengths[:, None])             # (B, S)
    mask = jnp.broadcast_to(key_valid[:, None, :], (B, S, S)).astype(jnp.float32)

    params = make_params(kp)

    out = encoder_forward(x, mask, params)
    jax.block_until_ready(out)
    assert out.shape == (B, S, D) and out.dtype == jnp.float32
    assert bool(jnp.all(jnp.isfinite(out)))
    print("KERNEL_OK")
</pallas_src>

<mosaic_0001>
module attributes {stable_mosaic.version = 11 : i64} {
  func.func @encoder_kernel(%arg0: memref<32x16xf32, #tpu.memory_space<vmem>>, %arg1: memref<16x16xf32, #tpu.memory_space<vmem>>, %arg2: memref<2x192x32xbf16, #tpu.memory_space<vmem>>, %arg3: memref<2x32x64xbf16, #tpu.memory_space<vmem>>, %arg4: memref<768x1xf32, #tpu.memory_space<vmem>>, %arg5: memref<32x16xf32, #tpu.memory_space<vmem>>) attributes {dimension_semantics = [], scalar_prefetch = 0 : i64, scratch_operands = 0 : i64, tpu.core_type = #tpu.core_type<tc>} {
    %c0 = arith.constant 0 : index
    %c0_0 = arith.constant 0 : index
    %0 = vector.load %arg0[%c0, %c0_0] : memref<32x16xf32, #tpu.memory_space<vmem>>, vector<32x16xf32>
    %c0_1 = arith.constant 0 : index
    %c0_2 = arith.constant 0 : index
    %1 = vector.load %arg1[%c0_1, %c0_2] : memref<16x16xf32, #tpu.memory_space<vmem>>, vector<16x16xf32>
    %c0_3 = arith.constant 0 : index
    %c0_4 = arith.constant 0 : index
    %c0_5 = arith.constant 0 : index
    %2 = vector.load %arg2[%c0_3, %c0_4, %c0_5] : memref<2x192x32xbf16, #tpu.memory_space<vmem>>, vector<1x192x32xbf16>
    %3 = vector.shape_cast %2 : vector<1x192x32xbf16> to vector<192x32xbf16>
    %c224 = arith.constant 224 : index
    %c0_6 = arith.constant 0 : index
    %4 = vector.load %arg4[%c224, %c0_6] : memref<768x1xf32, #tpu.memory_space<vmem>>, vector<32x1xf32>
    %c256 = arith.constant 256 : index
    %c0_7 = arith.constant 0 : index
    %5 = vector.load %arg4[%c256, %c0_7] : memref<768x1xf32, #tpu.memory_space<vmem>>, vector<32x1xf32>
    %cst = arith.constant dense<0.000000e+00> : vector<16xf32>
    %6 = vector.multi_reduction <add>, %0, %cst [0] : vector<32x16xf32> to vector<16xf32>
    %7 = vector.shape_cast %6 : vector<16xf32> to vector<1x16xf32>
    %cst_8 = arith.constant 3.200000e+01 : f32
    %8 = vector.broadcast %cst_8 : f32 to vector<1x16xf32>
    %9 = arith.divf %7, %8 : vector<1x16xf32>
    %10 = vector.broadcast %9 : vector<1x16xf32> to vector<32x16xf32>
    %11 = arith.subf %0, %10 : vector<32x16xf32>
    %12 = arith.mulf %11, %11 : vector<32x16xf32>
    %cst_9 = arith.constant dense<0.000000e+00> : vector<16xf32>
    %13 = vector.multi_reduction <add>, %12, %cst_9 [0] : vector<32x16xf32> to vector<16xf32>
    %14 = vector.shape_cast %13 : vector<16xf32> to vector<1x16xf32>
    %cst_10 = arith.constant 0.0322580636 : f32
    %15 = vector.broadcast %cst_10 : f32 to vector<1x16xf32>
    %16 = arith.mulf %14, %15 : vector<1x16xf32>
    %17 = math.sqrt %16 : vector<1x16xf32>
    %cst_11 = arith.constant 9.99999997E-7 : f32
    %18 = vector.broadcast %cst_11 : f32 to vector<1x16xf32>
    %19 = arith.addf %17, %18 : vector<1x16xf32>
    %20 = tpu.reciprocal %19 : vector<1x16xf32> -> vector<1x16xf32>
    %21 = vector.broadcast %9 : vector<1x16xf32> to vector<32x16xf32>
    %22 = arith.subf %0, %21 : vector<32x16xf32>
    %23 = vector.broadcast %4 : vector<32x1xf32> to vector<32x16xf32>
    %24 = arith.mulf %23, %22 : vector<32x16xf32>
    %25 = vector.broadcast %20 : vector<1x16xf32> to vector<32x16xf32>
    %26 = arith.mulf %24, %25 : vector<32x16xf32>
    %27 = vector.broadcast %5 : vector<32x1xf32> to vector<32x16xf32>
    %28 = arith.addf %26, %27 : vector<32x16xf32>
    %29 = arith.truncf %28 : vector<32x16xf32> to vector<32x16xbf16>
    %30 = vector.extract_strided_slice %3 {offsets = [0, 0], sizes = [96, 32], strides = [1, 1]} : vector<192x32xbf16> to vector<96x32xbf16>
    %cst_12 = arith.constant dense<0.000000e+00> : vector<96x16xf32>
    %31 = tpu.matmul %30, %29, %cst_12 {dimension_numbers = #tpu.dot_dimension_numbers<[1], [0], [0], [1], [0, 0, 1, 1], [], []>} : vector<96x32xbf16>, vector<32x16xbf16>, vector<96x16xf32> -> vector<96x16xf32>
    %c0_13 = arith.constant 0 : index
    %c0_14 = arith.constant 0 : index
    %32 = vector.load %arg4[%c0_13, %c0_14] : memref<768x1xf32, #tpu.memory_space<vmem>>, vector<96x1xf32>
    %33 = vector.broadcast %32 : vector<96x1xf32> to vector<96x16xf32>
    %34 = arith.addf %31, %33 : vector<96x16xf32>
    %35 = vector.extract_strided_slice %34 {offsets = [0, 0], sizes = [8, 16], strides = [1, 1]} : vector<96x16xf32> to vector<8x16xf32>
    %36 = vector.extract_strided_slice %34 {offsets = [32, 0], sizes = [8, 16], strides = [1, 1]} : vector<96x16xf32> to vector<8x16xf32>
    %37 = vector.extract_strided_slice %34 {offsets = [64, 0], sizes = [8, 16], strides = [1, 1]} : vector<96x16xf32> to vector<8x16xf32>
    %38 = tpu.transpose %35, [1, 0] : vector<8x16xf32> -> vector<16x8xf32>
    %cst_15 = arith.constant dense<0.000000e+00> : vector<16x16xf32>
    %39 = tpu.matmul %38, %36, %cst_15 {dimension_numbers = #tpu.dot_dimension_numbers<[1], [0], [0], [1], [0, 0, 1, 1], [], []>} : vector<16x8xf32>, vector<8x16xf32>, vector<16x16xf32> -> vector<16x16xf32>
    %40 = arith.addf %39, %1 : vector<16x16xf32>
    %cst_16 = arith.constant dense<0xFF800000> : vector<16xf32>
    %41 = vector.multi_reduction <maximumf>, %40, %cst_16 [1] : vector<16x16xf32> to vector<16xf32>
    %42 = vector.shape_cast %41 : vector<16xf32> to vector<16x1xf32>
    %43 = vector.broadcast %42 : vector<16x1xf32> to vector<16x16xf32>
    %44 = arith.subf %40, %43 : vector<16x16xf32>
    %45 = math.exp %44 : vector<16x16xf32>
    %cst_17 = arith.constant dense<0.000000e+00> : vector<16xf32>
    %46 = vector.multi_reduction <add>, %45, %cst_17 [1] : vector<16x16xf32> to vector<16xf32>
    %47 = vector.shape_cast %46 : vector<16xf32> to vector<16x1xf32>
    %48 = tpu.reciprocal %47 : vector<16x1xf32> -> vector<16x1xf32>
    %49 = vector.broadcast %48 : vector<16x1xf32> to vector<16x16xf32>
    %50 = arith.mulf %45, %49 : vector<16x16xf32>
    "tpu.trace_start"() <{level = 10 : i32, message = "dk,qk->dq"}> : () -> ()
    %cst_18 = arith.constant dense<0.000000e+00> : vector<8x16xf32>
    %51 = tpu.matmul %37, %50, %cst_18 {dimension_numbers = #tpu.dot_dimension_numbers<[1], [1], [0], [0], [0, 0, 1, 0], [], []>} : vector<8x16xf32>, vector<16x16xf32>, vector<8x16xf32> -> vector<8x16xf32>
    "tpu.trace_stop"() : () -> ()
    %52 = vector.extract_strided_slice %34 {offsets = [8, 0], sizes = [8, 16], strides = [1, 1]} : vector<96x16xf32> to vector<8x16xf32>
    %53 = vector.extract_strided_slice %34 {offsets = [40, 0], sizes = [8, 16], strides = [1, 1]} : vector<96x16xf32> to vector<8x16xf32>
    %54 = vector.extract_strided_slice %34 {offsets = [72, 0], sizes = [8, 16], strides = [1, 1]} : vector<96x16xf32> to vector<8x16xf32>
    %55 = tpu.transpose %52, [1, 0] : vector<8x16xf32> -> vector<16x8xf32>
    %cst_19 = arith.constant dense<0.000000e+00> : vector<16x16xf32>
    %56 = tpu.matmul %55, %53, %cst_19 {dimension_numbers = #tpu.dot_dimension_numbers<[1], [0], [0], [1], [0, 0, 1, 1], [], []>} : vector<16x8xf32>, vector<8x16xf32>, vector<16x16xf32> -> vector<16x16xf32>
    %57 = arith.addf %56, %1 : vector<16x16xf32>
    %cst_20 = arith.constant dense<0xFF800000> : vector<16xf32>
    %58 = vector.multi_reduction <maximumf>, %57, %cst_20 [1] : vector<16x16xf32> to vector<16xf32>
    %59 = vector.shape_cast %58 : vector<16xf32> to vector<16x1xf32>
    %60 = vector.broadcast %59 : vector<16x1xf32> to vector<16x16xf32>
    %61 = arith.subf %57, %60 : vector<16x16xf32>
    %62 = math.exp %61 : vector<16x16xf32>
    %cst_21 = arith.constant dense<0.000000e+00> : vector<16xf32>
    %63 = vector.multi_reduction <add>, %62, %cst_21 [1] : vector<16x16xf32> to vector<16xf32>
    %64 = vector.shape_cast %63 : vector<16xf32> to vector<16x1xf32>
    %65 = tpu.reciprocal %64 : vector<16x1xf32> -> vector<16x1xf32>
    %66 = vector.broadcast %65 : vector<16x1xf32> to vector<16x16xf32>
    %67 = arith.mulf %62, %66 : vector<16x16xf32>
    "tpu.trace_start"() <{level = 10 : i32, message = "dk,qk->dq"}> : () -> ()
    %cst_22 = arith.constant dense<0.000000e+00> : vector<8x16xf32>
    %68 = tpu.matmul %54, %67, %cst_22 {dimension_numbers = #tpu.dot_dimension_numbers<[1], [1], [0], [0], [0, 0, 1, 0], [], []>} : vector<8x16xf32>, vector<16x16xf32>, vector<8x16xf32> -> vector<8x16xf32>
    "tpu.trace_stop"() : () -> ()
    %69 = vector.extract_strided_slice %34 {offsets = [16, 0], sizes = [8, 16], strides = [1, 1]} : vector<96x16xf32> to vector<8x16xf32>
    %70 = vector.extract_strided_slice %34 {offsets = [48, 0], sizes = [8, 16], strides = [1, 1]} : vector<96x16xf32> to vector<8x16xf32>
    %71 = vector.extract_strided_slice %34 {offsets = [80, 0], sizes = [8, 16], strides = [1, 1]} : vector<96x16xf32> to vector<8x16xf32>
    %72 = tpu.transpose %69, [1, 0] : vector<8x16xf32> -> vector<16x8xf32>
    %cst_23 = arith.constant dense<0.000000e+00> : vector<16x16xf32>
    %73 = tpu.matmul %72, %70, %cst_23 {dimension_numbers = #tpu.dot_dimension_numbers<[1], [0], [0], [1], [0, 0, 1, 1], [], []>} : vector<16x8xf32>, vector<8x16xf32>, vector<16x16xf32> -> vector<16x16xf32>
    %74 = arith.addf %73, %1 : vector<16x16xf32>
    %cst_24 = arith.constant dense<0xFF800000> : vector<16xf32>
    %75 = vector.multi_reduction <maximumf>, %74, %cst_24 [1] : vector<16x16xf32> to vector<16xf32>
    %76 = vector.shape_cast %75 : vector<16xf32> to vector<16x1xf32>
    %77 = vector.broadcast %76 : vector<16x1xf32> to vector<16x16xf32>
    %78 = arith.subf %74, %77 : vector<16x16xf32>
    %79 = math.exp %78 : vector<16x16xf32>
    %cst_25 = arith.constant dense<0.000000e+00> : vector<16xf32>
    %80 = vector.multi_reduction <add>, %79, %cst_25 [1] : vector<16x16xf32> to vector<16xf32>
    %81 = vector.shape_cast %80 : vector<16xf32> to vector<16x1xf32>
    %82 = tpu.reciprocal %81 : vector<16x1xf32> -> vector<16x1xf32>
    %83 = vector.broadcast %82 : vector<16x1xf32> to vector<16x16xf32>
    %84 = arith.mulf %79, %83 : vector<16x16xf32>
    "tpu.trace_start"() <{level = 10 : i32, message = "dk,qk->dq"}> : () -> ()
    %cst_26 = arith.constant dense<0.000000e+00> : vector<8x16xf32>
    %85 = tpu.matmul %71, %84, %cst_26 {dimension_numbers = #tpu.dot_dimension_numbers<[1], [1], [0], [0], [0, 0, 1, 0], [], []>} : vector<8x16xf32>, vector<16x16xf32>, vector<8x16xf32> -> vector<8x16xf32>
    "tpu.trace_stop"() : () -> ()
    %86 = vector.extract_strided_slice %34 {offsets = [24, 0], sizes = [8, 16], strides = [1, 1]} : vector<96x16xf32> to vector<8x16xf32>
    %87 = vector.extract_strided_slice %34 {offsets = [56, 0], sizes = [8, 16], strides = [1, 1]} : vector<96x16xf32> to vector<8x16xf32>
    %88 = vector.extract_strided_slice %34 {offsets = [88, 0], sizes = [8, 16], strides = [1, 1]} : vector<96x16xf32> to vector<8x16xf32>
    %89 = tpu.transpose %86, [1, 0] : vector<8x16xf32> -> vector<16x8xf32>
    %cst_27 = arith.constant dense<0.000000e+00> : vector<16x16xf32>
    %90 = tpu.matmul %89, %87, %cst_27 {dimension_numbers = #tpu.dot_dimension_numbers<[1], [0], [0], [1], [0, 0, 1, 1], [], []>} : vector<16x8xf32>, vector<8x16xf32>, vector<16x16xf32> -> vector<16x16xf32>
    %91 = arith.addf %90, %1 : vector<16x16xf32>
    %cst_28 = arith.constant dense<0xFF800000> : vector<16xf32>
    %92 = vector.multi_reduction <maximumf>, %91, %cst_28 [1] : vector<16x16xf32> to vector<16xf32>
    %93 = vector.shape_cast %92 : vector<16xf32> to vector<16x1xf32>
    %94 = vector.broadcast %93 : vector<16x1xf32> to vector<16x16xf32>
    %95 = arith.subf %91, %94 : vector<16x16xf32>
    %96 = math.exp %95 : vector<16x16xf32>
    %cst_29 = arith.constant dense<0.000000e+00> : vector<16xf32>
    %97 = vector.multi_reduction <add>, %96, %cst_29 [1] : vector<16x16xf32> to vector<16xf32>
    %98 = vector.shape_cast %97 : vector<16xf32> to vector<16x1xf32>
    %99 = tpu.reciprocal %98 : vector<16x1xf32> -> vector<16x1xf32>
    %100 = vector.broadcast %99 : vector<16x1xf32> to vector<16x16xf32>
    %101 = arith.mulf %96, %100 : vector<16x16xf32>
    "tpu.trace_start"() <{level = 10 : i32, message = "dk,qk->dq"}> : () -> ()
    %cst_30 = arith.constant dense<0.000000e+00> : vector<8x16xf32>
    %102 = tpu.matmul %88, %101, %cst_30 {dimension_numbers = #tpu.dot_dimension_numbers<[1], [1], [0], [0], [0, 0, 1, 0], [], []>} : vector<8x16xf32>, vector<16x16xf32>, vector<8x16xf32> -> vector<8x16xf32>
    "tpu.trace_stop"() : () -> ()
    %103 = tpu.concatenate %51, %68, %85, %102 in 0 : vector<8x16xf32>, vector<8x16xf32>, vector<8x16xf32>, vector<8x16xf32> -> vector<32x16xf32>
    %104 = vector.extract_strided_slice %3 {offsets = [96, 0], sizes = [32, 32], strides = [1, 1]} : vector<192x32xbf16> to vector<32x32xbf16>
    %105 = arith.truncf %103 : vector<32x16xf32> to vector<32x16xbf16>
    %cst_31 = arith.constant dense<0.000000e+00> : vector<32x16xf32>
    %106 = tpu.matmul %104, %105, %cst_31 {dimension_numbers = #tpu.dot_dimension_numbers<[1], [0], [0], [1], [0, 0, 1, 1], [], []>} : vector<32x32xbf16>, vector<32x16xbf16>, vector<32x16xf32> -> vector<32x16xf32>
    %107 = arith.addf %0, %106 : vector<32x16xf32>
    %c96 = arith.constant 96 : index
    %c0_32 = arith.constant 0 : index
    %108 = vector.load %arg4[%c96, %c0_32] : memref<768x1xf32, #tpu.memory_space<vmem>>, vector<32x1xf32>
    %109 = vector.broadcast %108 : vector<32x1xf32> to vector<32x16xf32>
    %110 = arith.addf %107, %109 : vector<32x16xf32>
    %c288 = arith.constant 288 : index
    %c0_33 = arith.constant 0 : index
    %111 = vector.load %arg4[%c288, %c0_33] : memref<768x1xf32, #tpu.memory_space<vmem>>, vector<32x1xf32>
    %c320 = arith.constant 320 : index
    %c0_34 = arith.constant 0 : index
    %112 = vector.load %arg4[%c320, %c0_34] : memref<768x1xf32, #tpu.memory_space<vmem>>, vector<32x1xf32>
    %cst_35 = arith.constant dense<0.000000e+00> : vector<16xf32>
    %113 = vector.multi_reduction <add>, %110, %cst_35 [0] : vector<32x16xf32> to vector<16xf32>
    %114 = vector.shape_cast %113 : vector<16xf32> to vector<1x16xf32>
    %cst_36 = arith.constant 3.200000e+01 : f32
    %115 = vector.broadcast %cst_36 : f32 to vector<1x16xf32>
    %116 = arith.divf %114, %115 : vector<1x16xf32>
    %117 = vector.broadcast %116 : vector<1x16xf32> to vector<32x16xf32>
    %118 = arith.subf %110, %117 : vector<32x16xf32>
    %119 = arith.mulf %118, %118 : vector<32x16xf32>
    %cst_37 = arith.constant dense<0.000000e+00> : vector<16xf32>
    %120 = vector.multi_reduction <add>, %119, %cst_37 [0] : vector<32x16xf32> to vector<16xf32>
    %121 = vector.shape_cast %120 : vector<16xf32> to vector<1x16xf32>
    %cst_38 = arith.constant 0.0322580636 : f32
    %122 = vector.broadcast %cst_38 : f32 to vector<1x16xf32>
    %123 = arith.mulf %121, %122 : vector<1x16xf32>
    %124 = math.sqrt %123 : vector<1x16xf32>
    %cst_39 = arith.constant 9.99999997E-7 : f32
    %125 = vector.broadcast %cst_39 : f32 to vector<1x16xf32>
    %126 = arith.addf %124, %125 : vector<1x16xf32>
    %127 = tpu.reciprocal %126 : vector<1x16xf32> -> vector<1x16xf32>
    %128 = vector.broadcast %116 : vector<1x16xf32> to vector<32x16xf32>
    %129 = arith.subf %110, %128 : vector<32x16xf32>
    %130 = vector.broadcast %111 : vector<32x1xf32> to vector<32x16xf32>
    %131 = arith.mulf %130, %129 : vector<32x16xf32>
    %132 = vector.broadcast %127 : vector<1x16xf32> to vector<32x16xf32>
    %133 = arith.mulf %131, %132 : vector<32x16xf32>
    %134 = vector.broadcast %112 : vector<32x1xf32> to vector<32x16xf32>
    %135 = arith.addf %133, %134 : vector<32x16xf32>
    %136 = arith.truncf %135 : vector<32x16xf32> to vector<32x16xbf16>
    %137 = vector.extract_strided_slice %3 {offsets = [128, 0], sizes = [64, 32], strides = [1, 1]} : vector<192x32xbf16> to vector<64x32xbf16>
    %cst_40 = arith.constant dense<0.000000e+00> : vector<64x16xf32>
    %138 = tpu.matmul %137, %136, %cst_40 {dimension_numbers = #tpu.dot_dimension_numbers<[1], [0], [0], [1], [0, 0, 1, 1], [], []>} : vector<64x32xbf16>, vector<32x16xbf16>, vector<64x16xf32> -> vector<64x16xf32>
    %c128 = arith.constant 128 : index
    %c0_41 = arith.constant 0 : index
    %139 = vector.load %arg4[%c128, %c0_41] : memref<768x1xf32, #tpu.memory_space<vmem>>, vector<64x1xf32>
    %140 = vector.broadcast %139 : vector<64x1xf32> to vector<64x16xf32>
    %141 = arith.addf %138, %140 : vector<64x16xf32>
    %cst_42 = arith.constant 0.000000e+00 : f32
    %142 = vector.broadcast %cst_42 : f32 to vector<64x16xf32>
    %143 = arith.maximumf %141, %142 : vector<64x16xf32>
    %c0_43 = arith.constant 0 : index
    %c0_44 = arith.constant 0 : index
    %c0_45 = arith.constant 0 : index
    %144 = vector.load %arg3[%c0_43, %c0_44, %c0_45] : memref<2x32x64xbf16, #tpu.memory_space<vmem>>, vector<1x32x64xbf16>
    %145 = vector.shape_cast %144 : vector<1x32x64xbf16> to vector<32x64xbf16>
    %146 = arith.truncf %143 : vector<64x16xf32> to vector<64x16xbf16>
    %cst_46 = arith.constant dense<0.000000e+00> : vector<32x16xf32>
    %147 = tpu.matmul %145, %146, %cst_46 {dimension_numbers = #tpu.dot_dimension_numbers<[1], [0], [0], [1], [0, 0, 1, 1], [], []>} : vector<32x64xbf16>, vector<64x16xbf16>, vector<32x16xf32> -> vector<32x16xf32>
    %148 = arith.addf %110, %147 : vector<32x16xf32>
    %c192 = arith.constant 192 : index
    %c0_47 = arith.constant 0 : index
    %149 = vector.load %arg4[%c192, %c0_47] : memref<768x1xf32, #tpu.memory_space<vmem>>, vector<32x1xf32>
    %150 = vector.broadcast %149 : vector<32x1xf32> to vector<32x16xf32>
    %151 = arith.addf %148, %150 : vector<32x16xf32>
    %c1 = arith.constant 1 : index
    %c0_48 = arith.constant 0 : index
    %c0_49 = arith.constant 0 : index
    %152 = vector.load %arg2[%c1, %c0_48, %c0_49] : memref<2x192x32xbf16, #tpu.memory_space<vmem>>, vector<1x192x32xbf16>
    %153 = vector.shape_cast %152 : vector<1x192x32xbf16> to vector<192x32xbf16>
    %c576 = arith.constant 576 : index
    %c0_50 = arith.constant 0 : index
    %154 = vector.load %arg4[%c576, %c0_50] : memref<768x1xf32, #tpu.memory_space<vmem>>, vector<32x1xf32>
    %c608 = arith.constant 608 : index
    %c0_51 = arith.constant 0 : index
    %155 = vector.load %arg4[%c608, %c0_51] : memref<768x1xf32, #tpu.memory_space<vmem>>, vector<32x1xf32>
    %cst_52 = arith.constant dense<0.000000e+00> : vector<16xf32>
    %156 = vector.multi_reduction <add>, %151, %cst_52 [0] : vector<32x16xf32> to vector<16xf32>
    %157 = vector.shape_cast %156 : vector<16xf32> to vector<1x16xf32>
    %cst_53 = arith.constant 3.200000e+01 : f32
    %158 = vector.broadcast %cst_53 : f32 to vector<1x16xf32>
    %159 = arith.divf %157, %158 : vector<1x16xf32>
    %160 = vector.broadcast %159 : vector<1x16xf32> to vector<32x16xf32>
    %161 = arith.subf %151, %160 : vector<32x16xf32>
    %162 = arith.mulf %161, %161 : vector<32x16xf32>
    %cst_54 = arith.constant dense<0.000000e+00> : vector<16xf32>
    %163 = vector.multi_reduction <add>, %162, %cst_54 [0] : vector<32x16xf32> to vector<16xf32>
    %164 = vector.shape_cast %163 : vector<16xf32> to vector<1x16xf32>
    %cst_55 = arith.constant 0.0322580636 : f32
    %165 = vector.broadcast %cst_55 : f32 to vector<1x16xf32>
    %166 = arith.mulf %164, %165 : vector<1x16xf32>
    %167 = math.sqrt %166 : vector<1x16xf32>
    %cst_56 = arith.constant 9.99999997E-7 : f32
    %168 = vector.broadcast %cst_56 : f32 to vector<1x16xf32>
    %169 = arith.addf %167, %168 : vector<1x16xf32>
    %170 = tpu.reciprocal %169 : vector<1x16xf32> -> vector<1x16xf32>
    %171 = vector.broadcast %159 : vector<1x16xf32> to vector<32x16xf32>
    %172 = arith.subf %151, %171 : vector<32x16xf32>
    %173 = vector.broadcast %154 : vector<32x1xf32> to vector<32x16xf32>
    %174 = arith.mulf %173, %172 : vector<32x16xf32>
    %175 = vector.broadcast %170 : vector<1x16xf32> to vector<32x16xf32>
    %176 = arith.mulf %174, %175 : vector<32x16xf32>
    %177 = vector.broadcast %155 : vector<32x1xf32> to vector<32x16xf32>
    %178 = arith.addf %176, %177 : vector<32x16xf32>
    %179 = arith.truncf %178 : vector<32x16xf32> to vector<32x16xbf16>
    %180 = vector.extract_strided_slice %153 {offsets = [0, 0], sizes = [96, 32], strides = [1, 1]} : vector<192x32xbf16> to vector<96x32xbf16>
    %cst_57 = arith.constant dense<0.000000e+00> : vector<96x16xf32>
    %181 = tpu.matmul %180, %179, %cst_57 {dimension_numbers = #tpu.dot_dimension_numbers<[1], [0], [0], [1], [0, 0, 1, 1], [], []>} : vector<96x32xbf16>, vector<32x16xbf16>, vector<96x16xf32> -> vector<96x16xf32>
    %c352 = arith.constant 352 : index
    %c0_58 = arith.constant 0 : index
    %182 = vector.load %arg4[%c352, %c0_58] : memref<768x1xf32, #tpu.memory_space<vmem>>, vector<96x1xf32>
    %183 = vector.broadcast %182 : vector<96x1xf32> to vector<96x16xf32>
    %184 = arith.addf %181, %183 : vector<96x16xf32>
    %185 = vector.extract_strided_slice %184 {offsets = [0, 0], sizes = [8, 16], strides = [1, 1]} : vector<96x16xf32> to vector<8x16xf32>
    %186 = vector.extract_strided_slice %184 {offsets = [32, 0], sizes = [8, 16], strides = [1, 1]} : vector<96x16xf32> to vector<8x16xf32>
    %187 = vector.extract_strided_slice %184 {offsets = [64, 0], sizes = [8, 16], strides = [1, 1]} : vector<96x16xf32> to vector<8x16xf32>
    %188 = tpu.transpose %185, [1, 0] : vector<8x16xf32> -> vector<16x8xf32>
    %cst_59 = arith.constant dense<0.000000e+00> : vector<16x16xf32>
    %189 = tpu.matmul %188, %186, %cst_59 {dimension_numbers = #tpu.dot_dimension_numbers<[1], [0], [0], [1], [0, 0, 1, 1], [], []>} : vector<16x8xf32>, vector<8x16xf32>, vector<16x16xf32> -> vector<16x16xf32>
    %190 = arith.addf %189, %1 : vector<16x16xf32>
    %cst_60 = arith.constant dense<0xFF800000> : vector<16xf32>
    %191 = vector.multi_reduction <maximumf>, %190, %cst_60 [1] : vector<16x16xf32> to vector<16xf32>
    %192 = vector.shape_cast %191 : vector<16xf32> to vector<16x1xf32>
    %193 = vector.broadcast %192 : vector<16x1xf32> to vector<16x16xf32>
    %194 = arith.subf %190, %193 : vector<16x16xf32>
    %195 = math.exp %194 : vector<16x16xf32>
    %cst_61 = arith.constant dense<0.000000e+00> : vector<16xf32>
    %196 = vector.multi_reduction <add>, %195, %cst_61 [1] : vector<16x16xf32> to vector<16xf32>
    %197 = vector.shape_cast %196 : vector<16xf32> to vector<16x1xf32>
    %198 = tpu.reciprocal %197 : vector<16x1xf32> -> vector<16x1xf32>
    %199 = vector.broadcast %198 : vector<16x1xf32> to vector<16x16xf32>
    %200 = arith.mulf %195, %199 : vector<16x16xf32>
    "tpu.trace_start"() <{level = 10 : i32, message = "dk,qk->dq"}> : () -> ()
    %cst_62 = arith.constant dense<0.000000e+00> : vector<8x16xf32>
    %201 = tpu.matmul %187, %200, %cst_62 {dimension_numbers = #tpu.dot_dimension_numbers<[1], [1], [0], [0], [0, 0, 1, 0], [], []>} : vector<8x16xf32>, vector<16x16xf32>, vector<8x16xf32> -> vector<8x16xf32>
    "tpu.trace_stop"() : () -> ()
    %202 = vector.extract_strided_slice %184 {offsets = [8, 0], sizes = [8, 16], strides = [1, 1]} : vector<96x16xf32> to vector<8x16xf32>
    %203 = vector.extract_strided_slice %184 {offsets = [40, 0], sizes = [8, 16], strides = [1, 1]} : vector<96x16xf32> to vector<8x16xf32>
    %204 = vector.extract_strided_slice %184 {offsets = [72, 0], sizes = [8, 16], strides = [1, 1]} : vector<96x16xf32> to vector<8x16xf32>
    %205 = tpu.transpose %202, [1, 0] : vector<8x16xf32> -> vector<16x8xf32>
    %cst_63 = arith.constant dense<0.000000e+00> : vector<16x16xf32>
    %206 = tpu.matmul %205, %203, %cst_63 {dimension_numbers = #tpu.dot_dimension_numbers<[1], [0], [0], [1], [0, 0, 1, 1], [], []>} : vector<16x8xf32>, vector<8x16xf32>, vector<16x16xf32> -> vector<16x16xf32>
    %207 = arith.addf %206, %1 : vector<16x16xf32>
    %cst_64 = arith.constant dense<0xFF800000> : vector<16xf32>
    %208 = vector.multi_reduction <maximumf>, %207, %cst_64 [1] : vector<16x16xf32> to vector<16xf32>
    %209 = vector.shape_cast %208 : vector<16xf32> to vector<16x1xf32>
    %210 = vector.broadcast %209 : vector<16x1xf32> to vector<16x16xf32>
    %211 = arith.subf %207, %210 : vector<16x16xf32>
    %212 = math.exp %211 : vector<16x16xf32>
    %cst_65 = arith.constant dense<0.000000e+00> : vector<16xf32>
    %213 = vector.multi_reduction <add>, %212, %cst_65 [1] : vector<16x16xf32> to vector<16xf32>
    %214 = vector.shape_cast %213 : vector<16xf32> to vector<16x1xf32>
    %215 = tpu.reciprocal %214 : vector<16x1xf32> -> vector<16x1xf32>
    %216 = vector.broadcast %215 : vector<16x1xf32> to vector<16x16xf32>
    %217 = arith.mulf %212, %216 : vector<16x16xf32>
    "tpu.trace_start"() <{level = 10 : i32, message = "dk,qk->dq"}> : () -> ()
    %cst_66 = arith.constant dense<0.000000e+00> : vector<8x16xf32>
    %218 = tpu.matmul %204, %217, %cst_66 {dimension_numbers = #tpu.dot_dimension_numbers<[1], [1], [0], [0], [0, 0, 1, 0], [], []>} : vector<8x16xf32>, vector<16x16xf32>, vector<8x16xf32> -> vector<8x16xf32>
    "tpu.trace_stop"() : () -> ()
    %219 = vector.extract_strided_slice %184 {offsets = [16, 0], sizes = [8, 16], strides = [1, 1]} : vector<96x16xf32> to vector<8x16xf32>
    %220 = vector.extract_strided_slice %184 {offsets = [48, 0], sizes = [8, 16], strides = [1, 1]} : vector<96x16xf32> to vector<8x16xf32>
    %221 = vector.extract_strided_slice %184 {offsets = [80, 0], sizes = [8, 16], strides = [1, 1]} : vector<96x16xf32> to vector<8x16xf32>
    %222 = tpu.transpose %219, [1, 0] : vector<8x16xf32> -> vector<16x8xf32>
    %cst_67 = arith.constant dense<0.000000e+00> : vector<16x16xf32>
    %223 = tpu.matmul %222, %220, %cst_67 {dimension_numbers = #tpu.dot_dimension_numbers<[1], [0], [0], [1], [0, 0, 1, 1], [], []>} : vector<16x8xf32>, vector<8x16xf32>, vector<16x16xf32> -> vector<16x16xf32>
    %224 = arith.addf %223, %1 : vector<16x16xf32>
    %cst_68 = arith.constant dense<0xFF800000> : vector<16xf32>
    %225 = vector.multi_reduction <maximumf>, %224, %cst_68 [1] : vector<16x16xf32> to vector<16xf32>
    %226 = vector.shape_cast %225 : vector<16xf32> to vector<16x1xf32>
    %227 = vector.broadcast %226 : vector<16x1xf32> to vector<16x16xf32>
    %228 = arith.subf %224, %227 : vector<16x16xf32>
    %229 = math.exp %228 : vector<16x16xf32>
    %cst_69 = arith.constant dense<0.000000e+00> : vector<16xf32>
    %230 = vector.multi_reduction <add>, %229, %cst_69 [1] : vector<16x16xf32> to vector<16xf32>
    %231 = vector.shape_cast %230 : vector<16xf32> to vector<16x1xf32>
    %232 = tpu.reciprocal %231 : vector<16x1xf32> -> vector<16x1xf32>
    %233 = vector.broadcast %232 : vector<16x1xf32> to vector<16x16xf32>
    %234 = arith.mulf %229, %233 : vector<16x16xf32>
    "tpu.trace_start"() <{level = 10 : i32, message = "dk,qk->dq"}> : () -> ()
    %cst_70 = arith.constant dense<0.000000e+00> : vector<8x16xf32>
    %235 = tpu.matmul %221, %234, %cst_70 {dimension_numbers = #tpu.dot_dimension_numbers<[1], [1], [0], [0], [0, 0, 1, 0], [], []>} : vector<8x16xf32>, vector<16x16xf32>, vector<8x16xf32> -> vector<8x16xf32>
    "tpu.trace_stop"() : () -> ()
    %236 = vector.extract_strided_slice %184 {offsets = [24, 0], sizes = [8, 16], strides = [1, 1]} : vector<96x16xf32> to vector<8x16xf32>
    %237 = vector.extract_strided_slice %184 {offsets = [56, 0], sizes = [8, 16], strides = [1, 1]} : vector<96x16xf32> to vector<8x16xf32>
    %238 = vector.extract_strided_slice %184 {offsets = [88, 0], sizes = [8, 16], strides = [1, 1]} : vector<96x16xf32> to vector<8x16xf32>
    %239 = tpu.transpose %236, [1, 0] : vector<8x16xf32> -> vector<16x8xf32>
    %cst_71 = arith.constant dense<0.000000e+00> : vector<16x16xf32>
    %240 = tpu.matmul %239, %237, %cst_71 {dimension_numbers = #tpu.dot_dimension_numbers<[1], [0], [0], [1], [0, 0, 1, 1], [], []>} : vector<16x8xf32>, vector<8x16xf32>, vector<16x16xf32> -> vector<16x16xf32>
    %241 = arith.addf %240, %1 : vector<16x16xf32>
    %cst_72 = arith.constant dense<0xFF800000> : vector<16xf32>
    %242 = vector.multi_reduction <maximumf>, %241, %cst_72 [1] : vector<16x16xf32> to vector<16xf32>
    %243 = vector.shape_cast %242 : vector<16xf32> to vector<16x1xf32>
    %244 = vector.broadcast %243 : vector<16x1xf32> to vector<16x16xf32>
    %245 = arith.subf %241, %244 : vector<16x16xf32>
    %246 = math.exp %245 : vector<16x16xf32>
    %cst_73 = arith.constant dense<0.000000e+00> : vector<16xf32>
    %247 = vector.multi_reduction <add>, %246, %cst_73 [1] : vector<16x16xf32> to vector<16xf32>
    %248 = vector.shape_cast %247 : vector<16xf32> to vector<16x1xf32>
    %249 = tpu.reciprocal %248 : vector<16x1xf32> -> vector<16x1xf32>
    %250 = vector.broadcast %249 : vector<16x1xf32> to vector<16x16xf32>
    %251 = arith.mulf %246, %250 : vector<16x16xf32>
    "tpu.trace_start"() <{level = 10 : i32, message = "dk,qk->dq"}> : () -> ()
    %cst_74 = arith.constant dense<0.000000e+00> : vector<8x16xf32>
    %252 = tpu.matmul %238, %251, %cst_74 {dimension_numbers = #tpu.dot_dimension_numbers<[1], [1], [0], [0], [0, 0, 1, 0], [], []>} : vector<8x16xf32>, vector<16x16xf32>, vector<8x16xf32> -> vector<8x16xf32>
    "tpu.trace_stop"() : () -> ()
    %253 = tpu.concatenate %201, %218, %235, %252 in 0 : vector<8x16xf32>, vector<8x16xf32>, vector<8x16xf32>, vector<8x16xf32> -> vector<32x16xf32>
    %254 = vector.extract_strided_slice %153 {offsets = [96, 0], sizes = [32, 32], strides = [1, 1]} : vector<192x32xbf16> to vector<32x32xbf16>
    %255 = arith.truncf %253 : vector<32x16xf32> to vector<32x16xbf16>
    %cst_75 = arith.constant dense<0.000000e+00> : vector<32x16xf32>
    %256 = tpu.matmul %254, %255, %cst_75 {dimension_numbers = #tpu.dot_dimension_numbers<[1], [0], [0], [1], [0, 0, 1, 1], [], []>} : vector<32x32xbf16>, vector<32x16xbf16>, vector<32x16xf32> -> vector<32x16xf32>
    %257 = arith.addf %151, %256 : vector<32x16xf32>
    %c448 = arith.constant 448 : index
    %c0_76 = arith.constant 0 : index
    %258 = vector.load %arg4[%c448, %c0_76] : memref<768x1xf32, #tpu.memory_space<vmem>>, vector<32x1xf32>
    %259 = vector.broadcast %258 : vector<32x1xf32> to vector<32x16xf32>
    %260 = arith.addf %257, %259 : vector<32x16xf32>
    %c640 = arith.constant 640 : index
    %c0_77 = arith.constant 0 : index
    %261 = vector.load %arg4[%c640, %c0_77] : memref<768x1xf32, #tpu.memory_space<vmem>>, vector<32x1xf32>
    %c672 = arith.constant 672 : index
    %c0_78 = arith.constant 0 : index
    %262 = vector.load %arg4[%c672, %c0_78] : memref<768x1xf32, #tpu.memory_space<vmem>>, vector<32x1xf32>
    %cst_79 = arith.constant dense<0.000000e+00> : vector<16xf32>
    %263 = vector.multi_reduction <add>, %260, %cst_79 [0] : vector<32x16xf32> to vector<16xf32>
    %264 = vector.shape_cast %263 : vector<16xf32> to vector<1x16xf32>
    %cst_80 = arith.constant 3.200000e+01 : f32
    %265 = vector.broadcast %cst_80 : f32 to vector<1x16xf32>
    %266 = arith.divf %264, %265 : vector<1x16xf32>
    %267 = vector.broadcast %266 : vector<1x16xf32> to vector<32x16xf32>
    %268 = arith.subf %260, %267 : vector<32x16xf32>
    %269 = arith.mulf %268, %268 : vector<32x16xf32>
    %cst_81 = arith.constant dense<0.000000e+00> : vector<16xf32>
    %270 = vector.multi_reduction <add>, %269, %cst_81 [0] : vector<32x16xf32> to vector<16xf32>
    %271 = vector.shape_cast %270 : vector<16xf32> to vector<1x16xf32>
    %cst_82 = arith.constant 0.0322580636 : f32
    %272 = vector.broadcast %cst_82 : f32 to vector<1x16xf32>
    %273 = arith.mulf %271, %272 : vector<1x16xf32>
    %274 = math.sqrt %273 : vector<1x16xf32>
    %cst_83 = arith.constant 9.99999997E-7 : f32
    %275 = vector.broadcast %cst_83 : f32 to vector<1x16xf32>
    %276 = arith.addf %274, %275 : vector<1x16xf32>
    %277 = tpu.reciprocal %276 : vector<1x16xf32> -> vector<1x16xf32>
    %278 = vector.broadcast %266 : vector<1x16xf32> to vector<32x16xf32>
    %279 = arith.subf %260, %278 : vector<32x16xf32>
    %280 = vector.broadcast %261 : vector<32x1xf32> to vector<32x16xf32>
    %281 = arith.mulf %280, %279 : vector<32x16xf32>
    %282 = vector.broadcast %277 : vector<1x16xf32> to vector<32x16xf32>
    %283 = arith.mulf %281, %282 : vector<32x16xf32>
    %284 = vector.broadcast %262 : vector<32x1xf32> to vector<32x16xf32>
    %285 = arith.addf %283, %284 : vector<32x16xf32>
    %286 = arith.truncf %285 : vector<32x16xf32> to vector<32x16xbf16>
    %287 = vector.extract_strided_slice %153 {offsets = [128, 0], sizes = [64, 32], strides = [1, 1]} : vector<192x32xbf16> to vector<64x32xbf16>
    %cst_84 = arith.constant dense<0.000000e+00> : vector<64x16xf32>
    %288 = tpu.matmul %287, %286, %cst_84 {dimension_numbers = #tpu.dot_dimension_numbers<[1], [0], [0], [1], [0, 0, 1, 1], [], []>} : vector<64x32xbf16>, vector<32x16xbf16>, vector<64x16xf32> -> vector<64x16xf32>
    %c480 = arith.constant 480 : index
    %c0_85 = arith.constant 0 : index
    %289 = vector.load %arg4[%c480, %c0_85] : memref<768x1xf32, #tpu.memory_space<vmem>>, vector<64x1xf32>
    %290 = vector.broadcast %289 : vector<64x1xf32> to vector<64x16xf32>
    %291 = arith.addf %288, %290 : vector<64x16xf32>
    %cst_86 = arith.constant 0.000000e+00 : f32
    %292 = vector.broadcast %cst_86 : f32 to vector<64x16xf32>
    %293 = arith.maximumf %291, %292 : vector<64x16xf32>
    %c1_87 = arith.constant 1 : index
    %c0_88 = arith.constant 0 : index
    %c0_89 = arith.constant 0 : index
    %294 = vector.load %arg3[%c1_87, %c0_88, %c0_89] : memref<2x32x64xbf16, #tpu.memory_space<vmem>>, vector<1x32x64xbf16>
    %295 = vector.shape_cast %294 : vector<1x32x64xbf16> to vector<32x64xbf16>
    %296 = arith.truncf %293 : vector<64x16xf32> to vector<64x16xbf16>
    %cst_90 = arith.constant dense<0.000000e+00> : vector<32x16xf32>
    %297 = tpu.matmul %295, %296, %cst_90 {dimension_numbers = #tpu.dot_dimension_numbers<[1], [0], [0], [1], [0, 0, 1, 1], [], []>} : vector<32x64xbf16>, vector<64x16xbf16>, vector<32x16xf32> -> vector<32x16xf32>
    %298 = arith.addf %260, %297 : vector<32x16xf32>
    %c544 = arith.constant 544 : index
    %c0_91 = arith.constant 0 : index
    %299 = vector.load %arg4[%c544, %c0_91] : memref<768x1xf32, #tpu.memory_space<vmem>>, vector<32x1xf32>
    %300 = vector.broadcast %299 : vector<32x1xf32> to vector<32x16xf32>
    %301 = arith.addf %298, %300 : vector<32x16xf32>
    %c704 = arith.constant 704 : index
    %c0_92 = arith.constant 0 : index
    %302 = vector.load %arg4[%c704, %c0_92] : memref<768x1xf32, #tpu.memory_space<vmem>>, vector<32x1xf32>
    %c736 = arith.constant 736 : index
    %c0_93 = arith.constant 0 : index
    %303 = vector.load %arg4[%c736, %c0_93] : memref<768x1xf32, #tpu.memory_space<vmem>>, vector<32x1xf32>
    %cst_94 = arith.constant dense<0.000000e+00> : vector<16xf32>
    %304 = vector.multi_reduction <add>, %301, %cst_94 [0] : vector<32x16xf32> to vector<16xf32>
    %305 = vector.shape_cast %304 : vector<16xf32> to vector<1x16xf32>
    %cst_95 = arith.constant 3.200000e+01 : f32
    %306 = vector.broadcast %cst_95 : f32 to vector<1x16xf32>
    %307 = arith.divf %305, %306 : vector<1x16xf32>
    %308 = vector.broadcast %307 : vector<1x16xf32> to vector<32x16xf32>
    %309 = arith.subf %301, %308 : vector<32x16xf32>
    %310 = arith.mulf %309, %309 : vector<32x16xf32>
    %cst_96 = arith.constant dense<0.000000e+00> : vector<16xf32>
    %311 = vector.multi_reduction <add>, %310, %cst_96 [0] : vector<32x16xf32> to vector<16xf32>
    %312 = vector.shape_cast %311 : vector<16xf32> to vector<1x16xf32>
    %cst_97 = arith.constant 0.0322580636 : f32
    %313 = vector.broadcast %cst_97 : f32 to vector<1x16xf32>
    %314 = arith.mulf %312, %313 : vector<1x16xf32>
    %315 = math.sqrt %314 : vector<1x16xf32>
    %cst_98 = arith.constant 9.99999997E-7 : f32
    %316 = vector.broadcast %cst_98 : f32 to vector<1x16xf32>
    %317 = arith.addf %315, %316 : vector<1x16xf32>
    %318 = tpu.reciprocal %317 : vector<1x16xf32> -> vector<1x16xf32>
    %319 = vector.broadcast %307 : vector<1x16xf32> to vector<32x16xf32>
    %320 = arith.subf %301, %319 : vector<32x16xf32>
    %321 = vector.broadcast %302 : vector<32x1xf32> to vector<32x16xf32>
    %322 = arith.mulf %321, %320 : vector<32x16xf32>
    %323 = vector.broadcast %318 : vector<1x16xf32> to vector<32x16xf32>
    %324 = arith.mulf %322, %323 : vector<32x16xf32>
    %325 = vector.broadcast %303 : vector<32x1xf32> to vector<32x16xf32>
    %326 = arith.addf %324, %325 : vector<32x16xf32>
    %c0_99 = arith.constant 0 : index
    %c0_100 = arith.constant 0 : index
    %327 = vector.load %arg5[%c0_99, %c0_100] : memref<32x16xf32, #tpu.memory_space<vmem>>, vector<32x16xf32>
    tpu.vector_store %arg5[%c0_99, %c0_100], %326 {strides = array<i32>} : memref<32x16xf32, #tpu.memory_space<vmem>>, vector<32x16xf32>,
    return
  }
}

</mosaic_0001>

<llo_original>
// kernel: tpu_custom_call.1
$region0: #{tpu_custom_call.1}
  #allocation0 [shape = 'u32[]', space=smem, size = 0x4, offset = 0x4, fixed_abs, tag = 'smem constant byte address 0x4 - core index']
  #allocation1 [shape = 'u32[144,128]{1,0:T(1,128)}', space=vmem, size = 0x12000, scoped, tag = 'internal scratch']
  %s0 = inlined_call_operand.vmem [shape: f32[32,16], index: 0, kind: input, shape index: {}]
  %s1 = inlined_call_operand.vmem [shape: f32[16,16], index: 1, kind: input, shape index: {}]
  %s2 = inlined_call_operand.vmem [shape: bf16[2,192,32], index: 2, kind: input, shape index: {}]
  %s3 = inlined_call_operand.vmem [shape: bf16[2,32,64], index: 3, kind: input, shape index: {}]
  %s4 = inlined_call_operand.vmem [shape: f32[768,1], index: 4, kind: input, shape index: {}]
  %s5 = inlined_call_operand.vmem [shape: f32[32,16], index: 5, kind: output, shape index: {}]
  %s6 = sld [smem:[#allocation0]]
  $region30: #{tpu_custom_call.1} parent=0
    _
  %s8 = ssub.s32 1, %s6
  %s9 = scalar_select 0, %s8, %s6
  // Predicated region
  $region2: #{tpu_custom_call.1} parent=0 // pred_check
    _
  $region3: #{tpu_custom_call.1} parent=0 // pred_check_branch
    %11 = sbr.rel (0) target = $region5
  $region4: #{tpu_custom_call.1} parent=0 // pred_region
    _
  $region5: #{tpu_custom_call.1} parent=0 // pred_fallthru
    _
  // Predicated region
  $region6: #{tpu_custom_call.1} parent=0 // pred_check
    _
  $region7: #{tpu_custom_call.1} parent=0 // pred_check_branch
    %13 = sbr.rel (0) target = $region9
  $region8: #{tpu_custom_call.1} parent=0 // pred_region
    _
  $region9: #{tpu_custom_call.1} parent=0 // pred_fallthru
    _
  // Predicated region
  $region10: #{tpu_custom_call.1} parent=0 // pred_check
    _
  $region11: #{tpu_custom_call.1} parent=0 // pred_check_branch
    %15 = sbr.rel (0) target = $region13
  $region12: #{tpu_custom_call.1} parent=0 // pred_region
    _
  $region13: #{tpu_custom_call.1} parent=0 // pred_fallthru
    _
  // Predicated region
  $region14: #{tpu_custom_call.1} parent=0 // pred_check
    _
  $region15: #{tpu_custom_call.1} parent=0 // pred_check_branch
    %17 = sbr.rel (0) target = $region17
  $region16: #{tpu_custom_call.1} parent=0 // pred_region
    _
  $region17: #{tpu_custom_call.1} parent=0 // pred_fallthru
    _
  // Predicated region
  $region18: #{tpu_custom_call.1} parent=0 // pred_check
    _
  $region19: #{tpu_custom_call.1} parent=0 // pred_check_branch
    %19 = sbr.rel (0) target = $region21
  $region20: #{tpu_custom_call.1} parent=0 // pred_region
    _
  $region21: #{tpu_custom_call.1} parent=0 // pred_fallthru
    _
  %v21 = vld [vmem:[%s0] sm:$0xff]
  %v22 = vld [vmem:[%s0 + $0x8] sm:$0xff]
  %v23 = vld [vmem:[%s0 + $0x10] sm:$0xff]
  %v24 = vld [vmem:[%s0 + $0x18] sm:$0xff]
  %v25 = vld [vmem:[%s1] sm:$0xff]
  %v26 = vld [vmem:[%s1 + $0x8] sm:$0xff]
  %v27 = vld [vmem:[%s2] sm:$0xf]
  %v28 = vld [vmem:[%s2 + $0x4] sm:$0xf]
  %v29 = vld [vmem:[%s2 + $0x8] sm:$0xf]
  %v30 = vld [vmem:[%s2 + $0xc] sm:$0xf]
  %v31 = vld [vmem:[%s2 + $0x10] sm:$0xf]
  %v32 = vld [vmem:[%s2 + $0x14] sm:$0xf]
  %v33 = vld [vmem:[%s2 + $0x18] sm:$0xf]
  %v34 = vld [vmem:[%s2 + $0x1c] sm:$0xf]
  %v35 = vld [vmem:[%s2 + $0x20] sm:$0xf]
  %v36 = vld [vmem:[%s2 + $0x24] sm:$0xf]
  %v37 = vld [vmem:[%s2 + $0x28] sm:$0xf]
  %v38 = vld [vmem:[%s2 + $0x2c] sm:$0xf]
  %v39 = vld [vmem:[%s2 + $0x30] sm:$0xf]
  %v40 = vld [vmem:[%s2 + $0x34] sm:$0xf]
  %v41 = vld [vmem:[%s2 + $0x38] sm:$0xf]
  %v42 = vld [vmem:[%s2 + $0x3c] sm:$0xf]
  %v43 = vld [vmem:[%s2 + $0x40] sm:$0xf]
  %v44 = vld [vmem:[%s2 + $0x44] sm:$0xf]
  %v45 = vld [vmem:[%s2 + $0x48] sm:$0xf]
  %v46 = vld [vmem:[%s2 + $0x4c] sm:$0xf]
  %v47 = vld [vmem:[%s2 + $0x50] sm:$0xf]
  %v48 = vld [vmem:[%s2 + $0x54] sm:$0xf]
  %v49 = vld [vmem:[%s2 + $0x58] sm:$0xf]
  %v50 = vld [vmem:[%s2 + $0x5c] sm:$0xf]
  %v51 = vld [vmem:[%s4 + $0xe0] sm:$0xff]
  %v52 = vld [vmem:[%s4 + $0xe8] sm:$0xff]
  %v53 = vld [vmem:[%s4 + $0xf0] sm:$0xff]
  %v54 = vld [vmem:[%s4 + $0xf8] sm:$0xff]
  %v55 = vld [vmem:[%s4 + $0x100] sm:$0xff]
  %v56 = vld [vmem:[%s4 + $0x108] sm:$0xff]
  %v57 = vld [vmem:[%s4 + $0x110] sm:$0xff]
  %v58 = vld [vmem:[%s4 + $0x118] sm:$0xff]
  %vm59 = vcmask 130048
  %v60 = vsel %vm59, %v21, 0.0
  %v61 = vsel %vm59, %v22, 0.0
  %v62 = vadd.f32 %v60, %v61
  %v63 = vsel %vm59, %v23, 0.0
  %v64 = vadd.f32 %v62, %v63
  %v65 = vsel %vm59, %v24, 0.0
  %v66 = vadd.f32 %v64, %v65
  %v67 = vrot.slane %v66, 4
  %v68 = vadd.f32 %v66, %v67
  %v69 = vrot.slane %v68, 2
  %v70 = vadd.f32 %v68, %v69
  %v71 = vrot.slane %v70, 1
  %v72 = vadd.f32 %v70, %v71
  %v73 = vrcp.pop 32.0
  %v74 = vmul.f32 %v72, %v73
  %v75 = vsub.f32 %v21, %v74
  %v76 = vsub.f32 %v22, %v74
  %v77 = vsub.f32 %v23, %v74
  %v78 = vsub.f32 %v24, %v74
  %v79 = vmul.f32 %v75, %v75
  %v80 = vmul.f32 %v76, %v76
  %v81 = vmul.f32 %v77, %v77
  %v82 = vmul.f32 %v78, %v78
  %v83 = vsel %vm59, %v79, 0.0
  %v84 = vsel %vm59, %v80, 0.0
  %v85 = vadd.f32 %v83, %v84
  %v86 = vsel %vm59, %v81, 0.0
  %v87 = vadd.f32 %v85, %v86
  %v88 = vsel %vm59, %v82, 0.0
  %v89 = vadd.f32 %v87, %v88
  %v90 = vrot.slane %v89, 4
  %v91 = vadd.f32 %v89, %v90
  %v92 = vrot.slane %v91, 2
  %v93 = vadd.f32 %v91, %v92
  %v94 = vrot.slane %v93, 1
  %v95 = vadd.f32 %v93, %v94
  %v96 = vmul.f32 %v95, 0.032258064
  %v97 = vrsqrt.pop %v96
  %v98 = vmul.f32 %v96, %v97
  %vm99 = vcmp.eq.f32.partialorder %v96, inf
  %v100 = vsel %vm99, %v96, %v98
  %vm101 = vcmp.eq.f32.partialorder %v96, 0.0
  %v102 = vand.u32 %v96, 2147483648
  %v103 = vsel %vm101, %v102, %v100
  %v104 = vadd.f32 %v103, 1e-06
  %v105 = vrcp.pop %v104
  %107 = vset.pattern.permute.xlu0 0
  %108 = vperm.xlu0 %107, %v51
  %v109 = vpop.permute.xlu0 %108
  %112 = vset.pattern.permute.xlu0 0
  %113 = vperm.xlu0 %112, %v52
  %v114 = vpop.permute.xlu0 %113
  %117 = vset.pattern.permute.xlu0 0
  %118 = vperm.xlu0 %117, %v53
  %v119 = vpop.permute.xlu0 %118
  %122 = vset.pattern.permute.xlu0 0
  %123 = vperm.xlu0 %122, %v54
  %v124 = vpop.permute.xlu0 %123
  %v126 = vmul.f32 %v109, %v75
  %v127 = vmul.f32 %v114, %v76
  %v128 = vmul.f32 %v119, %v77
  %v129 = vmul.f32 %v124, %v78
  %v130 = vmul.f32 %v126, %v105
  %v131 = vmul.f32 %v127, %v105
  %v132 = vmul.f32 %v128, %v105
  %v133 = vmul.f32 %v129, %v105
  %135 = vset.pattern.permute.xlu0 0
  %136 = vperm.xlu0 %135, %v55
  %v137 = vpop.permute.xlu0 %136
  %140 = vset.pattern.permute.xlu0 0
  %141 = vperm.xlu0 %140, %v56
  %v142 = vpop.permute.xlu0 %141
  %145 = vset.pattern.permute.xlu0 0
  %146 = vperm.xlu0 %145, %v57
  %v147 = vpop.permute.xlu0 %146
  %150 = vset.pattern.permute.xlu0 0
  %151 = vperm.xlu0 %150, %v58
  %v152 = vpop.permute.xlu0 %151
  %v154 = vadd.f32 %v130, %v137
  %v155 = vadd.f32 %v131, %v142
  %v156 = vadd.f32 %v132, %v147
  %v157 = vadd.f32 %v133, %v152
  %v158 = vpack.c.bf16 %v155, %v154
  %v159 = vpack.c.bf16 %v157, %v156
  %v160 = vld [vmem:[%s4] sm:$0xff]
  %v161 = vld [vmem:[%s4 + $0x8] sm:$0xff]
  %v162 = vld [vmem:[%s4 + $0x10] sm:$0xff]
  %v163 = vld [vmem:[%s4 + $0x18] sm:$0xff]
  %v164 = vld [vmem:[%s4 + $0x20] sm:$0xff]
  %v165 = vld [vmem:[%s4 + $0x28] sm:$0xff]
  %v166 = vld [vmem:[%s4 + $0x30] sm:$0xff]
  %v167 = vld [vmem:[%s4 + $0x38] sm:$0xff]
  %v168 = vld [vmem:[%s4 + $0x40] sm:$0xff]
  %v169 = vld [vmem:[%s4 + $0x48] sm:$0xff]
  %v170 = vld [vmem:[%s4 + $0x50] sm:$0xff]
  %v171 = vld [vmem:[%s4 + $0x58] sm:$0xff]
  %173 = vset.pattern.permute.xlu0 0
  %174 = vperm.xlu0 %173, %v160
  %v175 = vpop.permute.xlu0 %174
  %178 = vset.pattern.permute.xlu0 0
  %179 = vperm.xlu0 %178, %v161
  %v180 = vpop.permute.xlu0 %179
  %183 = vset.pattern.permute.xlu0 0
  %184 = vperm.xlu0 %183, %v162
  %v185 = vpop.permute.xlu0 %184
  %188 = vset.pattern.permute.xlu0 0
  %189 = vperm.xlu0 %188, %v163
  %v190 = vpop.permute.xlu0 %189
  %193 = vset.pattern.permute.xlu0 0
  %194 = vperm.xlu0 %193, %v164
  %v195 = vpop.permute.xlu0 %194
  %198 = vset.pattern.permute.xlu0 0
  %199 = vperm.xlu0 %198, %v165
  %v200 = vpop.permute.xlu0 %199
  %203 = vset.pattern.permute.xlu0 0
  %204 = vperm.xlu0 %203, %v166
  %v205 = vpop.permute.xlu0 %204
  %208 = vset.pattern.permute.xlu0 0
  %209 = vperm.xlu0 %208, %v167
  %v210 = vpop.permute.xlu0 %209
  %213 = vset.pattern.permute.xlu0 0
  %214 = vperm.xlu0 %213, %v168
  %v215 = vpop.permute.xlu0 %214
  %218 = vset.pattern.permute.xlu0 0
  %219 = vperm.xlu0 %218, %v169
  %v220 = vpop.permute.xlu0 %219
  %223 = vset.pattern.permute.xlu0 0
  %224 = vperm.xlu0 %223, %v170
  %v225 = vpop.permute.xlu0 %224
  %228 = vset.pattern.permute.xlu0 0
  %229 = vperm.xlu0 %228, %v171
  %v230 = vpop.permute.xlu0 %229
  %v244 = vunpack.c.l.b16 %v27
  %v245 = vunpack.c.l.b16 %v28
  %v246 = vunpack.c.l.b16 %v29
  %v247 = vunpack.c.l.b16 %v30
  %v248 = vunpack.c.l.b16 %v31
  %v249 = vunpack.c.l.b16 %v32
  %v250 = vunpack.c.l.b16 %v33
  %v251 = vunpack.c.l.b16 %v34
  %v252 = vunpack.c.l.b16 %v35
  %v253 = vunpack.c.l.b16 %v36
  %v254 = vunpack.c.l.b16 %v37
  %v255 = vunpack.c.l.b16 %v38
  %v256 = vpack.c.b16 %v245, %v244
  %v257 = vpack.c.b16 %v247, %v246
  %v258 = vpack.c.b16 %v249, %v248
  %v259 = vpack.c.b16 %v251, %v250
  %v260 = vpack.c.b16 %v253, %v252
  %v261 = vpack.c.b16 %v255, %v254
  %vm262 = vcmask 261120
  %v264 = vsel %vm262, %v256, 0
  %v267 = vsel %vm262, %v257, 0
  %v270 = vsel %vm262, %v258, 0
  %v273 = vsel %vm262, %v259, 0
  %v276 = vsel %vm262, %v260, 0
  %v279 = vsel %vm262, %v261, 0
  %281 = vmatprep.subr.bf16.mxu0 0
  %282 = vmatpush1.bf16.msra.mxu0 0
  %283 = vmatprep.subr.bf16.mxu0 0
  %284 = vmatpush1.bf16.msra.mxu0 0
  %285 = vmatprep.subr.bf16.mxu0 0
  %286 = vmatpush1.bf16.msra.mxu0 0
  %287 = vmatprep.subr.bf16.mxu0 0
  %288 = vmatpush1.bf16.msra.mxu0 0
  %289 = vmatprep.subr.bf16.mxu0 0
  %290 = vmatpush1.bf16.msra.mxu0 0
  %291 = vmatprep.subr.bf16.mxu0 0
  %292 = vmatpush1.bf16.msra.mxu0 0
  %293 = vmatprep.subr.bf16.mxu0 0
  %294 = vmatpush1.bf16.msra.mxu0 %v159
  %295 = vmatprep.subr.bf16.mxu0 0
  %296 = vmatpush1.bf16.msra.mxu0 %v158
  %297 = vmatprep.subr.bf16.mxu0 0
  %298 = vmatpush2.bf16.msra.mxu0 0
  %299 = vmatprep.subr.bf16.mxu0 0
  %300 = vmatpush2.bf16.msra.mxu0 0
  %301 = vmatprep.subr.bf16.mxu0 0
  %302 = vmatpush2.bf16.msra.mxu0 0
  %303 = vmatprep.subr.bf16.mxu0 0
  %304 = vmatpush2.bf16.msra.mxu0 0
  %305 = vmatprep.subr.bf16.mxu0 0
  %306 = vmatpush2.bf16.msra.mxu0 0
  %307 = vmatprep.subr.bf16.mxu0 0
  %308 = vmatpush2.bf16.msra.mxu0 0
  %309 = vmatprep.subr.bf16.mxu0 0
  %310 = vmatpush2.bf16.msra.mxu0 0
  %311 = vmatprep.subr.bf16.mxu0 0
  %312 = vmatpush2.bf16.msra.mxu0 0
  %313 = vmatprep.mubr.bf16.mxu0 0
  %314 = vmatmul.mubr.bf16.gmra.mxu0 %v264
  %v315 = vpop.f32.mrf.mxu0
  %v316 = vadd.f32 %v175, %v315
  %v317 = vpop.f32.mrf.mxu0
  %v318 = vpop.f32.mrf.mxu0
  %v319 = vadd.f32 %v180, %v318
  %v320 = vpop.f32.mrf.mxu0
  %321 = vmatprep.mubr.bf16.mxu0 0
  %322 = vmatmul.mubr.bf16.gmra.mxu0 %v267
  %v323 = vpop.f32.mrf.mxu0
  %v324 = vadd.f32 %v185, %v323
  %v325 = vpop.f32.mrf.mxu0
  %v326 = vpop.f32.mrf.mxu0
  %v327 = vadd.f32 %v190, %v326
  %v328 = vpop.f32.mrf.mxu0
  %329 = vmatprep.mubr.bf16.mxu0 0
  %330 = vmatmul.mubr.bf16.gmra.mxu0 %v270
  %v331 = vpop.f32.mrf.mxu0
  %v332 = vadd.f32 %v195, %v331
  %v333 = vpop.f32.mrf.mxu0
  %v334 = vpop.f32.mrf.mxu0
  %v335 = vadd.f32 %v200, %v334
  %v336 = vpop.f32.mrf.mxu0
  %337 = vmatprep.mubr.bf16.mxu0 0
  %338 = vmatmul.mubr.bf16.gmra.mxu0 %v273
  %v339 = vpop.f32.mrf.mxu0
  %v340 = vadd.f32 %v205, %v339
  %v341 = vpop.f32.mrf.mxu0
  %v342 = vpop.f32.mrf.mxu0
  %v343 = vadd.f32 %v210, %v342
  %v344 = vpop.f32.mrf.mxu0
  %345 = vmatprep.mubr.bf16.mxu0 0
  %346 = vmatmul.mubr.bf16.gmra.mxu0 %v276
  %v347 = vpop.f32.mrf.mxu0
  %v348 = vadd.f32 %v215, %v347
  %v349 = vpop.f32.mrf.mxu0
  %v350 = vpop.f32.mrf.mxu0
  %v351 = vadd.f32 %v220, %v350
  %v352 = vpop.f32.mrf.mxu0
  %353 = vmatprep.mubr.bf16.mxu0 0
  %354 = vmatmul.mubr.bf16.gmra.mxu0 %v279
  %v355 = vpop.f32.mrf.mxu0
  %v356 = vadd.f32 %v225, %v355
  %v357 = vpop.f32.mrf.mxu0
  %v358 = vpop.f32.mrf.mxu0
  %v359 = vadd.f32 %v230, %v358
  %v360 = vpop.f32.mrf.mxu0
  %361 = vdwg.mxu0
  %362 = vxpose.xlu0.b32.start [1/16] %v316, 128
  %363 = vxpose.xlu0.b32.cont [2/16] 0.0, 128
  %364 = vxpose.xlu0.b32.cont [3/16] 0.0, 128
  %365 = vxpose.xlu0.b32.cont [4/16] 0.0, 128
  %366 = vxpose.xlu0.b32.cont [5/16] 0.0, 128
  %367 = vxpose.xlu0.b32.cont [6/16] 0.0, 128
  %368 = vxpose.xlu0.b32.cont [7/16] 0.0, 128
  %369 = vxpose.xlu0.b32.cont [8/16] 0.0, 128
  %370 = vxpose.xlu0.b32.cont [9/16] 0.0, 128
  %371 = vxpose.xlu0.b32.cont [10/16] 0.0, 128
  %372 = vxpose.xlu0.b32.cont [11/16] 0.0, 128
  %373 = vxpose.xlu0.b32.cont [12/16] 0.0, 128
  %374 = vxpose.xlu0.b32.cont [13/16] 0.0, 128
  %375 = vxpose.xlu0.b32.cont [14/16] 0.0, 128
  %376 = vxpose.xlu0.b32.cont [15/16] 0.0, 128
  %377 = vxpose.xlu0.b32.end [16/16] 0.0, 128
  %v378 = vpop.trf.xlu0
  %v379 = vpop.trf.xlu0
  %v380 = vpop.trf.xlu0
  %v381 = vpop.trf.xlu0
  %v382 = vpop.trf.xlu0
  %v383 = vpop.trf.xlu0
  %v384 = vpop.trf.xlu0
  %v385 = vpop.trf.xlu0
  %v386 = vpop.trf.xlu0
  %v387 = vpop.trf.xlu0
  %v388 = vpop.trf.xlu0
  %v389 = vpop.trf.xlu0
  %v390 = vpop.trf.xlu0
  %v391 = vpop.trf.xlu0
  %v392 = vpop.trf.xlu0
  %v393 = vpop.trf.xlu0
  %vm394 = vcmask 64512
  %v396 = vsel %vm394, %v378, 0
  %v399 = vsel %vm394, %v379, 0
  %401 = vmatprep.subr.mxu0 0.0
  %402 = vmatpush1.msra.mxu0 0.0
  %403 = vmatprep.subr.mxu0 0.0
  %404 = vmatpush1.msra.mxu0 0.0
  %405 = vmatprep.subr.mxu0 0.0
  %406 = vmatpush1.msra.mxu0 0.0
  %407 = vmatprep.subr.mxu0 0.0
  %408 = vmatpush1.msra.mxu0 0.0
  %409 = vmatprep.subr.mxu0 0.0
  %410 = vmatpush1.msra.mxu0 0.0
  %411 = vmatprep.subr.mxu0 0.0
  %412 = vmatpush1.msra.mxu0 0.0
  %413 = vmatprep.subr.mxu0 0.0
  %414 = vmatpush1.msra.mxu0 0.0
  %415 = vmatprep.subr.mxu0 0.0
  %416 = vmatpush1.msra.mxu0 0.0
  %417 = vmatprep.subr.mxu0 0.0
  %418 = vmatpush1.msra.mxu0 0.0
  %419 = vmatprep.subr.mxu0 0.0
  %420 = vmatpush1.msra.mxu0 0.0
  %421 = vmatprep.subr.mxu0 0.0
  %422 = vmatpush1.msra.mxu0 0.0
  %423 = vmatprep.subr.mxu0 0.0
  %424 = vmatpush1.msra.mxu0 0.0
  %425 = vmatprep.subr.mxu0 0.0
  %426 = vmatpush1.msra.mxu0 0.0
  %427 = vmatprep.subr.mxu0 0.0
  %428 = vmatpush1.msra.mxu0 0.0
  %429 = vmatprep.subr.mxu0 0.0
  %430 = vmatpush1.msra.mxu0 0.0
  %431 = vmatprep.subr.mxu0 0.0
  %432 = vmatpush1.msra.mxu0 %v332
  %433 = vmatprep.subr.mxu0 0.0
  %434 = vmatpush2.msra.mxu0 0.0
  %435 = vmatprep.subr.mxu0 0.0
  %436 = vmatpush2.msra.mxu0 0.0
  %437 = vmatprep.subr.mxu0 0.0
  %438 = vmatpush2.msra.mxu0 0.0
  %439 = vmatprep.subr.mxu0 0.0
  %440 = vmatpush2.msra.mxu0 0.0
  %441 = vmatprep.subr.mxu0 0.0
  %442 = vmatpush2.msra.mxu0 0.0
  %443 = vmatprep.subr.mxu0 0.0
  %444 = vmatpush2.msra.mxu0 0.0
  %445 = vmatprep.subr.mxu0 0.0
  %446 = vmatpush2.msra.mxu0 0.0
  %447 = vmatprep.subr.mxu0 0.0
  %448 = vmatpush2.msra.mxu0 0.0
  %449 = vmatprep.subr.mxu0 0.0
  %450 = vmatpush2.msra.mxu0 0.0
  %451 = vmatprep.subr.mxu0 0.0
  %452 = vmatpush2.msra.mxu0 0.0
  %453 = vmatprep.subr.mxu0 0.0
  %454 = vmatpush2.msra.mxu0 0.0
  %455 = vmatprep.subr.mxu0 0.0
  %456 = vmatpush2.msra.mxu0 0.0
  %457 = vmatprep.subr.mxu0 0.0
  %458 = vmatpush2.msra.mxu0 0.0
  %459 = vmatprep.subr.mxu0 0.0
  %460 = vmatpush2.msra.mxu0 0.0
  %461 = vmatprep.subr.mxu0 0.0
  %462 = vmatpush2.msra.mxu0 0.0
  %463 = vmatprep.subr.mxu0 0.0
  %464 = vmatpush2.msra.mxu0 0.0
  %465 = vmatprep.mubr.f32.mxu0 0.0
  %466 = vmatmul.mubr.f32.gmra.mxu0 %v396
  %v467 = vpop.f32.mrf.mxu0
  %v468 = vadd.f32 %v25, %v467
  %v469 = vpop.f32.mrf.mxu0
  %470 = vmatprep.mubr.f32.mxu0 0.0
  %471 = vmatmul.mubr.f32.gmra.mxu0 %v399
  %v472 = vpop.f32.mrf.mxu0
  %v473 = vadd.f32 %v26, %v472
  %v474 = vpop.f32.mrf.mxu0
  %475 = vdwg.mxu0
  %v476 = vsel %vm59, %v468, -inf
  %477 = vmax.xlane.f32.xlu0 %v476
  %v478 = vpop.xlane.xlu0 %477
  %v479 = vsel %vm59, %v473, -inf
  %480 = vmax.xlane.f32.xlu0 %v479
  %v481 = vpop.xlane.xlu0 %480
  %v482 = vsub.f32 %v468, %v478
  %v483 = vsub.f32 %v473, %v481
  %v484 = vmul.f32 %v482, 1.442695
  %v485 = vpow.pop %v484
  %v486 = vmul.f32 %v483, 1.442695
  %v487 = vpow.pop %v486
  %v488 = vsel %vm59, %v485, 0.0
  %489 = vadd.xlane.f32.xlu0 %v488
  %v490 = vpop.xlane.xlu0 %489
  %v491 = vsel %vm59, %v487, 0.0
  %492 = vadd.xlane.f32.xlu0 %v491
  %v493 = vpop.xlane.xlu0 %492
  %v494 = vrcp.pop %v490
  %v495 = vrcp.pop %v493
  %v496 = vmul.f32 %v485, %v494
  %v497 = vmul.f32 %v487, %v495
  %v499 = vsel %vm59, %v348, 0
  %v502 = vsel %vm59, %v496, 0
  %v505 = vsel %vm59, %v497, 0
  %507 = vmatprep.subr.mxu0 0.0
  %508 = vmatpush1.xpose.msra.mxu0 0.0
  %509 = vmatprep.subr.mxu0 0.0
  %510 = vmatpush1.xpose.msra.mxu0 0.0
  %511 = vmatprep.subr.mxu0 0.0
  %512 = vmatpush1.xpose.msra.mxu0 0.0
  %513 = vmatprep.subr.mxu0 0.0
  %514 = vmatpush1.xpose.msra.mxu0 0.0
  %515 = vmatprep.subr.mxu0 0.0
  %516 = vmatpush1.xpose.msra.mxu0 0.0
  %517 = vmatprep.subr.mxu0 0.0
  %518 = vmatpush1.xpose.msra.mxu0 0.0
  %519 = vmatprep.subr.mxu0 0.0
  %520 = vmatpush1.xpose.msra.mxu0 0.0
  %521 = vmatprep.subr.mxu0 0.0
  %522 = vmatpush1.xpose.msra.mxu0 0.0
  %523 = vmatprep.subr.mxu0 0.0
  %524 = vmatpush1.xpose.msra.mxu0 0.0
  %525 = vmatprep.subr.mxu0 0.0
  %526 = vmatpush1.xpose.msra.mxu0 0.0
  %527 = vmatprep.subr.mxu0 0.0
  %528 = vmatpush1.xpose.msra.mxu0 0.0
  %529 = vmatprep.subr.mxu0 0.0
  %530 = vmatpush1.xpose.msra.mxu0 0.0
  %531 = vmatprep.subr.mxu0 0.0
  %532 = vmatpush1.xpose.msra.mxu0 0.0
  %533 = vmatprep.subr.mxu0 0.0
  %534 = vmatpush1.xpose.msra.mxu0 0.0
  %535 = vmatprep.subr.mxu0 0.0
  %536 = vmatpush1.xpose.msra.mxu0 %v505
  %537 = vmatprep.subr.mxu0 0.0
  %538 = vmatpush1.xpose.msra.mxu0 %v502
  %539 = vmatprep.subr.mxu0 0.0
  %540 = vmatpush2.xpose.msra.mxu0 0.0
  %541 = vmatprep.subr.mxu0 0.0
  %542 = vmatpush2.xpose.msra.mxu0 0.0
  %543 = vmatprep.subr.mxu0 0.0
  %544 = vmatpush2.xpose.msra.mxu0 0.0
  %545 = vmatprep.subr.mxu0 0.0
  %546 = vmatpush2.xpose.msra.mxu0 0.0
  %547 = vmatprep.subr.mxu0 0.0
  %548 = vmatpush2.xpose.msra.mxu0 0.0
  %549 = vmatprep.subr.mxu0 0.0
  %550 = vmatpush2.xpose.msra.mxu0 0.0
  %551 = vmatprep.subr.mxu0 0.0
  %552 = vmatpush2.xpose.msra.mxu0 0.0
  %553 = vmatprep.subr.mxu0 0.0
  %554 = vmatpush2.xpose.msra.mxu0 0.0
  %555 = vmatprep.subr.mxu0 0.0
  %556 = vmatpush2.xpose.msra.mxu0 0.0
  %557 = vmatprep.subr.mxu0 0.0
  %558 = vmatpush2.xpose.msra.mxu0 0.0
  %559 = vmatprep.subr.mxu0 0.0
  %560 = vmatpush2.xpose.msra.mxu0 0.0
  %561 = vmatprep.subr.mxu0 0.0
  %562 = vmatpush2.xpose.msra.mxu0 0.0
  %563 = vmatprep.subr.mxu0 0.0
  %564 = vmatpush2.xpose.msra.mxu0 0.0
  %565 = vmatprep.subr.mxu0 0.0
  %566 = vmatpush2.xpose.msra.mxu0 0.0
  %567 = vmatprep.subr.mxu0 0.0
  %568 = vmatpush2.xpose.msra.mxu0 0.0
  %569 = vmatprep.subr.mxu0 0.0
  %570 = vmatpush2.xpose.msra.mxu0 0.0
  %571 = vmatprep.mubr.f32.mxu0 0.0
  %572 = vmatmul.mubr.f32.gmra.mxu0 %v499
  %v573 = vpop.f32.mrf.mxu0
  %v574 = vadd.f32 0.0, %v573
  %v575 = vpop.f32.mrf.mxu0
  %576 = vdwg.mxu0
  %577 = vxpose.xlu0.b32.start [1/16] %v319, 128
  %578 = vxpose.xlu0.b32.cont [2/16] 0.0, 128
  %579 = vxpose.xlu0.b32.cont [3/16] 0.0, 128
  %580 = vxpose.xlu0.b32.cont [4/16] 0.0, 128
  %581 = vxpose.xlu0.b32.cont [5/16] 0.0, 128
  %582 = vxpose.xlu0.b32.cont [6/16] 0.0, 128
  %583 = vxpose.xlu0.b32.cont [7/16] 0.0, 128
  %584 = vxpose.xlu0.b32.cont [8/16] 0.0, 128
  %585 = vxpose.xlu0.b32.cont [9/16] 0.0, 128
  %586 = vxpose.xlu0.b32.cont [10/16] 0.0, 128
  %587 = vxpose.xlu0.b32.cont [11/16] 0.0, 128
  %588 = vxpose.xlu0.b32.cont [12/16] 0.0, 128
  %589 = vxpose.xlu0.b32.cont [13/16] 0.0, 128
  %590 = vxpose.xlu0.b32.cont [14/16] 0.0, 128
  %591 = vxpose.xlu0.b32.cont [15/16] 0.0, 128
  %592 = vxpose.xlu0.b32.end [16/16] 0.0, 128
  %v593 = vpop.trf.xlu0
  %v594 = vpop.trf.xlu0
  %v595 = vpop.trf.xlu0
  %v596 = vpop.trf.xlu0
  %v597 = vpop.trf.xlu0
  %v598 = vpop.trf.xlu0
  %v599 = vpop.trf.xlu0
  %v600 = vpop.trf.xlu0
  %v601 = vpop.trf.xlu0
  %v602 = vpop.trf.xlu0
  %v603 = vpop.trf.xlu0
  %v604 = vpop.trf.xlu0
  %v605 = vpop.trf.xlu0
  %v606 = vpop.trf.xlu0
  %v607 = vpop.trf.xlu0
  %v608 = vpop.trf.xlu0
  %v610 = vsel %vm394, %v593, 0
  %v613 = vsel %vm394, %v594, 0
  %615 = vmatprep.subr.mxu0 0.0
  %616 = vmatpush1.msra.mxu0 0.0
  %617 = vmatprep.subr.mxu0 0.0
  %618 = vmatpush1.msra.mxu0 0.0
  %619 = vmatprep.subr.mxu0 0.0
  %620 = vmatpush1.msra.mxu0 0.0
  %621 = vmatprep.subr.mxu0 0.0
  %622 = vmatpush1.msra.mxu0 0.0
  %623 = vmatprep.subr.mxu0 0.0
  %624 = vmatpush1.msra.mxu0 0.0
  %625 = vmatprep.subr.mxu0 0.0
  %626 = vmatpush1.msra.mxu0 0.0
  %627 = vmatprep.subr.mxu0 0.0
  %628 = vmatpush1.msra.mxu0 0.0
  %629 = vmatprep.subr.mxu0 0.0
  %630 = vmatpush1.msra.mxu0 0.0
  %631 = vmatprep.subr.mxu0 0.0
  %632 = vmatpush1.msra.mxu0 0.0
  %633 = vmatprep.subr.mxu0 0.0
  %634 = vmatpush1.msra.mxu0 0.0
  %635 = vmatprep.subr.mxu0 0.0
  %636 = vmatpush1.msra.mxu0 0.0
  %637 = vmatprep.subr.mxu0 0.0
  %638 = vmatpush1.msra.mxu0 0.0
  %639 = vmatprep.subr.mxu0 0.0
  %640 = vmatpush1.msra.mxu0 0.0
  %641 = vmatprep.subr.mxu0 0.0
  %642 = vmatpush1.msra.mxu0 0.0
  %643 = vmatprep.subr.mxu0 0.0
  %644 = vmatpush1.msra.mxu0 0.0
  %645 = vmatprep.subr.mxu0 0.0
  %646 = vmatpush1.msra.mxu0 %v335
  %647 = vmatprep.subr.mxu0 0.0
  %648 = vmatpush2.msra.mxu0 0.0
  %649 = vmatprep.subr.mxu0 0.0
  %650 = vmatpush2.msra.mxu0 0.0
  %651 = vmatprep.subr.mxu0 0.0
  %652 = vmatpush2.msra.mxu0 0.0
  %653 = vmatprep.subr.mxu0 0.0
  %654 = vmatpush2.msra.mxu0 0.0
  %655 = vmatprep.subr.mxu0 0.0
  %656 = vmatpush2.msra.mxu0 0.0
  %657 = vmatprep.subr.mxu0 0.0
  %658 = vmatpush2.msra.mxu0 0.0
  %659 = vmatprep.subr.mxu0 0.0
  %660 = vmatpush2.msra.mxu0 0.0
  %661 = vmatprep.subr.mxu0 0.0
  %662 = vmatpush2.msra.mxu0 0.0
  %663 = vmatprep.subr.mxu0 0.0
  %664 = vmatpush2.msra.mxu0 0.0
  %665 = vmatprep.subr.mxu0 0.0
  %666 = vmatpush2.msra.mxu0 0.0
  %667 = vmatprep.subr.mxu0 0.0
  %668 = vmatpush2.msra.mxu0 0.0
  %669 = vmatprep.subr.mxu0 0.0
  %670 = vmatpush2.msra.mxu0 0.0
  %671 = vmatprep.subr.mxu0 0.0
  %672 = vmatpush2.msra.mxu0 0.0
  %673 = vmatprep.subr.mxu0 0.0
  %674 = vmatpush2.msra.mxu0 0.0
  %675 = vmatprep.subr.mxu0 0.0
  %676 = vmatpush2.msra.mxu0 0.0
  %677 = vmatprep.subr.mxu0 0.0
  %678 = vmatpush2.msra.mxu0 0.0
  %679 = vmatprep.mubr.f32.mxu0 0.0
  %680 = vmatmul.mubr.f32.gmra.mxu0 %v610
  %v681 = vpop.f32.mrf.mxu0
  %v682 = vadd.f32 %v25, %v681
  %v683 = vpop.f32.mrf.mxu0
  %684 = vmatprep.mubr.f32.mxu0 0.0
  %685 = vmatmul.mubr.f32.gmra.mxu0 %v613
  %v686 = vpop.f32.mrf.mxu0
  %v687 = vadd.f32 %v26, %v686
  %v688 = vpop.f32.mrf.mxu0
  %689 = vdwg.mxu0
  %v690 = vsel %vm59, %v682, -inf
  %691 = vmax.xlane.f32.xlu0 %v690
  %v692 = vpop.xlane.xlu0 %691
  %v693 = vsel %vm59, %v687, -inf
  %694 = vmax.xlane.f32.xlu0 %v693
  %v695 = vpop.xlane.xlu0 %694
  %v696 = vsub.f32 %v682, %v692
  %v697 = vsub.f32 %v687, %v695
  %v698 = vmul.f32 %v696, 1.442695
  %v699 = vpow.pop %v698
  %v700 = vmul.f32 %v697, 1.442695
  %v701 = vpow.pop %v700
  %v702 = vsel %vm59, %v699, 0.0
  %703 = vadd.xlane.f32.xlu0 %v702
  %v704 = vpop.xlane.xlu0 %703
  %v705 = vsel %vm59, %v701, 0.0
  %706 = vadd.xlane.f32.xlu0 %v705
  %v707 = vpop.xlane.xlu0 %706
  %v708 = vrcp.pop %v704
  %v709 = vrcp.pop %v707
  %v710 = vmul.f32 %v699, %v708
  %v711 = vmul.f32 %v701, %v709
  %v713 = vsel %vm59, %v351, 0
  %v716 = vsel %vm59, %v710, 0
  %v719 = vsel %vm59, %v711, 0
  %721 = vmatprep.subr.mxu0 0.0
  %722 = vmatpush1.xpose.msra.mxu0 0.0
  %723 = vmatprep.subr.mxu0 0.0
  %724 = vmatpush1.xpose.msra.mxu0 0.0
  %725 = vmatprep.subr.mxu0 0.0
  %726 = vmatpush1.xpose.msra.mxu0 0.0
  %727 = vmatprep.subr.mxu0 0.0
  %728 = vmatpush1.xpose.msra.mxu0 0.0
  %729 = vmatprep.subr.mxu0 0.0
  %730 = vmatpush1.xpose.msra.mxu0 0.0
  %731 = vmatprep.subr.mxu0 0.0
  %732 = vmatpush1.xpose.msra.mxu0 0.0
  %733 = vmatprep.subr.mxu0 0.0
  %734 = vmatpush1.xpose.msra.mxu0 0.0
  %735 = vmatprep.subr.mxu0 0.0
  %736 = vmatpush1.xpose.msra.mxu0 0.0
  %737 = vmatprep.subr.mxu0 0.0
  %738 = vmatpush1.xpose.msra.mxu0 0.0
  %739 = vmatprep.subr.mxu0 0.0
  %740 = vmatpush1.xpose.msra.mxu0 0.0
  %741 = vmatprep.subr.mxu0 0.0
  %742 = vmatpush1.xpose.msra.mxu0 0.0
  %743 = vmatprep.subr.mxu0 0.0
  %744 = vmatpush1.xpose.msra.mxu0 0.0
  %745 = vmatprep.subr.mxu0 0.0
  %746 = vmatpush1.xpose.msra.mxu0 0.0
  %747 = vmatprep.subr.mxu0 0.0
  %748 = vmatpush1.xpose.msra.mxu0 0.0
  %749 = vmatprep.subr.mxu0 0.0
  %750 = vmatpush1.xpose.msra.mxu0 %v719
  %751 = vmatprep.subr.mxu0 0.0
  %752 = vmatpush1.xpose.msra.mxu0 %v716
  %753 = vmatprep.subr.mxu0 0.0
  %754 = vmatpush2.xpose.msra.mxu0 0.0
  %755 = vmatprep.subr.mxu0 0.0
  %756 = vmatpush2.xpose.msra.mxu0 0.0
  %757 = vmatprep.subr.mxu0 0.0
  %758 = vmatpush2.xpose.msra.mxu0 0.0
  %759 = vmatprep.subr.mxu0 0.0
  %760 = vmatpush2.xpose.msra.mxu0 0.0
  %761 = vmatprep.subr.mxu0 0.0
  %762 = vmatpush2.xpose.msra.mxu0 0.0
  %763 = vmatprep.subr.mxu0 0.0
  %764 = vmatpush2.xpose.msra.mxu0 0.0
  %765 = vmatprep.subr.mxu0 0.0
  %766 = vmatpush2.xpose.msra.mxu0 0.0
  %767 = vmatprep.subr.mxu0 0.0
  %768 = vmatpush2.xpose.msra.mxu0 0.0
  %769 = vmatprep.subr.mxu0 0.0
  %770 = vmatpush2.xpose.msra.mxu0 0.0
  %771 = vmatprep.subr.mxu0 0.0
  %772 = vmatpush2.xpose.msra.mxu0 0.0
  %773 = vmatprep.subr.mxu0 0.0
  %774 = vmatpush2.xpose.msra.mxu0 0.0
  %775 = vmatprep.subr.mxu0 0.0
  %776 = vmatpush2.xpose.msra.mxu0 0.0
  %777 = vmatprep.subr.mxu0 0.0
  %778 = vmatpush2.xpose.msra.mxu0 0.0
  %779 = vmatprep.subr.mxu0 0.0
  %780 = vmatpush2.xpose.msra.mxu0 0.0
  %781 = vmatprep.subr.mxu0 0.0
  %782 = vmatpush2.xpose.msra.mxu0 0.0
  %783 = vmatprep.subr.mxu0 0.0
  %784 = vmatpush2.xpose.msra.mxu0 0.0
  %785 = vmatprep.mubr.f32.mxu0 0.0
  %786 = vmatmul.mubr.f32.gmra.mxu0 %v713
  %v787 = vpop.f32.mrf.mxu0
  %v788 = vadd.f32 0.0, %v787
  %v789 = vpop.f32.mrf.mxu0
  %790 = vdwg.mxu0
  %791 = vxpose.xlu0.b32.start [1/16] %v324, 128
  %792 = vxpose.xlu0.b32.cont [2/16] 0.0, 128
  %793 = vxpose.xlu0.b32.cont [3/16] 0.0, 128
  %794 = vxpose.xlu0.b32.cont [4/16] 0.0, 128
  %795 = vxpose.xlu0.b32.cont [5/16] 0.0, 128
  %796 = vxpose.xlu0.b32.cont [6/16] 0.0, 128
  %797 = vxpose.xlu0.b32.cont [7/16] 0.0, 128
  %798 = vxpose.xlu0.b32.cont [8/16] 0.0, 128
  %799 = vxpose.xlu0.b32.cont [9/16] 0.0, 128
  %800 = vxpose.xlu0.b32.cont [10/16] 0.0, 128
  %801 = vxpose.xlu0.b32.cont [11/16] 0.0, 128
  %802 = vxpose.xlu0.b32.cont [12/16] 0.0, 128
  %803 = vxpose.xlu0.b32.cont [13/16] 0.0, 128
  %804 = vxpose.xlu0.b32.cont [14/16] 0.0, 128
  %805 = vxpose.xlu0.b32.cont [15/16] 0.0, 128
  %806 = vxpose.xlu0.b32.end [16/16] 0.0, 128
  %v807 = vpop.trf.xlu0
  %v808 = vpop.trf.xlu0
  %v809 = vpop.trf.xlu0
  %v810 = vpop.trf.xlu0
  %v811 = vpop.trf.xlu0
  %v812 = vpop.trf.xlu0
  %v813 = vpop.trf.xlu0
  %v814 = vpop.trf.xlu0
  %v815 = vpop.trf.xlu0
  %v816 = vpop.trf.xlu0
  %v817 = vpop.trf.xlu0
  %v818 = vpop.trf.xlu0
  %v819 = vpop.trf.xlu0
  %v820 = vpop.trf.xlu0
  %v821 = vpop.trf.xlu0
  %v822 = vpop.trf.xlu0
  %v824 = vsel %vm394, %v807, 0
  %v827 = vsel %vm394, %v808, 0
  %829 = vmatprep.subr.mxu0 0.0
  %830 = vmatpush1.msra.mxu0 0.0
  %831 = vmatprep.subr.mxu0 0.0
  %832 = vmatpush1.msra.mxu0 0.0
  %833 = vmatprep.subr.mxu0 0.0
  %834 = vmatpush1.msra.mxu0 0.0
  %835 = vmatprep.subr.mxu0 0.0
  %836 = vmatpush1.msra.mxu0 0.0
  %837 = vmatprep.subr.mxu0 0.0
  %838 = vmatpush1.msra.mxu0 0.0
  %839 = vmatprep.subr.mxu0 0.0
  %840 = vmatpush1.msra.mxu0 0.0
  %841 = vmatprep.subr.mxu0 0.0
  %842 = vmatpush1.msra.mxu0 0.0
  %843 = vmatprep.subr.mxu0 0.0
  %844 = vmatpush1.msra.mxu0 0.0
  %845 = vmatprep.subr.mxu0 0.0
  %846 = vmatpush1.msra.mxu0 0.0
  %847 = vmatprep.subr.mxu0 0.0
  %848 = vmatpush1.msra.mxu0 0.0
  %849 = vmatprep.subr.mxu0 0.0
  %850 = vmatpush1.msra.mxu0 0.0
  %851 = vmatprep.subr.mxu0 0.0
  %852 = vmatpush1.msra.mxu0 0.0
  %853 = vmatprep.subr.mxu0 0.0
  %854 = vmatpush1.msra.mxu0 0.0
  %855 = vmatprep.subr.mxu0 0.0
  %856 = vmatpush1.msra.mxu0 0.0
  %857 = vmatprep.subr.mxu0 0.0
  %858 = vmatpush1.msra.mxu0 0.0
  %859 = vmatprep.subr.mxu0 0.0
  %860 = vmatpush1.msra.mxu0 %v340
  %861 = vmatprep.subr.mxu0 0.0
  %862 = vmatpush2.msra.mxu0 0.0
  %863 = vmatprep.subr.mxu0 0.0
  %864 = vmatpush2.msra.mxu0 0.0
  %865 = vmatprep.subr.mxu0 0.0
  %866 = vmatpush2.msra.mxu0 0.0
  %867 = vmatprep.subr.mxu0 0.0
  %868 = vmatpush2.msra.mxu0 0.0
  %869 = vmatprep.subr.mxu0 0.0
  %870 = vmatpush2.msra.mxu0 0.0
  %871 = vmatprep.subr.mxu0 0.0
  %872 = vmatpush2.msra.mxu0 0.0
  %873 = vmatprep.subr.mxu0 0.0
  %874 = vmatpush2.msra.mxu0 0.0
  %875 = vmatprep.subr.mxu0 0.0
  %876 = vmatpush2.msra.mxu0 0.0
  %877 = vmatprep.subr.mxu0 0.0
  %878 = vmatpush2.msra.mxu0 0.0
  %879 = vmatprep.subr.mxu0 0.0
  %880 = vmatpush2.msra.mxu0 0.0
  %881 = vmatprep.subr.mxu0 0.0
  %882 = vmatpush2.msra.mxu0 0.0
  %883 = vmatprep.subr.mxu0 0.0
  %884 = vmatpush2.msra.mxu0 0.0
  %885 = vmatprep.subr.mxu0 0.0
  %886 = vmatpush2.msra.mxu0 0.0
  %887 = vmatprep.subr.mxu0 0.0
  %888 = vmatpush2.msra.mxu0 0.0
  %889 = vmatprep.subr.mxu0 0.0
  %890 = vmatpush2.msra.mxu0 0.0
  %891 = vmatprep.subr.mxu0 0.0
  %892 = vmatpush2.msra.mxu0 0.0
  %893 = vmatprep.mubr.f32.mxu0 0.0
  %894 = vmatmul.mubr.f32.gmra.mxu0 %v824
  %v895 = vpop.f32.mrf.mxu0
  %v896 = vadd.f32 %v25, %v895
  %v897 = vpop.f32.mrf.mxu0
  %898 = vmatprep.mubr.f32.mxu0 0.0
  %899 = vmatmul.mubr.f32.gmra.mxu0 %v827
  %v900 = vpop.f32.mrf.mxu0
  %v901 = vadd.f32 %v26, %v900
  %v902 = vpop.f32.mrf.mxu0
  %903 = vdwg.mxu0
  %v904 = vsel %vm59, %v896, -inf
  %905 = vmax.xlane.f32.xlu0 %v904
  %v906 = vpop.xlane.xlu0 %905
  %v907 = vsel %vm59, %v901, -inf
  %908 = vmax.xlane.f32.xlu0 %v907
  %v909 = vpop.xlane.xlu0 %908
  %v910 = vsub.f32 %v896, %v906
  %v911 = vsub.f32 %v901, %v909
  %v912 = vmul.f32 %v910, 1.442695
  %v913 = vpow.pop %v912
  %v914 = vmul.f32 %v911, 1.442695
  %v915 = vpow.pop %v914
  %v916 = vsel %vm59, %v913, 0.0
  %917 = vadd.xlane.f32.xlu0 %v916
  %v918 = vpop.xlane.xlu0 %917
  %v919 = vsel %vm59, %v915, 0.0
  %920 = vadd.xlane.f32.xlu0 %v919
  %v921 = vpop.xlane.xlu0 %920
  %v922 = vrcp.pop %v918
  %v923 = vrcp.pop %v921
  %v924 = vmul.f32 %v913, %v922
  %v925 = vmul.f32 %v915, %v923
  %v927 = vsel %vm59, %v356, 0
  %v930 = vsel %vm59, %v924, 0
  %v933 = vsel %vm59, %v925, 0
  %935 = vmatprep.subr.mxu0 0.0
  %936 = vmatpush1.xpose.msra.mxu0 0.0
  %937 = vmatprep.subr.mxu0 0.0
  %938 = vmatpush1.xpose.msra.mxu0 0.0
  %939 = vmatprep.subr.mxu0 0.0
  %940 = vmatpush1.xpose.msra.mxu0 0.0
  %941 = vmatprep.subr.mxu0 0.0
  %942 = vmatpush1.xpose.msra.mxu0 0.0
  %943 = vmatprep.subr.mxu0 0.0
  %944 = vmatpush1.xpose.msra.mxu0 0.0
  %945 = vmatprep.subr.mxu0 0.0
  %946 = vmatpush1.xpose.msra.mxu0 0.0
  %947 = vmatprep.subr.mxu0 0.0
  %948 = vmatpush1.xpose.msra.mxu0 0.0
  %949 = vmatprep.subr.mxu0 0.0
  %950 = vmatpush1.xpose.msra.mxu0 0.0
  %951 = vmatprep.subr.mxu0 0.0
  %952 = vmatpush1.xpose.msra.mxu0 0.0
  %953 = vmatprep.subr.mxu0 0.0
  %954 = vmatpush1.xpose.msra.mxu0 0.0
  %955 = vmatprep.subr.mxu0 0.0
  %956 = vmatpush1.xpose.msra.mxu0 0.0
  %957 = vmatprep.subr.mxu0 0.0
  %958 = vmatpush1.xpose.msra.mxu0 0.0
  %959 = vmatprep.subr.mxu0 0.0
  %960 = vmatpush1.xpose.msra.mxu0 0.0
  %961 = vmatprep.subr.mxu0 0.0
  %962 = vmatpush1.xpose.msra.mxu0 0.0
  %963 = vmatprep.subr.mxu0 0.0
  %964 = vmatpush1.xpose.msra.mxu0 %v933
  %965 = vmatprep.subr.mxu0 0.0
  %966 = vmatpush1.xpose.msra.mxu0 %v930
  %967 = vmatprep.subr.mxu0 0.0
  %968 = vmatpush2.xpose.msra.mxu0 0.0
  %969 = vmatprep.subr.mxu0 0.0
  %970 = vmatpush2.xpose.msra.mxu0 0.0
  %971 = vmatprep.subr.mxu0 0.0
  %972 = vmatpush2.xpose.msra.mxu0 0.0
  %973 = vmatprep.subr.mxu0 0.0
  %974 = vmatpush2.xpose.msra.mxu0 0.0
  %975 = vmatprep.subr.mxu0 0.0
  %976 = vmatpush2.xpose.msra.mxu0 0.0
  %977 = vmatprep.subr.mxu0 0.0
  %978 = vmatpush2.xpose.msra.mxu0 0.0
  %979 = vmatprep.subr.mxu0 0.0
  %980 = vmatpush2.xpose.msra.mxu0 0.0
  %981 = vmatprep.subr.mxu0 0.0
  %982 = vmatpush2.xpose.msra.mxu0 0.0
  %983 = vmatprep.subr.mxu0 0.0
  %984 = vmatpush2.xpose.msra.mxu0 0.0
  %985 = vmatprep.subr.mxu0 0.0
  %986 = vmatpush2.xpose.msra.mxu0 0.0
  %987 = vmatprep.subr.mxu0 0.0
  %988 = vmatpush2.xpose.msra.mxu0 0.0
  %989 = vmatprep.subr.mxu0 0.0
  %990 = vmatpush2.xpose.msra.mxu0 0.0
  %991 = vmatprep.subr.mxu0 0.0
  %992 = vmatpush2.xpose.msra.mxu0 0.0
  %993 = vmatprep.subr.mxu0 0.0
  %994 = vmatpush2.xpose.msra.mxu0 0.0
  %995 = vmatprep.subr.mxu0 0.0
  %996 = vmatpush2.xpose.msra.mxu0 0.0
  %997 = vmatprep.subr.mxu0 0.0
  %998 = vmatpush2.xpose.msra.mxu0 0.0
  %999 = vmatprep.mubr.f32.mxu0 0.0
  %1000 = vmatmul.mubr.f32.gmra.mxu0 %v927
  %v1001 = vpop.f32.mrf.mxu0
  %v1002 = vadd.f32 0.0, %v1001
  %v1003 = vpop.f32.mrf.mxu0
  %1004 = vdwg.mxu0
  %1005 = vxpose.xlu0.b32.start [1/16] %v327, 128
  %1006 = vxpose.xlu0.b32.cont [2/16] 0.0, 128
  %1007 = vxpose.xlu0.b32.cont [3/16] 0.0, 128
  %1008 = vxpose.xlu0.b32.cont [4/16] 0.0, 128
  %1009 = vxpose.xlu0.b32.cont [5/16] 0.0, 128
  %1010 = vxpose.xlu0.b32.cont [6/16] 0.0, 128
  %1011 = vxpose.xlu0.b32.cont [7/16] 0.0, 128
  %1012 = vxpose.xlu0.b32.cont [8/16] 0.0, 128
  %1013 = vxpose.xlu0.b32.cont [9/16] 0.0, 128
  %1014 = vxpose.xlu0.b32.cont [10/16] 0.0, 128
  %1015 = vxpose.xlu0.b32.cont [11/16] 0.0, 128
  %1016 = vxpose.xlu0.b32.cont [12/16] 0.0, 128
  %1017 = vxpose.xlu0.b32.cont [13/16] 0.0, 128
  %1018 = vxpose.xlu0.b32.cont [14/16] 0.0, 128
  %1019 = vxpose.xlu0.b32.cont [15/16] 0.0, 128
  %1020 = vxpose.xlu0.b32.end [16/16] 0.0, 128
  %v1021 = vpop.trf.xlu0
  %v1022 = vpop.trf.xlu0
  %v1023 = vpop.trf.xlu0
  %v1024 = vpop.trf.xlu0
  %v1025 = vpop.trf.xlu0
  %v1026 = vpop.trf.xlu0
  %v1027 = vpop.trf.xlu0
  %v1028 = vpop.trf.xlu0
  %v1029 = vpop.trf.xlu0
  %v1030 = vpop.trf.xlu0
  %v1031 = vpop.trf.xlu0
  %v1032 = vpop.trf.xlu0
  %v1033 = vpop.trf.xlu0
  %v1034 = vpop.trf.xlu0
  %v1035 = vpop.trf.xlu0
  %v1036 = vpop.trf.xlu0
  %v1038 = vsel %vm394, %v1021, 0
  %v1041 = vsel %vm394, %v1022, 0
  %1043 = vmatprep.subr.mxu0 0.0
  %1044 = vmatpush1.msra.mxu0 0.0
  %1045 = vmatprep.subr.mxu0 0.0
  %1046 = vmatpush1.msra.mxu0 0.0
  %1047 = vmatprep.subr.mxu0 0.0
  %1048 = vmatpush1.msra.mxu0 0.0
  %1049 = vmatprep.subr.mxu0 0.0
  %1050 = vmatpush1.msra.mxu0 0.0
  %1051 = vmatprep.subr.mxu0 0.0
  %1052 = vmatpush1.msra.mxu0 0.0
  %1053 = vmatprep.subr.mxu0 0.0
  %1054 = vmatpush1.msra.mxu0 0.0
  %1055 = vmatprep.subr.mxu0 0.0
  %1056 = vmatpush1.msra.mxu0 0.0
  %1057 = vmatprep.subr.mxu0 0.0
  %1058 = vmatpush1.msra.mxu0 0.0
  %1059 = vmatprep.subr.mxu0 0.0
  %1060 = vmatpush1.msra.mxu0 0.0
  %1061 = vmatprep.subr.mxu0 0.0
  %1062 = vmatpush1.msra.mxu0 0.0
  %1063 = vmatprep.subr.mxu0 0.0
  %1064 = vmatpush1.msra.mxu0 0.0
  %1065 = vmatprep.subr.mxu0 0.0
  %1066 = vmatpush1.msra.mxu0 0.0
  %1067 = vmatprep.subr.mxu0 0.0
  %1068 = vmatpush1.msra.mxu0 0.0
  %1069 = vmatprep.subr.mxu0 0.0
  %1070 = vmatpush1.msra.mxu0 0.0
  %1071 = vmatprep.subr.mxu0 0.0
  %1072 = vmatpush1.msra.mxu0 0.0
  %1073 = vmatprep.subr.mxu0 0.0
  %1074 = vmatpush1.msra.mxu0 %v343
  %1075 = vmatprep.subr.mxu0 0.0
  %1076 = vmatpush2.msra.mxu0 0.0
  %1077 = vmatprep.subr.mxu0 0.0
  %1078 = vmatpush2.msra.mxu0 0.0
  %1079 = vmatprep.subr.mxu0 0.0
  %1080 = vmatpush2.msra.mxu0 0.0
  %1081 = vmatprep.subr.mxu0 0.0
  %1082 = vmatpush2.msra.mxu0 0.0
  %1083 = vmatprep.subr.mxu0 0.0
  %1084 = vmatpush2.msra.mxu0 0.0
  %1085 = vmatprep.subr.mxu0 0.0
  %1086 = vmatpush2.msra.mxu0 0.0
  %1087 = vmatprep.subr.mxu0 0.0
  %1088 = vmatpush2.msra.mxu0 0.0
  %1089 = vmatprep.subr.mxu0 0.0
  %1090 = vmatpush2.msra.mxu0 0.0
  %1091 = vmatprep.subr.mxu0 0.0
  %1092 = vmatpush2.msra.mxu0 0.0
  %1093 = vmatprep.subr.mxu0 0.0
  %1094 = vmatpush2.msra.mxu0 0.0
  %1095 = vmatprep.subr.mxu0 0.0
  %1096 = vmatpush2.msra.mxu0 0.0
  %1097 = vmatprep.subr.mxu0 0.0
  %1098 = vmatpush2.msra.mxu0 0.0
  %1099 = vmatprep.subr.mxu0 0.0
  %1100 = vmatpush2.msra.mxu0 0.0
  %1101 = vmatprep.subr.mxu0 0.0
  %1102 = vmatpush2.msra.mxu0 0.0
  %1103 = vmatprep.subr.mxu0 0.0
  %1104 = vmatpush2.msra.mxu0 0.0
  %1105 = vmatprep.subr.mxu0 0.0
  %1106 = vmatpush2.msra.mxu0 0.0
  %1107 = vmatprep.mubr.f32.mxu0 0.0
  %1108 = vmatmul.mubr.f32.gmra.mxu0 %v1038
  %v1109 = vpop.f32.mrf.mxu0
  %v1110 = vadd.f32 %v25, %v1109
  %v1111 = vpop.f32.mrf.mxu0
  %1112 = vmatprep.mubr.f32.mxu0 0.0
  %1113 = vmatmul.mubr.f32.gmra.mxu0 %v1041
  %v1114 = vpop.f32.mrf.mxu0
  %v1115 = vadd.f32 %v26, %v1114
  %v1116 = vpop.f32.mrf.mxu0
  %1117 = vdwg.mxu0
  %v1118 = vsel %vm59, %v1110, -inf
  %1119 = vmax.xlane.f32.xlu0 %v1118
  %v1120 = vpop.xlane.xlu0 %1119
  %v1121 = vsel %vm59, %v1115, -inf
  %1122 = vmax.xlane.f32.xlu0 %v1121
  %v1123 = vpop.xlane.xlu0 %1122
  %v1124 = vsub.f32 %v1110, %v1120
  %v1125 = vsub.f32 %v1115, %v1123
  %v1126 = vmul.f32 %v1124, 1.442695
  %v1127 = vpow.pop %v1126
  %v1128 = vmul.f32 %v1125, 1.442695
  %v1129 = vpow.pop %v1128
  %v1130 = vsel %vm59, %v1127, 0.0
  %1131 = vadd.xlane.f32.xlu0 %v1130
  %v1132 = vpop.xlane.xlu0 %1131
  %v1133 = vsel %vm59, %v1129, 0.0
  %1134 = vadd.xlane.f32.xlu0 %v1133
  %v1135 = vpop.xlane.xlu0 %1134
  %v1136 = vrcp.pop %v1132
  %v1137 = vrcp.pop %v1135
  %v1138 = vmul.f32 %v1127, %v1136
  %v1139 = vmul.f32 %v1129, %v1137
  %v1141 = vsel %vm59, %v359, 0
  %v1144 = vsel %vm59, %v1138, 0
  %v1147 = vsel %vm59, %v1139, 0
  %1149 = vmatprep.subr.mxu0 0.0
  %1150 = vmatpush1.xpose.msra.mxu0 0.0
  %1151 = vmatprep.subr.mxu0 0.0
  %1152 = vmatpush1.xpose.msra.mxu0 0.0
  %1153 = vmatprep.subr.mxu0 0.0
  %1154 = vmatpush1.xpose.msra.mxu0 0.0
  %1155 = vmatprep.subr.mxu0 0.0
  %1156 = vmatpush1.xpose.msra.mxu0 0.0
  %1157 = vmatprep.subr.mxu0 0.0
  %1158 = vmatpush1.xpose.msra.mxu0 0.0
  %1159 = vmatprep.subr.mxu0 0.0
  %1160 = vmatpush1.xpose.msra.mxu0 0.0
  %1161 = vmatprep.subr.mxu0 0.0
  %1162 = vmatpush1.xpose.msra.mxu0 0.0
  %1163 = vmatprep.subr.mxu0 0.0
  %1164 = vmatpush1.xpose.msra.mxu0 0.0
  %1165 = vmatprep.subr.mxu0 0.0
  %1166 = vmatpush1.xpose.msra.mxu0 0.0
  %1167 = vmatprep.subr.mxu0 0.0
  %1168 = vmatpush1.xpose.msra.mxu0 0.0
  %1169 = vmatprep.subr.mxu0 0.0
  %1170 = vmatpush1.xpose.msra.mxu0 0.0
  %1171 = vmatprep.subr.mxu0 0.0
  %1172 = vmatpush1.xpose.msra.mxu0 0.0
  %1173 = vmatprep.subr.mxu0 0.0
  %1174 = vmatpush1.xpose.msra.mxu0 0.0
  %1175 = vmatprep.subr.mxu0 0.0
  %1176 = vmatpush1.xpose.msra.mxu0 0.0
  %1177 = vmatprep.subr.mxu0 0.0
  %1178 = vmatpush1.xpose.msra.mxu0 %v1147
  %1179 = vmatprep.subr.mxu0 0.0
  %1180 = vmatpush1.xpose.msra.mxu0 %v1144
  %1181 = vmatprep.subr.mxu0 0.0
  %1182 = vmatpush2.xpose.msra.mxu0 0.0
  %1183 = vmatprep.subr.mxu0 0.0
  %1184 = vmatpush2.xpose.msra.mxu0 0.0
  %1185 = vmatprep.subr.mxu0 0.0
  %1186 = vmatpush2.xpose.msra.mxu0 0.0
  %1187 = vmatprep.subr.mxu0 0.0
  %1188 = vmatpush2.xpose.msra.mxu0 0.0
  %1189 = vmatprep.subr.mxu0 0.0
  %1190 = vmatpush2.xpose.msra.mxu0 0.0
  %1191 = vmatprep.subr.mxu0 0.0
  %1192 = vmatpush2.xpose.msra.mxu0 0.0
  %1193 = vmatprep.subr.mxu0 0.0
  %1194 = vmatpush2.xpose.msra.mxu0 0.0
  %1195 = vmatprep.subr.mxu0 0.0
  %1196 = vmatpush2.xpose.msra.mxu0 0.0
  %1197 = vmatprep.subr.mxu0 0.0
  %1198 = vmatpush2.xpose.msra.mxu0 0.0
  %1199 = vmatprep.subr.mxu0 0.0
  %1200 = vmatpush2.xpose.msra.mxu0 0.0
  %1201 = vmatprep.subr.mxu0 0.0
  %1202 = vmatpush2.xpose.msra.mxu0 0.0
  %1203 = vmatprep.subr.mxu0 0.0
  %1204 = vmatpush2.xpose.msra.mxu0 0.0
  %1205 = vmatprep.subr.mxu0 0.0
  %1206 = vmatpush2.xpose.msra.mxu0 0.0
  %1207 = vmatprep.subr.mxu0 0.0
  %1208 = vmatpush2.xpose.msra.mxu0 0.0
  %1209 = vmatprep.subr.mxu0 0.0
  %1210 = vmatpush2.xpose.msra.mxu0 0.0
  %1211 = vmatprep.subr.mxu0 0.0
  %1212 = vmatpush2.xpose.msra.mxu0 0.0
  %1213 = vmatprep.mubr.f32.mxu0 0.0
  %1214 = vmatmul.mubr.f32.gmra.mxu0 %v1141
  %v1215 = vpop.f32.mrf.mxu0
  %v1216 = vadd.f32 0.0, %v1215
  %v1217 = vpop.f32.mrf.mxu0
  %1218 = vdwg.mxu0
  %v1219 = vpack.c.bf16 %v788, %v574
  %v1220 = vpack.c.bf16 %v1216, %v1002
  %v1225 = vunpack.c.l.b16 %v39
  %v1226 = vunpack.c.l.b16 %v40
  %v1227 = vunpack.c.l.b16 %v41
  %v1228 = vunpack.c.l.b16 %v42
  %v1229 = vpack.c.b16 %v1226, %v1225
  %v1230 = vpack.c.b16 %v1228, %v1227
  %v1232 = vsel %vm262, %v1229, 0
  %v1235 = vsel %vm262, %v1230, 0
  %1237 = vmatprep.subr.bf16.mxu0 0
  %1238 = vmatpush1.bf16.msra.mxu0 0
  %1239 = vmatprep.subr.bf16.mxu0 0
  %1240 = vmatpush1.bf16.msra.mxu0 0
  %1241 = vmatprep.subr.bf16.mxu0 0
  %1242 = vmatpush1.bf16.msra.mxu0 0
  %1243 = vmatprep.subr.bf16.mxu0 0
  %1244 = vmatpush1.bf16.msra.mxu0 0
  %1245 = vmatprep.subr.bf16.mxu0 0
  %1246 = vmatpush1.bf16.msra.mxu0 0
  %1247 = vmatprep.subr.bf16.mxu0 0
  %1248 = vmatpush1.bf16.msra.mxu0 0
  %1249 = vmatprep.subr.bf16.mxu0 0
  %1250 = vmatpush1.bf16.msra.mxu0 %v1220
  %1251 = vmatprep.subr.bf16.mxu0 0
  %1252 = vmatpush1.bf16.msra.mxu0 %v1219
  %1253 = vmatprep.subr.bf16.mxu0 0
  %1254 = vmatpush2.bf16.msra.mxu0 0
  %1255 = vmatprep.subr.bf16.mxu0 0
  %1256 = vmatpush2.bf16.msra.mxu0 0
  %1257 = vmatprep.subr.bf16.mxu0 0
  %1258 = vmatpush2.bf16.msra.mxu0 0
  %1259 = vmatprep.subr.bf16.mxu0 0
  %1260 = vmatpush2.bf16.msra.mxu0 0
  %1261 = vmatprep.subr.bf16.mxu0 0
  %1262 = vmatpush2.bf16.msra.mxu0 0
  %1263 = vmatprep.subr.bf16.mxu0 0
  %1264 = vmatpush2.bf16.msra.mxu0 0
  %1265 = vmatprep.subr.bf16.mxu0 0
  %1266 = vmatpush2.bf16.msra.mxu0 0
  %1267 = vmatprep.subr.bf16.mxu0 0
  %1268 = vmatpush2.bf16.msra.mxu0 0
  %1269 = vmatprep.mubr.bf16.mxu0 0
  %1270 = vmatmul.mubr.bf16.gmra.mxu0 %v1232
  %v1271 = vpop.f32.mrf.mxu0
  %v1272 = vadd.f32 0.0, %v1271
  %v1273 = vpop.f32.mrf.mxu0
  %v1274 = vpop.f32.mrf.mxu0
  %v1275 = vadd.f32 0.0, %v1274
  %v1276 = vpop.f32.mrf.mxu0
  %1277 = vmatprep.mubr.bf16.mxu0 0
  %1278 = vmatmul.mubr.bf16.gmra.mxu0 %v1235
  %v1279 = vpop.f32.mrf.mxu0
  %v1280 = vadd.f32 0.0, %v1279
  %v1281 = vpop.f32.mrf.mxu0
  %v1282 = vpop.f32.mrf.mxu0
  %v1283 = vadd.f32 0.0, %v1282
  %v1284 = vpop.f32.mrf.mxu0
  %1285 = vdwg.mxu0
  %v1286 = vadd.f32 %v21, %v1272
  %v1287 = vadd.f32 %v22, %v1275
  %v1288 = vadd.f32 %v23, %v1280
  %v1289 = vadd.f32 %v24, %v1283
  %v1290 = vld [vmem:[%s4 + $0x60] sm:$0xff]
  %v1291 = vld [vmem:[%s4 + $0x68] sm:$0xff]
  %v1292 = vld [vmem:[%s4 + $0x70] sm:$0xff]
  %v1293 = vld [vmem:[%s4 + $0x78] sm:$0xff]
  %1295 = vset.pattern.permute.xlu0 0
  %1296 = vperm.xlu0 %1295, %v1290
  %v1297 = vpop.permute.xlu0 %1296
  %1300 = vset.pattern.permute.xlu0 0
  %1301 = vperm.xlu0 %1300, %v1291
  %v1302 = vpop.permute.xlu0 %1301
  %1305 = vset.pattern.permute.xlu0 0
  %1306 = vperm.xlu0 %1305, %v1292
  %v1307 = vpop.permute.xlu0 %1306
  %1310 = vset.pattern.permute.xlu0 0
  %1311 = vperm.xlu0 %1310, %v1293
  %v1312 = vpop.permute.xlu0 %1311
  %v1314 = vadd.f32 %v1286, %v1297
  %v1315 = vadd.f32 %v1287, %v1302
  %v1316 = vadd.f32 %v1288, %v1307
  %v1317 = vadd.f32 %v1289, %v1312
  %v1318 = vld [vmem:[%s4 + $0x120] sm:$0xff]
  %v1319 = vld [vmem:[%s4 + $0x128] sm:$0xff]
  %v1320 = vld [vmem:[%s4 + $0x130] sm:$0xff]
  %v1321 = vld [vmem:[%s4 + $0x138] sm:$0xff]
  %v1322 = vld [vmem:[%s4 + $0x140] sm:$0xff]
  %v1323 = vld [vmem:[%s4 + $0x148] sm:$0xff]
  %v1324 = vld [vmem:[%s4 + $0x150] sm:$0xff]
  %v1325 = vld [vmem:[%s4 + $0x158] sm:$0xff]
  %v1326 = vsel %vm59, %v1314, 0.0
  %v1327 = vsel %vm59, %v1315, 0.0
  %v1328 = vadd.f32 %v1326, %v1327
  %v1329 = vsel %vm59, %v1316, 0.0
  %v1330 = vadd.f32 %v1328, %v1329
  %v1331 = vsel %vm59, %v1317, 0.0
  %v1332 = vadd.f32 %v1330, %v1331
  %v1333 = vrot.slane %v1332, 4
  %v1334 = vadd.f32 %v1332, %v1333
  %v1335 = vrot.slane %v1334, 2
  %v1336 = vadd.f32 %v1334, %v1335
  %v1337 = vrot.slane %v1336, 1
  %v1338 = vadd.f32 %v1336, %v1337
  %v1339 = vmul.f32 %v1338, %v73
  %v1340 = vsub.f32 %v1314, %v1339
  %v1341 = vsub.f32 %v1315, %v1339
  %v1342 = vsub.f32 %v1316, %v1339
  %v1343 = vsub.f32 %v1317, %v1339
  %v1344 = vmul.f32 %v1340, %v1340
  %v1345 = vmul.f32 %v1341, %v1341
  %v1346 = vmul.f32 %v1342, %v1342
  %v1347 = vmul.f32 %v1343, %v1343
  %v1348 = vsel %vm59, %v1344, 0.0
  %v1349 = vsel %vm59, %v1345, 0.0
  %v1350 = vadd.f32 %v1348, %v1349
  %v1351 = vsel %vm59, %v1346, 0.0
  %v1352 = vadd.f32 %v1350, %v1351
  %v1353 = vsel %vm59, %v1347, 0.0
  %v1354 = vadd.f32 %v1352, %v1353
  %v1355 = vrot.slane %v1354, 4
  %v1356 = vadd.f32 %v1354, %v1355
  %v1357 = vrot.slane %v1356, 2
  %v1358 = vadd.f32 %v1356, %v1357
  %v1359 = vrot.slane %v1358, 1
  %v1360 = vadd.f32 %v1358, %v1359
  %v1361 = vmul.f32 %v1360, 0.032258064
  %v1362 = vrsqrt.pop %v1361
  %v1363 = vmul.f32 %v1361, %v1362
  %vm1364 = vcmp.eq.f32.partialorder %v1361, inf
  %v1365 = vsel %vm1364, %v1361, %v1363
  %vm1366 = vcmp.eq.f32.partialorder %v1361, 0.0
  %v1367 = vand.u32 %v1361, 2147483648
  %v1368 = vsel %vm1366, %v1367, %v1365
  %v1369 = vadd.f32 %v1368, 1e-06
  %v1370 = vrcp.pop %v1369
  %1372 = vset.pattern.permute.xlu0 0
  %1373 = vperm.xlu0 %1372, %v1318
  %v1374 = vpop.permute.xlu0 %1373
  %1377 = vset.pattern.permute.xlu0 0
  %1378 = vperm.xlu0 %1377, %v1319
  %v1379 = vpop.permute.xlu0 %1378
  %1382 = vset.pattern.permute.xlu0 0
  %1383 = vperm.xlu0 %1382, %v1320
  %v1384 = vpop.permute.xlu0 %1383
  %1387 = vset.pattern.permute.xlu0 0
  %1388 = vperm.xlu0 %1387, %v1321
  %v1389 = vpop.permute.xlu0 %1388
  %v1391 = vmul.f32 %v1374, %v1340
  %v1392 = vmul.f32 %v1379, %v1341
  %v1393 = vmul.f32 %v1384, %v1342
  %v1394 = vmul.f32 %v1389, %v1343
  %v1395 = vmul.f32 %v1391, %v1370
  %v1396 = vmul.f32 %v1392, %v1370
  %v1397 = vmul.f32 %v1393, %v1370
  %v1398 = vmul.f32 %v1394, %v1370
  %1400 = vset.pattern.permute.xlu0 0
  %1401 = vperm.xlu0 %1400, %v1322
  %v1402 = vpop.permute.xlu0 %1401
  %1405 = vset.pattern.permute.xlu0 0
  %1406 = vperm.xlu0 %1405, %v1323
  %v1407 = vpop.permute.xlu0 %1406
  %1410 = vset.pattern.permute.xlu0 0
  %1411 = vperm.xlu0 %1410, %v1324
  %v1412 = vpop.permute.xlu0 %1411
  %1415 = vset.pattern.permute.xlu0 0
  %1416 = vperm.xlu0 %1415, %v1325
  %v1417 = vpop.permute.xlu0 %1416
  %v1419 = vadd.f32 %v1395, %v1402
  %v1420 = vadd.f32 %v1396, %v1407
  %v1421 = vadd.f32 %v1397, %v1412
  %v1422 = vadd.f32 %v1398, %v1417
  %v1423 = vpack.c.bf16 %v1420, %v1419
  %v1424 = vpack.c.bf16 %v1422, %v1421
  %v1425 = vld [vmem:[%s4 + $0x80] sm:$0xff]
  %v1426 = vld [vmem:[%s4 + $0x88] sm:$0xff]
  %v1427 = vld [vmem:[%s4 + $0x90] sm:$0xff]
  %v1428 = vld [vmem:[%s4 + $0x98] sm:$0xff]
  %v1429 = vld [vmem:[%s4 + $0xa0] sm:$0xff]
  %v1430 = vld [vmem:[%s4 + $0xa8] sm:$0xff]
  %v1431 = vld [vmem:[%s4 + $0xb0] sm:$0xff]
  %v1432 = vld [vmem:[%s4 + $0xb8] sm:$0xff]
  %1434 = vset.pattern.permute.xlu0 0
  %1435 = vperm.xlu0 %1434, %v1425
  %v1436 = vpop.permute.xlu0 %1435
  %1439 = vset.pattern.permute.xlu0 0
  %1440 = vperm.xlu0 %1439, %v1426
  %v1441 = vpop.permute.xlu0 %1440
  %1444 = vset.pattern.permute.xlu0 0
  %1445 = vperm.xlu0 %1444, %v1427
  %v1446 = vpop.permute.xlu0 %1445
  %1449 = vset.pattern.permute.xlu0 0
  %1450 = vperm.xlu0 %1449, %v1428
  %v1451 = vpop.permute.xlu0 %1450
  %1454 = vset.pattern.permute.xlu0 0
  %1455 = vperm.xlu0 %1454, %v1429
  %v1456 = vpop.permute.xlu0 %1455
  %1459 = vset.pattern.permute.xlu0 0
  %1460 = vperm.xlu0 %1459, %v1430
  %v1461 = vpop.permute.xlu0 %1460
  %1464 = vset.pattern.permute.xlu0 0
  %1465 = vperm.xlu0 %1464, %v1431
  %v1466 = vpop.permute.xlu0 %1465
  %1469 = vset.pattern.permute.xlu0 0
  %1470 = vperm.xlu0 %1469, %v1432
  %v1471 = vpop.permute.xlu0 %1470
  %v1481 = vunpack.c.l.b16 %v43
  %v1482 = vunpack.c.l.b16 %v44
  %v1483 = vunpack.c.l.b16 %v45
  %v1484 = vunpack.c.l.b16 %v46
  %v1485 = vunpack.c.l.b16 %v47
  %v1486 = vunpack.c.l.b16 %v48
  %v1487 = vunpack.c.l.b16 %v49
  %v1488 = vunpack.c.l.b16 %v50
  %v1489 = vpack.c.b16 %v1482, %v1481
  %v1490 = vpack.c.b16 %v1484, %v1483
  %v1491 = vpack.c.b16 %v1486, %v1485
  %v1492 = vpack.c.b16 %v1488, %v1487
  %v1494 = vsel %vm262, %v1489, 0
  %v1497 = vsel %vm262, %v1490, 0
  %v1500 = vsel %vm262, %v1491, 0
  %v1503 = vsel %vm262, %v1492, 0
  %1505 = vmatprep.subr.bf16.mxu0 0
  %1506 = vmatpush1.bf16.msra.mxu0 0
  %1507 = vmatprep.subr.bf16.mxu0 0
  %1508 = vmatpush1.bf16.msra.mxu0 0
  %1509 = vmatprep.subr.bf16.mxu0 0
  %1510 = vmatpush1.bf16.msra.mxu0 0
  %1511 = vmatprep.subr.bf16.mxu0 0
  %1512 = vmatpush1.bf16.msra.mxu0 0
  %1513 = vmatprep.subr.bf16.mxu0 0
  %1514 = vmatpush1.bf16.msra.mxu0 0
  %1515 = vmatprep.subr.bf16.mxu0 0
  %1516 = vmatpush1.bf16.msra.mxu0 0
  %1517 = vmatprep.subr.bf16.mxu0 0
  %1518 = vmatpush1.bf16.msra.mxu0 %v1424
  %1519 = vmatprep.subr.bf16.mxu0 0
  %1520 = vmatpush1.bf16.msra.mxu0 %v1423
  %1521 = vmatprep.subr.bf16.mxu0 0
  %1522 = vmatpush2.bf16.msra.mxu0 0
  %1523 = vmatprep.subr.bf16.mxu0 0
  %1524 = vmatpush2.bf16.msra.mxu0 0
  %1525 = vmatprep.subr.bf16.mxu0 0
  %1526 = vmatpush2.bf16.msra.mxu0 0
  %1527 = vmatprep.subr.bf16.mxu0 0
  %1528 = vmatpush2.bf16.msra.mxu0 0
  %1529 = vmatprep.subr.bf16.mxu0 0
  %1530 = vmatpush2.bf16.msra.mxu0 0
  %1531 = vmatprep.subr.bf16.mxu0 0
  %1532 = vmatpush2.bf16.msra.mxu0 0
  %1533 = vmatprep.subr.bf16.mxu0 0
  %1534 = vmatpush2.bf16.msra.mxu0 0
  %1535 = vmatprep.subr.bf16.mxu0 0
  %1536 = vmatpush2.bf16.msra.mxu0 0
  %1537 = vmatprep.mubr.bf16.mxu0 0
  %1538 = vmatmul.mubr.bf16.gmra.mxu0 %v1494
  %v1539 = vpop.f32.mrf.mxu0
  %v1540 = vadd.f32 %v1436, %v1539
  %v1541 = vpop.f32.mrf.mxu0
  %v1542 = vpop.f32.mrf.mxu0
  %v1543 = vadd.f32 %v1441, %v1542
  %v1544 = vpop.f32.mrf.mxu0
  %1545 = vmatprep.mubr.bf16.mxu0 0
  %1546 = vmatmul.mubr.bf16.gmra.mxu0 %v1497
  %v1547 = vpop.f32.mrf.mxu0
  %v1548 = vadd.f32 %v1446, %v1547
  %v1549 = vpop.f32.mrf.mxu0
  %v1550 = vpop.f32.mrf.mxu0
  %v1551 = vadd.f32 %v1451, %v1550
  %v1552 = vpop.f32.mrf.mxu0
  %1553 = vmatprep.mubr.bf16.mxu0 0
  %1554 = vmatmul.mubr.bf16.gmra.mxu0 %v1500
  %v1555 = vpop.f32.mrf.mxu0
  %v1556 = vadd.f32 %v1456, %v1555
  %v1557 = vpop.f32.mrf.mxu0
  %v1558 = vpop.f32.mrf.mxu0
  %v1559 = vadd.f32 %v1461, %v1558
  %v1560 = vpop.f32.mrf.mxu0
  %1561 = vmatprep.mubr.bf16.mxu0 0
  %1562 = vmatmul.mubr.bf16.gmra.mxu0 %v1503
  %v1563 = vpop.f32.mrf.mxu0
  %v1564 = vadd.f32 %v1466, %v1563
  %v1565 = vpop.f32.mrf.mxu0
  %v1566 = vpop.f32.mrf.mxu0
  %v1567 = vadd.f32 %v1471, %v1566
  %v1568 = vpop.f32.mrf.mxu0
  %1569 = vdwg.mxu0
  %v1570 = vmax.f32 %v1540, 0.0
  %v1571 = vmax.f32 %v1543, 0.0
  %v1572 = vmax.f32 %v1548, 0.0
  %v1573 = vmax.f32 %v1551, 0.0
  %v1574 = vmax.f32 %v1556, 0.0
  %v1575 = vmax.f32 %v1559, 0.0
  %v1576 = vmax.f32 %v1564, 0.0
  %v1577 = vmax.f32 %v1567, 0.0
  %v1578 = vld [vmem:[%s3] sm:$0xf]
  %v1579 = vld [vmem:[%s3 + $0x4] sm:$0xf]
  %v1580 = vld [vmem:[%s3 + $0x8] sm:$0xf]
  %v1581 = vld [vmem:[%s3 + $0xc] sm:$0xf]
  %v1582 = vpack.c.bf16 %v1571, %v1570
  %v1583 = vpack.c.bf16 %v1573, %v1572
  %v1584 = vpack.c.bf16 %v1575, %v1574
  %v1585 = vpack.c.bf16 %v1577, %v1576
  %v1590 = vunpack.c.l.b16 %v1578
  %v1591 = vunpack.c.l.b16 %v1579
  %v1592 = vunpack.c.l.b16 %v1580
  %v1593 = vunpack.c.l.b16 %v1581
  %v1594 = vpack.c.b16 %v1591, %v1590
  %v1595 = vpack.c.b16 %v1593, %v1592
  %vm1596 = vcmask 523264
  %v1598 = vsel %vm1596, %v1594, 0
  %v1601 = vsel %vm1596, %v1595, 0
  %1603 = vmatprep.subr.bf16.mxu0 0
  %1604 = vmatpush1.bf16.msra.mxu0 0
  %1605 = vmatprep.subr.bf16.mxu0 0
  %1606 = vmatpush1.bf16.msra.mxu0 0
  %1607 = vmatprep.subr.bf16.mxu0 0
  %1608 = vmatpush1.bf16.msra.mxu0 0
  %1609 = vmatprep.subr.bf16.mxu0 0
  %1610 = vmatpush1.bf16.msra.mxu0 0
  %1611 = vmatprep.subr.bf16.mxu0 0
  %1612 = vmatpush1.bf16.msra.mxu0 %v1585
  %1613 = vmatprep.subr.bf16.mxu0 0
  %1614 = vmatpush1.bf16.msra.mxu0 %v1584
  %1615 = vmatprep.subr.bf16.mxu0 0
  %1616 = vmatpush1.bf16.msra.mxu0 %v1583
  %1617 = vmatprep.subr.bf16.mxu0 0
  %1618 = vmatpush1.bf16.msra.mxu0 %v1582
  %1619 = vmatprep.subr.bf16.mxu0 0
  %1620 = vmatpush2.bf16.msra.mxu0 0
  %1621 = vmatprep.subr.bf16.mxu0 0
  %1622 = vmatpush2.bf16.msra.mxu0 0
  %1623 = vmatprep.subr.bf16.mxu0 0
  %1624 = vmatpush2.bf16.msra.mxu0 0
  %1625 = vmatprep.subr.bf16.mxu0 0
  %1626 = vmatpush2.bf16.msra.mxu0 0
  %1627 = vmatprep.subr.bf16.mxu0 0
  %1628 = vmatpush2.bf16.msra.mxu0 0
  %1629 = vmatprep.subr.bf16.mxu0 0
  %1630 = vmatpush2.bf16.msra.mxu0 0
  %1631 = vmatprep.subr.bf16.mxu0 0
  %1632 = vmatpush2.bf16.msra.mxu0 0
  %1633 = vmatprep.subr.bf16.mxu0 0
  %1634 = vmatpush2.bf16.msra.mxu0 0
  %1635 = vmatprep.mubr.bf16.mxu0 0
  %1636 = vmatmul.mubr.bf16.gmra.mxu0 %v1598
  %v1637 = vpop.f32.mrf.mxu0
  %v1638 = vadd.f32 0.0, %v1637
  %v1639 = vpop.f32.mrf.mxu0
  %v1640 = vpop.f32.mrf.mxu0
  %v1641 = vadd.f32 0.0, %v1640
  %v1642 = vpop.f32.mrf.mxu0
  %1643 = vmatprep.mubr.bf16.mxu0 0
  %1644 = vmatmul.mubr.bf16.gmra.mxu0 %v1601
  %v1645 = vpop.f32.mrf.mxu0
  %v1646 = vadd.f32 0.0, %v1645
  %v1647 = vpop.f32.mrf.mxu0
  %v1648 = vpop.f32.mrf.mxu0
  %v1649 = vadd.f32 0.0, %v1648
  %v1650 = vpop.f32.mrf.mxu0
  %1651 = vdwg.mxu0
  %v1652 = vadd.f32 %v1314, %v1638
  %v1653 = vadd.f32 %v1315, %v1641
  %v1654 = vadd.f32 %v1316, %v1646
  %v1655 = vadd.f32 %v1317, %v1649
  %v1656 = vld [vmem:[%s4 + $0xc0] sm:$0xff]
  %v1657 = vld [vmem:[%s4 + $0xc8] sm:$0xff]
  %v1658 = vld [vmem:[%s4 + $0xd0] sm:$0xff]
  %v1659 = vld [vmem:[%s4 + $0xd8] sm:$0xff]
  %1661 = vset.pattern.permute.xlu0 0
  %1662 = vperm.xlu0 %1661, %v1656
  %v1663 = vpop.permute.xlu0 %1662
  %1666 = vset.pattern.permute.xlu0 0
  %1667 = vperm.xlu0 %1666, %v1657
  %v1668 = vpop.permute.xlu0 %1667
  %1671 = vset.pattern.permute.xlu0 0
  %1672 = vperm.xlu0 %1671, %v1658
  %v1673 = vpop.permute.xlu0 %1672
  %1676 = vset.pattern.permute.xlu0 0
  %1677 = vperm.xlu0 %1676, %v1659
  %v1678 = vpop.permute.xlu0 %1677
  %v1680 = vadd.f32 %v1652, %v1663
  %v1681 = vadd.f32 %v1653, %v1668
  %v1682 = vadd.f32 %v1654, %v1673
  %v1683 = vadd.f32 %v1655, %v1678
  %s1684 = scalar_lea.vmem %s2, 96
  %v1685 = vld [vmem:[%s1684] sm:$0xf]
  %v1686 = vld [vmem:[%s1684 + $0x4] sm:$0xf]
  %v1687 = vld [vmem:[%s1684 + $0x8] sm:$0xf]
  %v1688 = vld [vmem:[%s1684 + $0xc] sm:$0xf]
  %v1689 = vld [vmem:[%s1684 + $0x10] sm:$0xf]
  %v1690 = vld [vmem:[%s1684 + $0x14] sm:$0xf]
  %v1691 = vld [vmem:[%s1684 + $0x18] sm:$0xf]
  %v1692 = vld [vmem:[%s1684 + $0x1c] sm:$0xf]
  %v1693 = vld [vmem:[%s1684 + $0x20] sm:$0xf]
  %v1694 = vld [vmem:[%s1684 + $0x24] sm:$0xf]
  %v1695 = vld [vmem:[%s1684 + $0x28] sm:$0xf]
  %v1696 = vld [vmem:[%s1684 + $0x2c] sm:$0xf]
  %v1697 = vld [vmem:[%s1684 + $0x30] sm:$0xf]
  %v1698 = vld [vmem:[%s1684 + $0x34] sm:$0xf]
  %v1699 = vld [vmem:[%s1684 + $0x38] sm:$0xf]
  %v1700 = vld [vmem:[%s1684 + $0x3c] sm:$0xf]
  %v1701 = vld [vmem:[%s1684 + $0x40] sm:$0xf]
  %v1702 = vld [vmem:[%s1684 + $0x44] sm:$0xf]
  %v1703 = vld [vmem:[%s1684 + $0x48] sm:$0xf]
  %v1704 = vld [vmem:[%s1684 + $0x4c] sm:$0xf]
  %v1705 = vld [vmem:[%s1684 + $0x50] sm:$0xf]
  %v1706 = vld [vmem:[%s1684 + $0x54] sm:$0xf]
  %v1707 = vld [vmem:[%s1684 + $0x58] sm:$0xf]
  %v1708 = vld [vmem:[%s1684 + $0x5c] sm:$0xf]
  %v1709 = vld [vmem:[%s4 + $0x240] sm:$0xff]
  %v1710 = vld [vmem:[%s4 + $0x248] sm:$0xff]
  %v1711 = vld [vmem:[%s4 + $0x250] sm:$0xff]
  %v1712 = vld [vmem:[%s4 + $0x258] sm:$0xff]
  %v1713 = vld [vmem:[%s4 + $0x260] sm:$0xff]
  %v1714 = vld [vmem:[%s4 + $0x268] sm:$0xff]
  %v1715 = vld [vmem:[%s4 + $0x270] sm:$0xff]
  %v1716 = vld [vmem:[%s4 + $0x278] sm:$0xff]
  %v1717 = vsel %vm59, %v1680, 0.0
  %v1718 = vsel %vm59, %v1681, 0.0
  %v1719 = vadd.f32 %v1717, %v1718
  %v1720 = vsel %vm59, %v1682, 0.0
  %v1721 = vadd.f32 %v1719, %v1720
  %v1722 = vsel %vm59, %v1683, 0.0
  %v1723 = vadd.f32 %v1721, %v1722
  %v1724 = vrot.slane %v1723, 4
  %v1725 = vadd.f32 %v1723, %v1724
  %v1726 = vrot.slane %v1725, 2
  %v1727 = vadd.f32 %v1725, %v1726
  %v1728 = vrot.slane %v1727, 1
  %v1729 = vadd.f32 %v1727, %v1728
  %v1730 = vmul.f32 %v1729, %v73
  %v1731 = vsub.f32 %v1680, %v1730
  %v1732 = vsub.f32 %v1681, %v1730
  %v1733 = vsub.f32 %v1682, %v1730
  %v1734 = vsub.f32 %v1683, %v1730
  %v1735 = vmul.f32 %v1731, %v1731
  %v1736 = vmul.f32 %v1732, %v1732
  %v1737 = vmul.f32 %v1733, %v1733
  %v1738 = vmul.f32 %v1734, %v1734
  %v1739 = vsel %vm59, %v1735, 0.0
  %v1740 = vsel %vm59, %v1736, 0.0
  %v1741 = vadd.f32 %v1739, %v1740
  %v1742 = vsel %vm59, %v1737, 0.0
  %v1743 = vadd.f32 %v1741, %v1742
  %v1744 = vsel %vm59, %v1738, 0.0
  %v1745 = vadd.f32 %v1743, %v1744
  %v1746 = vrot.slane %v1745, 4
  %v1747 = vadd.f32 %v1745, %v1746
  %v1748 = vrot.slane %v1747, 2
  %v1749 = vadd.f32 %v1747, %v1748
  %v1750 = vrot.slane %v1749, 1
  %v1751 = vadd.f32 %v1749, %v1750
  %v1752 = vmul.f32 %v1751, 0.032258064
  %v1753 = vrsqrt.pop %v1752
  %v1754 = vmul.f32 %v1752, %v1753
  %vm1755 = vcmp.eq.f32.partialorder %v1752, inf
  %v1756 = vsel %vm1755, %v1752, %v1754
  %vm1757 = vcmp.eq.f32.partialorder %v1752, 0.0
  %v1758 = vand.u32 %v1752, 2147483648
  %v1759 = vsel %vm1757, %v1758, %v1756
  %v1760 = vadd.f32 %v1759, 1e-06
  %v1761 = vrcp.pop %v1760
  %1763 = vset.pattern.permute.xlu0 0
  %1764 = vperm.xlu0 %1763, %v1709
  %v1765 = vpop.permute.xlu0 %1764
  %1768 = vset.pattern.permute.xlu0 0
  %1769 = vperm.xlu0 %1768, %v1710
  %v1770 = vpop.permute.xlu0 %1769
  %1773 = vset.pattern.permute.xlu0 0
  %1774 = vperm.xlu0 %1773, %v1711
  %v1775 = vpop.permute.xlu0 %1774
  %1778 = vset.pattern.permute.xlu0 0
  %1779 = vperm.xlu0 %1778, %v1712
  %v1780 = vpop.permute.xlu0 %1779
  %v1782 = vmul.f32 %v1765, %v1731
  %v1783 = vmul.f32 %v1770, %v1732
  %v1784 = vmul.f32 %v1775, %v1733
  %v1785 = vmul.f32 %v1780, %v1734
  %v1786 = vmul.f32 %v1782, %v1761
  %v1787 = vmul.f32 %v1783, %v1761
  %v1788 = vmul.f32 %v1784, %v1761
  %v1789 = vmul.f32 %v1785, %v1761
  %1791 = vset.pattern.permute.xlu0 0
  %1792 = vperm.xlu0 %1791, %v1713
  %v1793 = vpop.permute.xlu0 %1792
  %1796 = vset.pattern.permute.xlu0 0
  %1797 = vperm.xlu0 %1796, %v1714
  %v1798 = vpop.permute.xlu0 %1797
  %1801 = vset.pattern.permute.xlu0 0
  %1802 = vperm.xlu0 %1801, %v1715
  %v1803 = vpop.permute.xlu0 %1802
  %1806 = vset.pattern.permute.xlu0 0
  %1807 = vperm.xlu0 %1806, %v1716
  %v1808 = vpop.permute.xlu0 %1807
  %v1810 = vadd.f32 %v1786, %v1793
  %v1811 = vadd.f32 %v1787, %v1798
  %v1812 = vadd.f32 %v1788, %v1803
  %v1813 = vadd.f32 %v1789, %v1808
  %v1814 = vpack.c.bf16 %v1811, %v1810
  %v1815 = vpack.c.bf16 %v1813, %v1812
  %v1816 = vld [vmem:[%s4 + $0x160] sm:$0xff]
  %v1817 = vld [vmem:[%s4 + $0x168] sm:$0xff]
  %v1818 = vld [vmem:[%s4 + $0x170] sm:$0xff]
  %v1819 = vld [vmem:[%s4 + $0x178] sm:$0xff]
  %v1820 = vld [vmem:[%s4 + $0x180] sm:$0xff]
  %v1821 = vld [vmem:[%s4 + $0x188] sm:$0xff]
  %v1822 = vld [vmem:[%s4 + $0x190] sm:$0xff]
  %v1823 = vld [vmem:[%s4 + $0x198] sm:$0xff]
  %v1824 = vld [vmem:[%s4 + $0x1a0] sm:$0xff]
  %v1825 = vld [vmem:[%s4 + $0x1a8] sm:$0xff]
  %v1826 = vld [vmem:[%s4 + $0x1b0] sm:$0xff]
  %v1827 = vld [vmem:[%s4 + $0x1b8] sm:$0xff]
  %1829 = vset.pattern.permute.xlu0 0
  %1830 = vperm.xlu0 %1829, %v1816
  %v1831 = vpop.permute.xlu0 %1830
  %1834 = vset.pattern.permute.xlu0 0
  %1835 = vperm.xlu0 %1834, %v1817
  %v1836 = vpop.permute.xlu0 %1835
  %1839 = vset.pattern.permute.xlu0 0
  %1840 = vperm.xlu0 %1839, %v1818
  %v1841 = vpop.permute.xlu0 %1840
  %1844 = vset.pattern.permute.xlu0 0
  %1845 = vperm.xlu0 %1844, %v1819
  %v1846 = vpop.permute.xlu0 %1845
  %1849 = vset.pattern.permute.xlu0 0
  %1850 = vperm.xlu0 %1849, %v1820
  %v1851 = vpop.permute.xlu0 %1850
  %1854 = vset.pattern.permute.xlu0 0
  %1855 = vperm.xlu0 %1854, %v1821
  %v1856 = vpop.permute.xlu0 %1855
  %1859 = vset.pattern.permute.xlu0 0
  %1860 = vperm.xlu0 %1859, %v1822
  %v1861 = vpop.permute.xlu0 %1860
  %1864 = vset.pattern.permute.xlu0 0
  %1865 = vperm.xlu0 %1864, %v1823
  %v1866 = vpop.permute.xlu0 %1865
  %1869 = vset.pattern.permute.xlu0 0
  %1870 = vperm.xlu0 %1869, %v1824
  %v1871 = vpop.permute.xlu0 %1870
  %1874 = vset.pattern.permute.xlu0 0
  %1875 = vperm.xlu0 %1874, %v1825
  %v1876 = vpop.permute.xlu0 %1875
  %1879 = vset.pattern.permute.xlu0 0
  %1880 = vperm.xlu0 %1879, %v1826
  %v1881 = vpop.permute.xlu0 %1880
  %1884 = vset.pattern.permute.xlu0 0
  %1885 = vperm.xlu0 %1884, %v1827
  %v1886 = vpop.permute.xlu0 %1885
  %v1900 = vunpack.c.l.b16 %v1685
  %v1901 = vunpack.c.l.b16 %v1686
  %v1902 = vunpack.c.l.b16 %v1687
  %v1903 = vunpack.c.l.b16 %v1688
  %v1904 = vunpack.c.l.b16 %v1689
  %v1905 = vunpack.c.l.b16 %v1690
  %v1906 = vunpack.c.l.b16 %v1691
  %v1907 = vunpack.c.l.b16 %v1692
  %v1908 = vunpack.c.l.b16 %v1693
  %v1909 = vunpack.c.l.b16 %v1694
  %v1910 = vunpack.c.l.b16 %v1695
  %v1911 = vunpack.c.l.b16 %v1696
  %v1912 = vpack.c.b16 %v1901, %v1900
  %v1913 = vpack.c.b16 %v1903, %v1902
  %v1914 = vpack.c.b16 %v1905, %v1904
  %v1915 = vpack.c.b16 %v1907, %v1906
  %v1916 = vpack.c.b16 %v1909, %v1908
  %v1917 = vpack.c.b16 %v1911, %v1910
  %v1919 = vsel %vm262, %v1912, 0
  %v1922 = vsel %vm262, %v1913, 0
  %v1925 = vsel %vm262, %v1914, 0
  %v1928 = vsel %vm262, %v1915, 0
  %v1931 = vsel %vm262, %v1916, 0
  %v1934 = vsel %vm262, %v1917, 0
  %1936 = vmatprep.subr.bf16.mxu0 0
  %1937 = vmatpush1.bf16.msra.mxu0 0
  %1938 = vmatprep.subr.bf16.mxu0 0
  %1939 = vmatpush1.bf16.msra.mxu0 0
  %1940 = vmatprep.subr.bf16.mxu0 0
  %1941 = vmatpush1.bf16.msra.mxu0 0
  %1942 = vmatprep.subr.bf16.mxu0 0
  %1943 = vmatpush1.bf16.msra.mxu0 0
  %1944 = vmatprep.subr.bf16.mxu0 0
  %1945 = vmatpush1.bf16.msra.mxu0 0
  %1946 = vmatprep.subr.bf16.mxu0 0
  %1947 = vmatpush1.bf16.msra.mxu0 0
  %1948 = vmatprep.subr.bf16.mxu0 0
  %1949 = vmatpush1.bf16.msra.mxu0 %v1815
  %1950 = vmatprep.subr.bf16.mxu0 0
  %1951 = vmatpush1.bf16.msra.mxu0 %v1814
  %1952 = vmatprep.subr.bf16.mxu0 0
  %1953 = vmatpush2.bf16.msra.mxu0 0
  %1954 = vmatprep.subr.bf16.mxu0 0
  %1955 = vmatpush2.bf16.msra.mxu0 0
  %1956 = vmatprep.subr.bf16.mxu0 0
  %1957 = vmatpush2.bf16.msra.mxu0 0
  %1958 = vmatprep.subr.bf16.mxu0 0
  %1959 = vmatpush2.bf16.msra.mxu0 0
  %1960 = vmatprep.subr.bf16.mxu0 0
  %1961 = vmatpush2.bf16.msra.mxu0 0
  %1962 = vmatprep.subr.bf16.mxu0 0
  %1963 = vmatpush2.bf16.msra.mxu0 0
  %1964 = vmatprep.subr.bf16.mxu0 0
  %1965 = vmatpush2.bf16.msra.mxu0 0
  %1966 = vmatprep.subr.bf16.mxu0 0
  %1967 = vmatpush2.bf16.msra.mxu0 0
  %1968 = vmatprep.mubr.bf16.mxu0 0
  %1969 = vmatmul.mubr.bf16.gmra.mxu0 %v1919
  %v1970 = vpop.f32.mrf.mxu0
  %v1971 = vadd.f32 %v1831, %v1970
  %v1972 = vpop.f32.mrf.mxu0
  %v1973 = vpop.f32.mrf.mxu0
  %v1974 = vadd.f32 %v1836, %v1973
  %v1975 = vpop.f32.mrf.mxu0
  %1976 = vmatprep.mubr.bf16.mxu0 0
  %1977 = vmatmul.mubr.bf16.gmra.mxu0 %v1922
  %v1978 = vpop.f32.mrf.mxu0
  %v1979 = vadd.f32 %v1841, %v1978
  %v1980 = vpop.f32.mrf.mxu0
  %v1981 = vpop.f32.mrf.mxu0
  %v1982 = vadd.f32 %v1846, %v1981
  %v1983 = vpop.f32.mrf.mxu0
  %1984 = vmatprep.mubr.bf16.mxu0 0
  %1985 = vmatmul.mubr.bf16.gmra.mxu0 %v1925
  %v1986 = vpop.f32.mrf.mxu0
  %v1987 = vadd.f32 %v1851, %v1986
  %v1988 = vpop.f32.mrf.mxu0
  %v1989 = vpop.f32.mrf.mxu0
  %v1990 = vadd.f32 %v1856, %v1989
  %v1991 = vpop.f32.mrf.mxu0
  %1992 = vmatprep.mubr.bf16.mxu0 0
  %1993 = vmatmul.mubr.bf16.gmra.mxu0 %v1928
  %v1994 = vpop.f32.mrf.mxu0
  %v1995 = vadd.f32 %v1861, %v1994
  %v1996 = vpop.f32.mrf.mxu0
  %v1997 = vpop.f32.mrf.mxu0
  %v1998 = vadd.f32 %v1866, %v1997
  %v1999 = vpop.f32.mrf.mxu0
  %2000 = vmatprep.mubr.bf16.mxu0 0
  %2001 = vmatmul.mubr.bf16.gmra.mxu0 %v1931
  %v2002 = vpop.f32.mrf.mxu0
  %v2003 = vadd.f32 %v1871, %v2002
  %v2004 = vpop.f32.mrf.mxu0
  %v2005 = vpop.f32.mrf.mxu0
  %v2006 = vadd.f32 %v1876, %v2005
  %v2007 = vpop.f32.mrf.mxu0
  %2008 = vmatprep.mubr.bf16.mxu0 0
  %2009 = vmatmul.mubr.bf16.gmra.mxu0 %v1934
  %v2010 = vpop.f32.mrf.mxu0
  %v2011 = vadd.f32 %v1881, %v2010
  %v2012 = vpop.f32.mrf.mxu0
  %v2013 = vpop.f32.mrf.mxu0
  %v2014 = vadd.f32 %v1886, %v2013
  %v2015 = vpop.f32.mrf.mxu0
  %2016 = vdwg.mxu0
  %2017 = vxpose.xlu0.b32.start [1/16] %v1971, 128
  %2018 = vxpose.xlu0.b32.cont [2/16] 0.0, 128
  %2019 = vxpose.xlu0.b32.cont [3/16] 0.0, 128
  %2020 = vxpose.xlu0.b32.cont [4/16] 0.0, 128
  %2021 = vxpose.xlu0.b32.cont [5/16] 0.0, 128
  %2022 = vxpose.xlu0.b32.cont [6/16] 0.0, 128
  %2023 = vxpose.xlu0.b32.cont [7/16] 0.0, 128
  %2024 = vxpose.xlu0.b32.cont [8/16] 0.0, 128
  %2025 = vxpose.xlu0.b32.cont [9/16] 0.0, 128
  %2026 = vxpose.xlu0.b32.cont [10/16] 0.0, 128
  %2027 = vxpose.xlu0.b32.cont [11/16] 0.0, 128
  %2028 = vxpose.xlu0.b32.cont [12/16] 0.0, 128
  %2029 = vxpose.xlu0.b32.cont [13/16] 0.0, 128
  %2030 = vxpose.xlu0.b32.cont [14/16] 0.0, 128
  %2031 = vxpose.xlu0.b32.cont [15/16] 0.0, 128
  %2032 = vxpose.xlu0.b32.end [16/16] 0.0, 128
  %v2033 = vpop.trf.xlu0
  %v2034 = vpop.trf.xlu0
  %v2035 = vpop.trf.xlu0
  %v2036 = vpop.trf.xlu0
  %v2037 = vpop.trf.xlu0
  %v2038 = vpop.trf.xlu0
  %v2039 = vpop.trf.xlu0
  %v2040 = vpop.trf.xlu0
  %v2041 = vpop.trf.xlu0
  %v2042 = vpop.trf.xlu0
  %v2043 = vpop.trf.xlu0
  %v2044 = vpop.trf.xlu0
  %v2045 = vpop.trf.xlu0
  %v2046 = vpop.trf.xlu0
  %v2047 = vpop.trf.xlu0
  %v2048 = vpop.trf.xlu0
  %v2050 = vsel %vm394, %v2033, 0
  %v2053 = vsel %vm394, %v2034, 0
  %2055 = vmatprep.subr.mxu0 0.0
  %2056 = vmatpush1.msra.mxu0 0.0
  %2057 = vmatprep.subr.mxu0 0.0
  %2058 = vmatpush1.msra.mxu0 0.0
  %2059 = vmatprep.subr.mxu0 0.0
  %2060 = vmatpush1.msra.mxu0 0.0
  %2061 = vmatprep.subr.mxu0 0.0
  %2062 = vmatpush1.msra.mxu0 0.0
  %2063 = vmatprep.subr.mxu0 0.0
  %2064 = vmatpush1.msra.mxu0 0.0
  %2065 = vmatprep.subr.mxu0 0.0
  %2066 = vmatpush1.msra.mxu0 0.0
  %2067 = vmatprep.subr.mxu0 0.0
  %2068 = vmatpush1.msra.mxu0 0.0
  %2069 = vmatprep.subr.mxu0 0.0
  %2070 = vmatpush1.msra.mxu0 0.0
  %2071 = vmatprep.subr.mxu0 0.0
  %2072 = vmatpush1.msra.mxu0 0.0
  %2073 = vmatprep.subr.mxu0 0.0
  %2074 = vmatpush1.msra.mxu0 0.0
  %2075 = vmatprep.subr.mxu0 0.0
  %2076 = vmatpush1.msra.mxu0 0.0
  %2077 = vmatprep.subr.mxu0 0.0
  %2078 = vmatpush1.msra.mxu0 0.0
  %2079 = vmatprep.subr.mxu0 0.0
  %2080 = vmatpush1.msra.mxu0 0.0
  %2081 = vmatprep.subr.mxu0 0.0
  %2082 = vmatpush1.msra.mxu0 0.0
  %2083 = vmatprep.subr.mxu0 0.0
  %2084 = vmatpush1.msra.mxu0 0.0
  %2085 = vmatprep.subr.mxu0 0.0
  %2086 = vmatpush1.msra.mxu0 %v1987
  %2087 = vmatprep.subr.mxu0 0.0
  %2088 = vmatpush2.msra.mxu0 0.0
  %2089 = vmatprep.subr.mxu0 0.0
  %2090 = vmatpush2.msra.mxu0 0.0
  %2091 = vmatprep.subr.mxu0 0.0
  %2092 = vmatpush2.msra.mxu0 0.0
  %2093 = vmatprep.subr.mxu0 0.0
  %2094 = vmatpush2.msra.mxu0 0.0
  %2095 = vmatprep.subr.mxu0 0.0
  %2096 = vmatpush2.msra.mxu0 0.0
  %2097 = vmatprep.subr.mxu0 0.0
  %2098 = vmatpush2.msra.mxu0 0.0
  %2099 = vmatprep.subr.mxu0 0.0
  %2100 = vmatpush2.msra.mxu0 0.0
  %2101 = vmatprep.subr.mxu0 0.0
  %2102 = vmatpush2.msra.mxu0 0.0
  %2103 = vmatprep.subr.mxu0 0.0
  %2104 = vmatpush2.msra.mxu0 0.0
  %2105 = vmatprep.subr.mxu0 0.0
  %2106 = vmatpush2.msra.mxu0 0.0
  %2107 = vmatprep.subr.mxu0 0.0
  %2108 = vmatpush2.msra.mxu0 0.0
  %2109 = vmatprep.subr.mxu0 0.0
  %2110 = vmatpush2.msra.mxu0 0.0
  %2111 = vmatprep.subr.mxu0 0.0
  %2112 = vmatpush2.msra.mxu0 0.0
  %2113 = vmatprep.subr.mxu0 0.0
  %2114 = vmatpush2.msra.mxu0 0.0
  %2115 = vmatprep.subr.mxu0 0.0
  %2116 = vmatpush2.msra.mxu0 0.0
  %2117 = vmatprep.subr.mxu0 0.0
  %2118 = vmatpush2.msra.mxu0 0.0
  %2119 = vmatprep.mubr.f32.mxu0 0.0
  %2120 = vmatmul.mubr.f32.gmra.mxu0 %v2050
  %v2121 = vpop.f32.mrf.mxu0
  %v2122 = vadd.f32 %v25, %v2121
  %v2123 = vpop.f32.mrf.mxu0
  %2124 = vmatprep.mubr.f32.mxu0 0.0
  %2125 = vmatmul.mubr.f32.gmra.mxu0 %v2053
  %v2126 = vpop.f32.mrf.mxu0
  %v2127 = vadd.f32 %v26, %v2126
  %v2128 = vpop.f32.mrf.mxu0
  %2129 = vdwg.mxu0
  %v2130 = vsel %vm59, %v2122, -inf
  %2131 = vmax.xlane.f32.xlu0 %v2130
  %v2132 = vpop.xlane.xlu0 %2131
  %v2133 = vsel %vm59, %v2127, -inf
  %2134 = vmax.xlane.f32.xlu0 %v2133
  %v2135 = vpop.xlane.xlu0 %2134
  %v2136 = vsub.f32 %v2122, %v2132
  %v2137 = vsub.f32 %v2127, %v2135
  %v2138 = vmul.f32 %v2136, 1.442695
  %v2139 = vpow.pop %v2138
  %v2140 = vmul.f32 %v2137, 1.442695
  %v2141 = vpow.pop %v2140
  %v2142 = vsel %vm59, %v2139, 0.0
  %2143 = vadd.xlane.f32.xlu0 %v2142
  %v2144 = vpop.xlane.xlu0 %2143
  %v2145 = vsel %vm59, %v2141, 0.0
  %2146 = vadd.xlane.f32.xlu0 %v2145
  %v2147 = vpop.xlane.xlu0 %2146
  %v2148 = vrcp.pop %v2144
  %v2149 = vrcp.pop %v2147
  %v2150 = vmul.f32 %v2139, %v2148
  %v2151 = vmul.f32 %v2141, %v2149
  %v2153 = vsel %vm59, %v2003, 0
  %v2156 = vsel %vm59, %v2150, 0
  %v2159 = vsel %vm59, %v2151, 0
  %2161 = vmatprep.subr.mxu0 0.0
  %2162 = vmatpush1.xpose.msra.mxu0 0.0
  %2163 = vmatprep.subr.mxu0 0.0
  %2164 = vmatpush1.xpose.msra.mxu0 0.0
  %2165 = vmatprep.subr.mxu0 0.0
  %2166 = vmatpush1.xpose.msra.mxu0 0.0
  %2167 = vmatprep.subr.mxu0 0.0
  %2168 = vmatpush1.xpose.msra.mxu0 0.0
  %2169 = vmatprep.subr.mxu0 0.0
  %2170 = vmatpush1.xpose.msra.mxu0 0.0
  %2171 = vmatprep.subr.mxu0 0.0
  %2172 = vmatpush1.xpose.msra.mxu0 0.0
  %2173 = vmatprep.subr.mxu0 0.0
  %2174 = vmatpush1.xpose.msra.mxu0 0.0
  %2175 = vmatprep.subr.mxu0 0.0
  %2176 = vmatpush1.xpose.msra.mxu0 0.0
  %2177 = vmatprep.subr.mxu0 0.0
  %2178 = vmatpush1.xpose.msra.mxu0 0.0
  %2179 = vmatprep.subr.mxu0 0.0
  %2180 = vmatpush1.xpose.msra.mxu0 0.0
  %2181 = vmatprep.subr.mxu0 0.0
  %2182 = vmatpush1.xpose.msra.mxu0 0.0
  %2183 = vmatprep.subr.mxu0 0.0
  %2184 = vmatpush1.xpose.msra.mxu0 0.0
  %2185 = vmatprep.subr.mxu0 0.0
  %2186 = vmatpush1.xpose.msra.mxu0 0.0
  %2187 = vmatprep.subr.mxu0 0.0
  %2188 = vmatpush1.xpose.msra.mxu0 0.0
  %2189 = vmatprep.subr.mxu0 0.0
  %2190 = vmatpush1.xpose.msra.mxu0 %v2159
  %2191 = vmatprep.subr.mxu0 0.0
  %2192 = vmatpush1.xpose.msra.mxu0 %v2156
  %2193 = vmatprep.subr.mxu0 0.0
  %2194 = vmatpush2.xpose.msra.mxu0 0.0
  %2195 = vmatprep.subr.mxu0 0.0
  %2196 = vmatpush2.xpose.msra.mxu0 0.0
  %2197 = vmatprep.subr.mxu0 0.0
  %2198 = vmatpush2.xpose.msra.mxu0 0.0
  %2199 = vmatprep.subr.mxu0 0.0
  %2200 = vmatpush2.xpose.msra.mxu0 0.0
  %2201 = vmatprep.subr.mxu0 0.0
  %2202 = vmatpush2.xpose.msra.mxu0 0.0
  %2203 = vmatprep.subr.mxu0 0.0
  %2204 = vmatpush2.xpose.msra.mxu0 0.0
  %2205 = vmatprep.subr.mxu0 0.0
  %2206 = vmatpush2.xpose.msra.mxu0 0.0
  %2207 = vmatprep.subr.mxu0 0.0
  %2208 = vmatpush2.xpose.msra.mxu0 0.0
  %2209 = vmatprep.subr.mxu0 0.0
  %2210 = vmatpush2.xpose.msra.mxu0 0.0
  %2211 = vmatprep.subr.mxu0 0.0
  %2212 = vmatpush2.xpose.msra.mxu0 0.0
  %2213 = vmatprep.subr.mxu0 0.0
  %2214 = vmatpush2.xpose.msra.mxu0 0.0
  %2215 = vmatprep.subr.mxu0 0.0
  %2216 = vmatpush2.xpose.msra.mxu0 0.0
  %2217 = vmatprep.subr.mxu0 0.0
  %2218 = vmatpush2.xpose.msra.mxu0 0.0
  %2219 = vmatprep.subr.mxu0 0.0
  %2220 = vmatpush2.xpose.msra.mxu0 0.0
  %2221 = vmatprep.subr.mxu0 0.0
  %2222 = vmatpush2.xpose.msra.mxu0 0.0
  %2223 = vmatprep.subr.mxu0 0.0
  %2224 = vmatpush2.xpose.msra.mxu0 0.0
  %2225 = vmatprep.mubr.f32.mxu0 0.0
  %2226 = vmatmul.mubr.f32.gmra.mxu0 %v2153
  %v2227 = vpop.f32.mrf.mxu0
  %v2228 = vadd.f32 0.0, %v2227
  %v2229 = vpop.f32.mrf.mxu0
  %2230 = vdwg.mxu0
  %2231 = vxpose.xlu0.b32.start [1/16] %v1974, 128
  %2232 = vxpose.xlu0.b32.cont [2/16] 0.0, 128
  %2233 = vxpose.xlu0.b32.cont [3/16] 0.0, 128
  %2234 = vxpose.xlu0.b32.cont [4/16] 0.0, 128
  %2235 = vxpose.xlu0.b32.cont [5/16] 0.0, 128
  %2236 = vxpose.xlu0.b32.cont [6/16] 0.0, 128
  %2237 = vxpose.xlu0.b32.cont [7/16] 0.0, 128
  %2238 = vxpose.xlu0.b32.cont [8/16] 0.0, 128
  %2239 = vxpose.xlu0.b32.cont [9/16] 0.0, 128
  %2240 = vxpose.xlu0.b32.cont [10/16] 0.0, 128
  %2241 = vxpose.xlu0.b32.cont [11/16] 0.0, 128
  %2242 = vxpose.xlu0.b32.cont [12/16] 0.0, 128
  %2243 = vxpose.xlu0.b32.cont [13/16] 0.0, 128
  %2244 = vxpose.xlu0.b32.cont [14/16] 0.0, 128
  %2245 = vxpose.xlu0.b32.cont [15/16] 0.0, 128
  %2246 = vxpose.xlu0.b32.end [16/16] 0.0, 128
  %v2247 = vpop.trf.xlu0
  %v2248 = vpop.trf.xlu0
  %v2249 = vpop.trf.xlu0
  %v2250 = vpop.trf.xlu0
  %v2251 = vpop.trf.xlu0
  %v2252 = vpop.trf.xlu0
  %v2253 = vpop.trf.xlu0
  %v2254 = vpop.trf.xlu0
  %v2255 = vpop.trf.xlu0
  %v2256 = vpop.trf.xlu0
  %v2257 = vpop.trf.xlu0
  %v2258 = vpop.trf.xlu0
  %v2259 = vpop.trf.xlu0
  %v2260 = vpop.trf.xlu0
  %v2261 = vpop.trf.xlu0
  %v2262 = vpop.trf.xlu0
  %v2264 = vsel %vm394, %v2247, 0
  %v2267 = vsel %vm394, %v2248, 0
  %2269 = vmatprep.subr.mxu0 0.0
  %2270 = vmatpush1.msra.mxu0 0.0
  %2271 = vmatprep.subr.mxu0 0.0
  %2272 = vmatpush1.msra.mxu0 0.0
  %2273 = vmatprep.subr.mxu0 0.0
  %2274 = vmatpush1.msra.mxu0 0.0
  %2275 = vmatprep.subr.mxu0 0.0
  %2276 = vmatpush1.msra.mxu0 0.0
  %2277 = vmatprep.subr.mxu0 0.0
  %2278 = vmatpush1.msra.mxu0 0.0
  %2279 = vmatprep.subr.mxu0 0.0
  %2280 = vmatpush1.msra.mxu0 0.0
  %2281 = vmatprep.subr.mxu0 0.0
  %2282 = vmatpush1.msra.mxu0 0.0
  %2283 = vmatprep.subr.mxu0 0.0
  %2284 = vmatpush1.msra.mxu0 0.0
  %2285 = vmatprep.subr.mxu0 0.0
  %2286 = vmatpush1.msra.mxu0 0.0
  %2287 = vmatprep.subr.mxu0 0.0
  %2288 = vmatpush1.msra.mxu0 0.0
  %2289 = vmatprep.subr.mxu0 0.0
  %2290 = vmatpush1.msra.mxu0 0.0
  %2291 = vmatprep.subr.mxu0 0.0
  %2292 = vmatpush1.msra.mxu0 0.0
  %2293 = vmatprep.subr.mxu0 0.0
  %2294 = vmatpush1.msra.mxu0 0.0
  %2295 = vmatprep.subr.mxu0 0.0
  %2296 = vmatpush1.msra.mxu0 0.0
  %2297 = vmatprep.subr.mxu0 0.0
  %2298 = vmatpush1.msra.mxu0 0.0
  %2299 = vmatprep.subr.mxu0 0.0
  %2300 = vmatpush1.msra.mxu0 %v1990
  %2301 = vmatprep.subr.mxu0 0.0
  %2302 = vmatpush2.msra.mxu0 0.0
  %2303 = vmatprep.subr.mxu0 0.0
  %2304 = vmatpush2.msra.mxu0 0.0
  %2305 = vmatprep.subr.mxu0 0.0
  %2306 = vmatpush2.msra.mxu0 0.0
  %2307 = vmatprep.subr.mxu0 0.0
  %2308 = vmatpush2.msra.mxu0 0.0
  %2309 = vmatprep.subr.mxu0 0.0
  %2310 = vmatpush2.msra.mxu0 0.0
  %2311 = vmatprep.subr.mxu0 0.0
  %2312 = vmatpush2.msra.mxu0 0.0
  %2313 = vmatprep.subr.mxu0 0.0
  %2314 = vmatpush2.msra.mxu0 0.0
  %2315 = vmatprep.subr.mxu0 0.0
  %2316 = vmatpush2.msra.mxu0 0.0
  %2317 = vmatprep.subr.mxu0 0.0
  %2318 = vmatpush2.msra.mxu0 0.0
  %2319 = vmatprep.subr.mxu0 0.0
  %2320 = vmatpush2.msra.mxu0 0.0
  %2321 = vmatprep.subr.mxu0 0.0
  %2322 = vmatpush2.msra.mxu0 0.0
  %2323 = vmatprep.subr.mxu0 0.0
  %2324 = vmatpush2.msra.mxu0 0.0
  %2325 = vmatprep.subr.mxu0 0.0
  %2326 = vmatpush2.msra.mxu0 0.0
  %2327 = vmatprep.subr.mxu0 0.0
  %2328 = vmatpush2.msra.mxu0 0.0
  %2329 = vmatprep.subr.mxu0 0.0
  %2330 = vmatpush2.msra.mxu0 0.0
  %2331 = vmatprep.subr.mxu0 0.0
  %2332 = vmatpush2.msra.mxu0 0.0
  %2333 = vmatprep.mubr.f32.mxu0 0.0
  %2334 = vmatmul.mubr.f32.gmra.mxu0 %v2264
  %v2335 = vpop.f32.mrf.mxu0
  %v2336 = vadd.f32 %v25, %v2335
  %v2337 = vpop.f32.mrf.mxu0
  %2338 = vmatprep.mubr.f32.mxu0 0.0
  %2339 = vmatmul.mubr.f32.gmra.mxu0 %v2267
  %v2340 = vpop.f32.mrf.mxu0
  %v2341 = vadd.f32 %v26, %v2340
  %v2342 = vpop.f32.mrf.mxu0
  %2343 = vdwg.mxu0
  %v2344 = vsel %vm59, %v2336, -inf
  %2345 = vmax.xlane.f32.xlu0 %v2344
  %v2346 = vpop.xlane.xlu0 %2345
  %v2347 = vsel %vm59, %v2341, -inf
  %2348 = vmax.xlane.f32.xlu0 %v2347
  %v2349 = vpop.xlane.xlu0 %2348
  %v2350 = vsub.f32 %v2336, %v2346
  %v2351 = vsub.f32 %v2341, %v2349
  %v2352 = vmul.f32 %v2350, 1.442695
  %v2353 = vpow.pop %v2352
  %v2354 = vmul.f32 %v2351, 1.442695
  %v2355 = vpow.pop %v2354
  %v2356 = vsel %vm59, %v2353, 0.0
  %2357 = vadd.xlane.f32.xlu0 %v2356
  %v2358 = vpop.xlane.xlu0 %2357
  %v2359 = vsel %vm59, %v2355, 0.0
  %2360 = vadd.xlane.f32.xlu0 %v2359
  %v2361 = vpop.xlane.xlu0 %2360
  %v2362 = vrcp.pop %v2358
  %v2363 = vrcp.pop %v2361
  %v2364 = vmul.f32 %v2353, %v2362
  %v2365 = vmul.f32 %v2355, %v2363
  %v2367 = vsel %vm59, %v2006, 0
  %v2370 = vsel %vm59, %v2364, 0
  %v2373 = vsel %vm59, %v2365, 0
  %2375 = vmatprep.subr.mxu0 0.0
  %2376 = vmatpush1.xpose.msra.mxu0 0.0
  %2377 = vmatprep.subr.mxu0 0.0
  %2378 = vmatpush1.xpose.msra.mxu0 0.0
  %2379 = vmatprep.subr.mxu0 0.0
  %2380 = vmatpush1.xpose.msra.mxu0 0.0
  %2381 = vmatprep.subr.mxu0 0.0
  %2382 = vmatpush1.xpose.msra.mxu0 0.0
  %2383 = vmatprep.subr.mxu0 0.0
  %2384 = vmatpush1.xpose.msra.mxu0 0.0
  %2385 = vmatprep.subr.mxu0 0.0
  %2386 = vmatpush1.xpose.msra.mxu0 0.0
  %2387 = vmatprep.subr.mxu0 0.0
  %2388 = vmatpush1.xpose.msra.mxu0 0.0
  %2389 = vmatprep.subr.mxu0 0.0
  %2390 = vmatpush1.xpose.msra.mxu0 0.0
  %2391 = vmatprep.subr.mxu0 0.0
  %2392 = vmatpush1.xpose.msra.mxu0 0.0
  %2393 = vmatprep.subr.mxu0 0.0
  %2394 = vmatpush1.xpose.msra.mxu0 0.0
  %2395 = vmatprep.subr.mxu0 0.0
  %2396 = vmatpush1.xpose.msra.mxu0 0.0
  %2397 = vmatprep.subr.mxu0 0.0
  %2398 = vmatpush1.xpose.msra.mxu0 0.0
  %2399 = vmatprep.subr.mxu0 0.0
  %2400 = vmatpush1.xpose.msra.mxu0 0.0
  %2401 = vmatprep.subr.mxu0 0.0
  %2402 = vmatpush1.xpose.msra.mxu0 0.0
  %2403 = vmatprep.subr.mxu0 0.0
  %2404 = vmatpush1.xpose.msra.mxu0 %v2373
  %2405 = vmatprep.subr.mxu0 0.0
  %2406 = vmatpush1.xpose.msra.mxu0 %v2370
  %2407 = vmatprep.subr.mxu0 0.0
  %2408 = vmatpush2.xpose.msra.mxu0 0.0
  %2409 = vmatprep.subr.mxu0 0.0
  %2410 = vmatpush2.xpose.msra.mxu0 0.0
  %2411 = vmatprep.subr.mxu0 0.0
  %2412 = vmatpush2.xpose.msra.mxu0 0.0
  %2413 = vmatprep.subr.mxu0 0.0
  %2414 = vmatpush2.xpose.msra.mxu0 0.0
  %2415 = vmatprep.subr.mxu0 0.0
  %2416 = vmatpush2.xpose.msra.mxu0 0.0
  %2417 = vmatprep.subr.mxu0 0.0
  %2418 = vmatpush2.xpose.msra.mxu0 0.0
  %2419 = vmatprep.subr.mxu0 0.0
  %2420 = vmatpush2.xpose.msra.mxu0 0.0
  %2421 = vmatprep.subr.mxu0 0.0
  %2422 = vmatpush2.xpose.msra.mxu0 0.0
  %2423 = vmatprep.subr.mxu0 0.0
  %2424 = vmatpush2.xpose.msra.mxu0 0.0
  %2425 = vmatprep.subr.mxu0 0.0
  %2426 = vmatpush2.xpose.msra.mxu0 0.0
  %2427 = vmatprep.subr.mxu0 0.0
  %2428 = vmatpush2.xpose.msra.mxu0 0.0
  %2429 = vmatprep.subr.mxu0 0.0
  %2430 = vmatpush2.xpose.msra.mxu0 0.0
  %2431 = vmatprep.subr.mxu0 0.0
  %2432 = vmatpush2.xpose.msra.mxu0 0.0
  %2433 = vmatprep.subr.mxu0 0.0
  %2434 = vmatpush2.xpose.msra.mxu0 0.0
  %2435 = vmatprep.subr.mxu0 0.0
  %2436 = vmatpush2.xpose.msra.mxu0 0.0
  %2437 = vmatprep.subr.mxu0 0.0
  %2438 = vmatpush2.xpose.msra.mxu0 0.0
  %2439 = vmatprep.mubr.f32.mxu0 0.0
  %2440 = vmatmul.mubr.f32.gmra.mxu0 %v2367
  %v2441 = vpop.f32.mrf.mxu0
  %v2442 = vadd.f32 0.0, %v2441
  %v2443 = vpop.f32.mrf.mxu0
  %2444 = vdwg.mxu0
  %2445 = vxpose.xlu0.b32.start [1/16] %v1979, 128
  %2446 = vxpose.xlu0.b32.cont [2/16] 0.0, 128
  %2447 = vxpose.xlu0.b32.cont [3/16] 0.0, 128
  %2448 = vxpose.xlu0.b32.cont [4/16] 0.0, 128
  %2449 = vxpose.xlu0.b32.cont [5/16] 0.0, 128
  %2450 = vxpose.xlu0.b32.cont [6/16] 0.0, 128
  %2451 = vxpose.xlu0.b32.cont [7/16] 0.0, 128
  %2452 = vxpose.xlu0.b32.cont [8/16] 0.0, 128
  %2453 = vxpose.xlu0.b32.cont [9/16] 0.0, 128
  %2454 = vxpose.xlu0.b32.cont [10/16] 0.0, 128
  %2455 = vxpose.xlu0.b32.cont [11/16] 0.0, 128
  %2456 = vxpose.xlu0.b32.cont [12/16] 0.0, 128
  %2457 = vxpose.xlu0.b32.cont [13/16] 0.0, 128
  %2458 = vxpose.xlu0.b32.cont [14/16] 0.0, 128
  %2459 = vxpose.xlu0.b32.cont [15/16] 0.0, 128
  %2460 = vxpose.xlu0.b32.end [16/16] 0.0, 128
  %v2461 = vpop.trf.xlu0
  %v2462 = vpop.trf.xlu0
  %v2463 = vpop.trf.xlu0
  %v2464 = vpop.trf.xlu0
  %v2465 = vpop.trf.xlu0
  %v2466 = vpop.trf.xlu0
  %v2467 = vpop.trf.xlu0
  %v2468 = vpop.trf.xlu0
  %v2469 = vpop.trf.xlu0
  %v2470 = vpop.trf.xlu0
  %v2471 = vpop.trf.xlu0
  %v2472 = vpop.trf.xlu0
  %v2473 = vpop.trf.xlu0
  %v2474 = vpop.trf.xlu0
  %v2475 = vpop.trf.xlu0
  %v2476 = vpop.trf.xlu0
  %v2478 = vsel %vm394, %v2461, 0
  %v2481 = vsel %vm394, %v2462, 0
  %2483 = vmatprep.subr.mxu0 0.0
  %2484 = vmatpush1.msra.mxu0 0.0
  %2485 = vmatprep.subr.mxu0 0.0
  %2486 = vmatpush1.msra.mxu0 0.0
  %2487 = vmatprep.subr.mxu0 0.0
  %2488 = vmatpush1.msra.mxu0 0.0
  %2489 = vmatprep.subr.mxu0 0.0
  %2490 = vmatpush1.msra.mxu0 0.0
  %2491 = vmatprep.subr.mxu0 0.0
  %2492 = vmatpush1.msra.mxu0 0.0
  %2493 = vmatprep.subr.mxu0 0.0
  %2494 = vmatpush1.msra.mxu0 0.0
  %2495 = vmatprep.subr.mxu0 0.0
  %2496 = vmatpush1.msra.mxu0 0.0
  %2497 = vmatprep.subr.mxu0 0.0
  %2498 = vmatpush1.msra.mxu0 0.0
  %2499 = vmatprep.subr.mxu0 0.0
  %2500 = vmatpush1.msra.mxu0 0.0
  %2501 = vmatprep.subr.mxu0 0.0
  %2502 = vmatpush1.msra.mxu0 0.0
  %2503 = vmatprep.subr.mxu0 0.0
  %2504 = vmatpush1.msra.mxu0 0.0
  %2505 = vmatprep.subr.mxu0 0.0
  %2506 = vmatpush1.msra.mxu0 0.0
  %2507 = vmatprep.subr.mxu0 0.0
  %2508 = vmatpush1.msra.mxu0 0.0
  %2509 = vmatprep.subr.mxu0 0.0
  %2510 = vmatpush1.msra.mxu0 0.0
  %2511 = vmatprep.subr.mxu0 0.0
  %2512 = vmatpush1.msra.mxu0 0.0
  %2513 = vmatprep.subr.mxu0 0.0
  %2514 = vmatpush1.msra.mxu0 %v1995
  %2515 = vmatprep.subr.mxu0 0.0
  %2516 = vmatpush2.msra.mxu0 0.0
  %2517 = vmatprep.subr.mxu0 0.0
  %2518 = vmatpush2.msra.mxu0 0.0
  %2519 = vmatprep.subr.mxu0 0.0
  %2520 = vmatpush2.msra.mxu0 0.0
  %2521 = vmatprep.subr.mxu0 0.0
  %2522 = vmatpush2.msra.mxu0 0.0
  %2523 = vmatprep.subr.mxu0 0.0
  %2524 = vmatpush2.msra.mxu0 0.0
  %2525 = vmatprep.subr.mxu0 0.0
  %2526 = vmatpush2.msra.mxu0 0.0
  %2527 = vmatprep.subr.mxu0 0.0
  %2528 = vmatpush2.msra.mxu0 0.0
  %2529 = vmatprep.subr.mxu0 0.0
  %2530 = vmatpush2.msra.mxu0 0.0
  %2531 = vmatprep.subr.mxu0 0.0
  %2532 = vmatpush2.msra.mxu0 0.0
  %2533 = vmatprep.subr.mxu0 0.0
  %2534 = vmatpush2.msra.mxu0 0.0
  %2535 = vmatprep.subr.mxu0 0.0
  %2536 = vmatpush2.msra.mxu0 0.0
  %2537 = vmatprep.subr.mxu0 0.0
  %2538 = vmatpush2.msra.mxu0 0.0
  %2539 = vmatprep.subr.mxu0 0.0
  %2540 = vmatpush2.msra.mxu0 0.0
  %2541 = vmatprep.subr.mxu0 0.0
  %2542 = vmatpush2.msra.mxu0 0.0
  %2543 = vmatprep.subr.mxu0 0.0
  %2544 = vmatpush2.msra.mxu0 0.0
  %2545 = vmatprep.subr.mxu0 0.0
  %2546 = vmatpush2.msra.mxu0 0.0
  %2547 = vmatprep.mubr.f32.mxu0 0.0
  %2548 = vmatmul.mubr.f32.gmra.mxu0 %v2478
  %v2549 = vpop.f32.mrf.mxu0
  %v2550 = vadd.f32 %v25, %v2549
  %v2551 = vpop.f32.mrf.mxu0
  %2552 = vmatprep.mubr.f32.mxu0 0.0
  %2553 = vmatmul.mubr.f32.gmra.mxu0 %v2481
  %v2554 = vpop.f32.mrf.mxu0
  %v2555 = vadd.f32 %v26, %v2554
  %v2556 = vpop.f32.mrf.mxu0
  %2557 = vdwg.mxu0
  %v2558 = vsel %vm59, %v2550, -inf
  %2559 = vmax.xlane.f32.xlu0 %v2558
  %v2560 = vpop.xlane.xlu0 %2559
  %v2561 = vsel %vm59, %v2555, -inf
  %2562 = vmax.xlane.f32.xlu0 %v2561
  %v2563 = vpop.xlane.xlu0 %2562
  %v2564 = vsub.f32 %v2550, %v2560
  %v2565 = vsub.f32 %v2555, %v2563
  %v2566 = vmul.f32 %v2564, 1.442695
  %v2567 = vpow.pop %v2566
  %v2568 = vmul.f32 %v2565, 1.442695
  %v2569 = vpow.pop %v2568
  %v2570 = vsel %vm59, %v2567, 0.0
  %2571 = vadd.xlane.f32.xlu0 %v2570
  %v2572 = vpop.xlane.xlu0 %2571
  %v2573 = vsel %vm59, %v2569, 0.0
  %2574 = vadd.xlane.f32.xlu0 %v2573
  %v2575 = vpop.xlane.xlu0 %2574
  %v2576 = vrcp.pop %v2572
  %v2577 = vrcp.pop %v2575
  %v2578 = vmul.f32 %v2567, %v2576
  %v2579 = vmul.f32 %v2569, %v2577
  %v2581 = vsel %vm59, %v2011, 0
  %v2584 = vsel %vm59, %v2578, 0
  %v2587 = vsel %vm59, %v2579, 0
  %2589 = vmatprep.subr.mxu0 0.0
  %2590 = vmatpush1.xpose.msra.mxu0 0.0
  %2591 = vmatprep.subr.mxu0 0.0
  %2592 = vmatpush1.xpose.msra.mxu0 0.0
  %2593 = vmatprep.subr.mxu0 0.0
  %2594 = vmatpush1.xpose.msra.mxu0 0.0
  %2595 = vmatprep.subr.mxu0 0.0
  %2596 = vmatpush1.xpose.msra.mxu0 0.0
  %2597 = vmatprep.subr.mxu0 0.0
  %2598 = vmatpush1.xpose.msra.mxu0 0.0
  %2599 = vmatprep.subr.mxu0 0.0
  %2600 = vmatpush1.xpose.msra.mxu0 0.0
  %2601 = vmatprep.subr.mxu0 0.0
  %2602 = vmatpush1.xpose.msra.mxu0 0.0
  %2603 = vmatprep.subr.mxu0 0.0
  %2604 = vmatpush1.xpose.msra.mxu0 0.0
  %2605 = vmatprep.subr.mxu0 0.0
  %2606 = vmatpush1.xpose.msra.mxu0 0.0
  %2607 = vmatprep.subr.mxu0 0.0
  %2608 = vmatpush1.xpose.msra.mxu0 0.0
  %2609 = vmatprep.subr.mxu0 0.0
  %2610 = vmatpush1.xpose.msra.mxu0 0.0
  %2611 = vmatprep.subr.mxu0 0.0
  %2612 = vmatpush1.xpose.msra.mxu0 0.0
  %2613 = vmatprep.subr.mxu0 0.0
  %2614 = vmatpush1.xpose.msra.mxu0 0.0
  %2615 = vmatprep.subr.mxu0 0.0
  %2616 = vmatpush1.xpose.msra.mxu0 0.0
  %2617 = vmatprep.subr.mxu0 0.0
  %2618 = vmatpush1.xpose.msra.mxu0 %v2587
  %2619 = vmatprep.subr.mxu0 0.0
  %2620 = vmatpush1.xpose.msra.mxu0 %v2584
  %2621 = vmatprep.subr.mxu0 0.0
  %2622 = vmatpush2.xpose.msra.mxu0 0.0
  %2623 = vmatprep.subr.mxu0 0.0
  %2624 = vmatpush2.xpose.msra.mxu0 0.0
  %2625 = vmatprep.subr.mxu0 0.0
  %2626 = vmatpush2.xpose.msra.mxu0 0.0
  %2627 = vmatprep.subr.mxu0 0.0
  %2628 = vmatpush2.xpose.msra.mxu0 0.0
  %2629 = vmatprep.subr.mxu0 0.0
  %2630 = vmatpush2.xpose.msra.mxu0 0.0
  %2631 = vmatprep.subr.mxu0 0.0
  %2632 = vmatpush2.xpose.msra.mxu0 0.0
  %2633 = vmatprep.subr.mxu0 0.0
  %2634 = vmatpush2.xpose.msra.mxu0 0.0
  %2635 = vmatprep.subr.mxu0 0.0
  %2636 = vmatpush2.xpose.msra.mxu0 0.0
  %2637 = vmatprep.subr.mxu0 0.0
  %2638 = vmatpush2.xpose.msra.mxu0 0.0
  %2639 = vmatprep.subr.mxu0 0.0
  %2640 = vmatpush2.xpose.msra.mxu0 0.0
  %2641 = vmatprep.subr.mxu0 0.0
  %2642 = vmatpush2.xpose.msra.mxu0 0.0
  %2643 = vmatprep.subr.mxu0 0.0
  %2644 = vmatpush2.xpose.msra.mxu0 0.0
  %2645 = vmatprep.subr.mxu0 0.0
  %2646 = vmatpush2.xpose.msra.mxu0 0.0
  %2647 = vmatprep.subr.mxu0 0.0
  %2648 = vmatpush2.xpose.msra.mxu0 0.0
  %2649 = vmatprep.subr.mxu0 0.0
  %2650 = vmatpush2.xpose.msra.mxu0 0.0
  %2651 = vmatprep.subr.mxu0 0.0
  %2652 = vmatpush2.xpose.msra.mxu0 0.0
  %2653 = vmatprep.mubr.f32.mxu0 0.0
  %2654 = vmatmul.mubr.f32.gmra.mxu0 %v2581
  %v2655 = vpop.f32.mrf.mxu0
  %v2656 = vadd.f32 0.0, %v2655
  %v2657 = vpop.f32.mrf.mxu0
  %2658 = vdwg.mxu0
  %2659 = vxpose.xlu0.b32.start [1/16] %v1982, 128
  %2660 = vxpose.xlu0.b32.cont [2/16] 0.0, 128
  %2661 = vxpose.xlu0.b32.cont [3/16] 0.0, 128
  %2662 = vxpose.xlu0.b32.cont [4/16] 0.0, 128
  %2663 = vxpose.xlu0.b32.cont [5/16] 0.0, 128
  %2664 = vxpose.xlu0.b32.cont [6/16] 0.0, 128
  %2665 = vxpose.xlu0.b32.cont [7/16] 0.0, 128
  %2666 = vxpose.xlu0.b32.cont [8/16] 0.0, 128
  %2667 = vxpose.xlu0.b32.cont [9/16] 0.0, 128
  %2668 = vxpose.xlu0.b32.cont [10/16] 0.0, 128
  %2669 = vxpose.xlu0.b32.cont [11/16] 0.0, 128
  %2670 = vxpose.xlu0.b32.cont [12/16] 0.0, 128
  %2671 = vxpose.xlu0.b32.cont [13/16] 0.0, 128
  %2672 = vxpose.xlu0.b32.cont [14/16] 0.0, 128
  %2673 = vxpose.xlu0.b32.cont [15/16] 0.0, 128
  %2674 = vxpose.xlu0.b32.end [16/16] 0.0, 128
  %v2675 = vpop.trf.xlu0
  %v2676 = vpop.trf.xlu0
  %v2677 = vpop.trf.xlu0
  %v2678 = vpop.trf.xlu0
  %v2679 = vpop.trf.xlu0
  %v2680 = vpop.trf.xlu0
  %v2681 = vpop.trf.xlu0
  %v2682 = vpop.trf.xlu0
  %v2683 = vpop.trf.xlu0
  %v2684 = vpop.trf.xlu0
  %v2685 = vpop.trf.xlu0
  %v2686 = vpop.trf.xlu0
  %v2687 = vpop.trf.xlu0
  %v2688 = vpop.trf.xlu0
  %v2689 = vpop.trf.xlu0
  %v2690 = vpop.trf.xlu0
  %v2692 = vsel %vm394, %v2675, 0
  %v2695 = vsel %vm394, %v2676, 0
  %2697 = vmatprep.subr.mxu0 0.0
  %2698 = vmatpush1.msra.mxu0 0.0
  %2699 = vmatprep.subr.mxu0 0.0
  %2700 = vmatpush1.msra.mxu0 0.0
  %2701 = vmatprep.subr.mxu0 0.0
  %2702 = vmatpush1.msra.mxu0 0.0
  %2703 = vmatprep.subr.mxu0 0.0
  %2704 = vmatpush1.msra.mxu0 0.0
  %2705 = vmatprep.subr.mxu0 0.0
  %2706 = vmatpush1.msra.mxu0 0.0
  %2707 = vmatprep.subr.mxu0 0.0
  %2708 = vmatpush1.msra.mxu0 0.0
  %2709 = vmatprep.subr.mxu0 0.0
  %2710 = vmatpush1.msra.mxu0 0.0
  %2711 = vmatprep.subr.mxu0 0.0
  %2712 = vmatpush1.msra.mxu0 0.0
  %2713 = vmatprep.subr.mxu0 0.0
  %2714 = vmatpush1.msra.mxu0 0.0
  %2715 = vmatprep.subr.mxu0 0.0
  %2716 = vmatpush1.msra.mxu0 0.0
  %2717 = vmatprep.subr.mxu0 0.0
  %2718 = vmatpush1.msra.mxu0 0.0
  %2719 = vmatprep.subr.mxu0 0.0
  %2720 = vmatpush1.msra.mxu0 0.0
  %2721 = vmatprep.subr.mxu0 0.0
  %2722 = vmatpush1.msra.mxu0 0.0
  %2723 = vmatprep.subr.mxu0 0.0
  %2724 = vmatpush1.msra.mxu0 0.0
  %2725 = vmatprep.subr.mxu0 0.0
  %2726 = vmatpush1.msra.mxu0 0.0
  %2727 = vmatprep.subr.mxu0 0.0
  %2728 = vmatpush1.msra.mxu0 %v1998
  %2729 = vmatprep.subr.mxu0 0.0
  %2730 = vmatpush2.msra.mxu0 0.0
  %2731 = vmatprep.subr.mxu0 0.0
  %2732 = vmatpush2.msra.mxu0 0.0
  %2733 = vmatprep.subr.mxu0 0.0
  %2734 = vmatpush2.msra.mxu0 0.0
  %2735 = vmatprep.subr.mxu0 0.0
  %2736 = vmatpush2.msra.mxu0 0.0
  %2737 = vmatprep.subr.mxu0 0.0
  %2738 = vmatpush2.msra.mxu0 0.0
  %2739 = vmatprep.subr.mxu0 0.0
  %2740 = vmatpush2.msra.mxu0 0.0
  %2741 = vmatprep.subr.mxu0 0.0
  %2742 = vmatpush2.msra.mxu0 0.0
  %2743 = vmatprep.subr.mxu0 0.0
  %2744 = vmatpush2.msra.mxu0 0.0
  %2745 = vmatprep.subr.mxu0 0.0
  %2746 = vmatpush2.msra.mxu0 0.0
  %2747 = vmatprep.subr.mxu0 0.0
  %2748 = vmatpush2.msra.mxu0 0.0
  %2749 = vmatprep.subr.mxu0 0.0
  %2750 = vmatpush2.msra.mxu0 0.0
  %2751 = vmatprep.subr.mxu0 0.0
  %2752 = vmatpush2.msra.mxu0 0.0
  %2753 = vmatprep.subr.mxu0 0.0
  %2754 = vmatpush2.msra.mxu0 0.0
  %2755 = vmatprep.subr.mxu0 0.0
  %2756 = vmatpush2.msra.mxu0 0.0
  %2757 = vmatprep.subr.mxu0 0.0
  %2758 = vmatpush2.msra.mxu0 0.0
  %2759 = vmatprep.subr.mxu0 0.0
  %2760 = vmatpush2.msra.mxu0 0.0
  %2761 = vmatprep.mubr.f32.mxu0 0.0
  %2762 = vmatmul.mubr.f32.gmra.mxu0 %v2692
  %v2763 = vpop.f32.mrf.mxu0
  %v2764 = vadd.f32 %v25, %v2763
  %v2765 = vpop.f32.mrf.mxu0
  %2766 = vmatprep.mubr.f32.mxu0 0.0
  %2767 = vmatmul.mubr.f32.gmra.mxu0 %v2695
  %v2768 = vpop.f32.mrf.mxu0
  %v2769 = vadd.f32 %v26, %v2768
  %v2770 = vpop.f32.mrf.mxu0
  %2771 = vdwg.mxu0
  %v2772 = vsel %vm59, %v2764, -inf
  %2773 = vmax.xlane.f32.xlu0 %v2772
  %v2774 = vpop.xlane.xlu0 %2773
  %v2775 = vsel %vm59, %v2769, -inf
  %2776 = vmax.xlane.f32.xlu0 %v2775
  %v2777 = vpop.xlane.xlu0 %2776
  %v2778 = vsub.f32 %v2764, %v2774
  %v2779 = vsub.f32 %v2769, %v2777
  %v2780 = vmul.f32 %v2778, 1.442695
  %v2781 = vpow.pop %v2780
  %v2782 = vmul.f32 %v2779, 1.442695
  %v2783 = vpow.pop %v2782
  %v2784 = vsel %vm59, %v2781, 0.0
  %2785 = vadd.xlane.f32.xlu0 %v2784
  %v2786 = vpop.xlane.xlu0 %2785
  %v2787 = vsel %vm59, %v2783, 0.0
  %2788 = vadd.xlane.f32.xlu0 %v2787
  %v2789 = vpop.xlane.xlu0 %2788
  %v2790 = vrcp.pop %v2786
  %v2791 = vrcp.pop %v2789
  %v2792 = vmul.f32 %v2781, %v2790
  %v2793 = vmul.f32 %v2783, %v2791
  %v2795 = vsel %vm59, %v2014, 0
  %v2798 = vsel %vm59, %v2792, 0
  %v2801 = vsel %vm59, %v2793, 0
  %2803 = vmatprep.subr.mxu0 0.0
  %2804 = vmatpush1.xpose.msra.mxu0 0.0
  %2805 = vmatprep.subr.mxu0 0.0
  %2806 = vmatpush1.xpose.msra.mxu0 0.0
  %2807 = vmatprep.subr.mxu0 0.0
  %2808 = vmatpush1.xpose.msra.mxu0 0.0
  %2809 = vmatprep.subr.mxu0 0.0
  %2810 = vmatpush1.xpose.msra.mxu0 0.0
  %2811 = vmatprep.subr.mxu0 0.0
  %2812 = vmatpush1.xpose.msra.mxu0 0.0
  %2813 = vmatprep.subr.mxu0 0.0
  %2814 = vmatpush1.xpose.msra.mxu0 0.0
  %2815 = vmatprep.subr.mxu0 0.0
  %2816 = vmatpush1.xpose.msra.mxu0 0.0
  %2817 = vmatprep.subr.mxu0 0.0
  %2818 = vmatpush1.xpose.msra.mxu0 0.0
  %2819 = vmatprep.subr.mxu0 0.0
  %2820 = vmatpush1.xpose.msra.mxu0 0.0
  %2821 = vmatprep.subr.mxu0 0.0
  %2822 = vmatpush1.xpose.msra.mxu0 0.0
  %2823 = vmatprep.subr.mxu0 0.0
  %2824 = vmatpush1.xpose.msra.mxu0 0.0
  %2825 = vmatprep.subr.mxu0 0.0
  %2826 = vmatpush1.xpose.msra.mxu0 0.0
  %2827 = vmatprep.subr.mxu0 0.0
  %2828 = vmatpush1.xpose.msra.mxu0 0.0
  %2829 = vmatprep.subr.mxu0 0.0
  %2830 = vmatpush1.xpose.msra.mxu0 0.0
  %2831 = vmatprep.subr.mxu0 0.0
  %2832 = vmatpush1.xpose.msra.mxu0 %v2801
  %2833 = vmatprep.subr.mxu0 0.0
  %2834 = vmatpush1.xpose.msra.mxu0 %v2798
  %2835 = vmatprep.subr.mxu0 0.0
  %2836 = vmatpush2.xpose.msra.mxu0 0.0
  %2837 = vmatprep.subr.mxu0 0.0
  %2838 = vmatpush2.xpose.msra.mxu0 0.0
  %2839 = vmatprep.subr.mxu0 0.0
  %2840 = vmatpush2.xpose.msra.mxu0 0.0
  %2841 = vmatprep.subr.mxu0 0.0
  %2842 = vmatpush2.xpose.msra.mxu0 0.0
  %2843 = vmatprep.subr.mxu0 0.0
  %2844 = vmatpush2.xpose.msra.mxu0 0.0
  %2845 = vmatprep.subr.mxu0 0.0
  %2846 = vmatpush2.xpose.msra.mxu0 0.0
  %2847 = vmatprep.subr.mxu0 0.0
  %2848 = vmatpush2.xpose.msra.mxu0 0.0
  %2849 = vmatprep.subr.mxu0 0.0
  %2850 = vmatpush2.xpose.msra.mxu0 0.0
  %2851 = vmatprep.subr.mxu0 0.0
  %2852 = vmatpush2.xpose.msra.mxu0 0.0
  %2853 = vmatprep.subr.mxu0 0.0
  %2854 = vmatpush2.xpose.msra.mxu0 0.0
  %2855 = vmatprep.subr.mxu0 0.0
  %2856 = vmatpush2.xpose.msra.mxu0 0.0
  %2857 = vmatprep.subr.mxu0 0.0
  %2858 = vmatpush2.xpose.msra.mxu0 0.0
  %2859 = vmatprep.subr.mxu0 0.0
  %2860 = vmatpush2.xpose.msra.mxu0 0.0
  %2861 = vmatprep.subr.mxu0 0.0
  %2862 = vmatpush2.xpose.msra.mxu0 0.0
  %2863 = vmatprep.subr.mxu0 0.0
  %2864 = vmatpush2.xpose.msra.mxu0 0.0
  %2865 = vmatprep.subr.mxu0 0.0
  %2866 = vmatpush2.xpose.msra.mxu0 0.0
  %2867 = vmatprep.mubr.f32.mxu0 0.0
  %2868 = vmatmul.mubr.f32.gmra.mxu0 %v2795
  %v2869 = vpop.f32.mrf.mxu0
  %v2870 = vadd.f32 0.0, %v2869
  %v2871 = vpop.f32.mrf.mxu0
  %2872 = vdwg.mxu0
  %v2873 = vpack.c.bf16 %v2442, %v2228
  %v2874 = vpack.c.bf16 %v2870, %v2656
  %v2879 = vunpack.c.l.b16 %v1697
  %v2880 = vunpack.c.l.b16 %v1698
  %v2881 = vunpack.c.l.b16 %v1699
  %v2882 = vunpack.c.l.b16 %v1700
  %v2883 = vpack.c.b16 %v2880, %v2879
  %v2884 = vpack.c.b16 %v2882, %v2881
  %v2886 = vsel %vm262, %v2883, 0
  %v2889 = vsel %vm262, %v2884, 0
  %2891 = vmatprep.subr.bf16.mxu0 0
  %2892 = vmatpush1.bf16.msra.mxu0 0
  %2893 = vmatprep.subr.bf16.mxu0 0
  %2894 = vmatpush1.bf16.msra.mxu0 0
  %2895 = vmatprep.subr.bf16.mxu0 0
  %2896 = vmatpush1.bf16.msra.mxu0 0
  %2897 = vmatprep.subr.bf16.mxu0 0
  %2898 = vmatpush1.bf16.msra.mxu0 0
  %2899 = vmatprep.subr.bf16.mxu0 0
  %2900 = vmatpush1.bf16.msra.mxu0 0
  %2901 = vmatprep.subr.bf16.mxu0 0
  %2902 = vmatpush1.bf16.msra.mxu0 0
  %2903 = vmatprep.subr.bf16.mxu0 0
  %2904 = vmatpush1.bf16.msra.mxu0 %v2874
  %2905 = vmatprep.subr.bf16.mxu0 0
  %2906 = vmatpush1.bf16.msra.mxu0 %v2873
  %2907 = vmatprep.subr.bf16.mxu0 0
  %2908 = vmatpush2.bf16.msra.mxu0 0
  %2909 = vmatprep.subr.bf16.mxu0 0
  %2910 = vmatpush2.bf16.msra.mxu0 0
  %2911 = vmatprep.subr.bf16.mxu0 0
  %2912 = vmatpush2.bf16.msra.mxu0 0
  %2913 = vmatprep.subr.bf16.mxu0 0
  %2914 = vmatpush2.bf16.msra.mxu0 0
  %2915 = vmatprep.subr.bf16.mxu0 0
  %2916 = vmatpush2.bf16.msra.mxu0 0
  %2917 = vmatprep.subr.bf16.mxu0 0
  %2918 = vmatpush2.bf16.msra.mxu0 0
  %2919 = vmatprep.subr.bf16.mxu0 0
  %2920 = vmatpush2.bf16.msra.mxu0 0
  %2921 = vmatprep.subr.bf16.mxu0 0
  %2922 = vmatpush2.bf16.msra.mxu0 0
  %2923 = vmatprep.mubr.bf16.mxu0 0
  %2924 = vmatmul.mubr.bf16.gmra.mxu0 %v2886
  %v2925 = vpop.f32.mrf.mxu0
  %v2926 = vadd.f32 0.0, %v2925
  %v2927 = vpop.f32.mrf.mxu0
  %v2928 = vpop.f32.mrf.mxu0
  %v2929 = vadd.f32 0.0, %v2928
  %v2930 = vpop.f32.mrf.mxu0
  %2931 = vmatprep.mubr.bf16.mxu0 0
  %2932 = vmatmul.mubr.bf16.gmra.mxu0 %v2889
  %v2933 = vpop.f32.mrf.mxu0
  %v2934 = vadd.f32 0.0, %v2933
  %v2935 = vpop.f32.mrf.mxu0
  %v2936 = vpop.f32.mrf.mxu0
  %v2937 = vadd.f32 0.0, %v2936
  %v2938 = vpop.f32.mrf.mxu0
  %2939 = vdwg.mxu0
  %v2940 = vadd.f32 %v1680, %v2926
  %v2941 = vadd.f32 %v1681, %v2929
  %v2942 = vadd.f32 %v1682, %v2934
  %v2943 = vadd.f32 %v1683, %v2937
  %v2944 = vld [vmem:[%s4 + $0x1c0] sm:$0xff]
  %v2945 = vld [vmem:[%s4 + $0x1c8] sm:$0xff]
  %v2946 = vld [vmem:[%s4 + $0x1d0] sm:$0xff]
  %v2947 = vld [vmem:[%s4 + $0x1d8] sm:$0xff]
  %2949 = vset.pattern.permute.xlu0 0
  %2950 = vperm.xlu0 %2949, %v2944
  %v2951 = vpop.permute.xlu0 %2950
  %2954 = vset.pattern.permute.xlu0 0
  %2955 = vperm.xlu0 %2954, %v2945
  %v2956 = vpop.permute.xlu0 %2955
  %2959 = vset.pattern.permute.xlu0 0
  %2960 = vperm.xlu0 %2959, %v2946
  %v2961 = vpop.permute.xlu0 %2960
  %2964 = vset.pattern.permute.xlu0 0
  %2965 = vperm.xlu0 %2964, %v2947
  %v2966 = vpop.permute.xlu0 %2965
  %v2968 = vadd.f32 %v2940, %v2951
  %v2969 = vadd.f32 %v2941, %v2956
  %v2970 = vadd.f32 %v2942, %v2961
  %v2971 = vadd.f32 %v2943, %v2966
  %v2972 = vld [vmem:[%s4 + $0x280] sm:$0xff]
  %v2973 = vld [vmem:[%s4 + $0x288] sm:$0xff]
  %v2974 = vld [vmem:[%s4 + $0x290] sm:$0xff]
  %v2975 = vld [vmem:[%s4 + $0x298] sm:$0xff]
  %v2976 = vld [vmem:[%s4 + $0x2a0] sm:$0xff]
  %v2977 = vld [vmem:[%s4 + $0x2a8] sm:$0xff]
  %v2978 = vld [vmem:[%s4 + $0x2b0] sm:$0xff]
  %v2979 = vld [vmem:[%s4 + $0x2b8] sm:$0xff]
  %v2980 = vsel %vm59, %v2968, 0.0
  %v2981 = vsel %vm59, %v2969, 0.0
  %v2982 = vadd.f32 %v2980, %v2981
  %v2983 = vsel %vm59, %v2970, 0.0
  %v2984 = vadd.f32 %v2982, %v2983
  %v2985 = vsel %vm59, %v2971, 0.0
  %v2986 = vadd.f32 %v2984, %v2985
  %v2987 = vrot.slane %v2986, 4
  %v2988 = vadd.f32 %v2986, %v2987
  %v2989 = vrot.slane %v2988, 2
  %v2990 = vadd.f32 %v2988, %v2989
  %v2991 = vrot.slane %v2990, 1
  %v2992 = vadd.f32 %v2990, %v2991
  %v2993 = vmul.f32 %v2992, %v73
  %v2994 = vsub.f32 %v2968, %v2993
  %v2995 = vsub.f32 %v2969, %v2993
  %v2996 = vsub.f32 %v2970, %v2993
  %v2997 = vsub.f32 %v2971, %v2993
  %v2998 = vmul.f32 %v2994, %v2994
  %v2999 = vmul.f32 %v2995, %v2995
  %v3000 = vmul.f32 %v2996, %v2996
  %v3001 = vmul.f32 %v2997, %v2997
  %v3002 = vsel %vm59, %v2998, 0.0
  %v3003 = vsel %vm59, %v2999, 0.0
  %v3004 = vadd.f32 %v3002, %v3003
  %v3005 = vsel %vm59, %v3000, 0.0
  %v3006 = vadd.f32 %v3004, %v3005
  %v3007 = vsel %vm59, %v3001, 0.0
  %v3008 = vadd.f32 %v3006, %v3007
  %v3009 = vrot.slane %v3008, 4
  %v3010 = vadd.f32 %v3008, %v3009
  %v3011 = vrot.slane %v3010, 2
  %v3012 = vadd.f32 %v3010, %v3011
  %v3013 = vrot.slane %v3012, 1
  %v3014 = vadd.f32 %v3012, %v3013
  %v3015 = vmul.f32 %v3014, 0.032258064
  %v3016 = vrsqrt.pop %v3015
  %v3017 = vmul.f32 %v3015, %v3016
  %vm3018 = vcmp.eq.f32.partialorder %v3015, inf
  %v3019 = vsel %vm3018, %v3015, %v3017
  %vm3020 = vcmp.eq.f32.partialorder %v3015, 0.0
  %v3021 = vand.u32 %v3015, 2147483648
  %v3022 = vsel %vm3020, %v3021, %v3019
  %v3023 = vadd.f32 %v3022, 1e-06
  %v3024 = vrcp.pop %v3023
  %3026 = vset.pattern.permute.xlu0 0
  %3027 = vperm.xlu0 %3026, %v2972
  %v3028 = vpop.permute.xlu0 %3027
  %3031 = vset.pattern.permute.xlu0 0
  %3032 = vperm.xlu0 %3031, %v2973
  %v3033 = vpop.permute.xlu0 %3032
  %3036 = vset.pattern.permute.xlu0 0
  %3037 = vperm.xlu0 %3036, %v2974
  %v3038 = vpop.permute.xlu0 %3037
  %3041 = vset.pattern.permute.xlu0 0
  %3042 = vperm.xlu0 %3041, %v2975
  %v3043 = vpop.permute.xlu0 %3042
  %v3045 = vmul.f32 %v3028, %v2994
  %v3046 = vmul.f32 %v3033, %v2995
  %v3047 = vmul.f32 %v3038, %v2996
  %v3048 = vmul.f32 %v3043, %v2997
  %v3049 = vmul.f32 %v3045, %v3024
  %v3050 = vmul.f32 %v3046, %v3024
  %v3051 = vmul.f32 %v3047, %v3024
  %v3052 = vmul.f32 %v3048, %v3024
  %3054 = vset.pattern.permute.xlu0 0
  %3055 = vperm.xlu0 %3054, %v2976
  %v3056 = vpop.permute.xlu0 %3055
  %3059 = vset.pattern.permute.xlu0 0
  %3060 = vperm.xlu0 %3059, %v2977
  %v3061 = vpop.permute.xlu0 %3060
  %3064 = vset.pattern.permute.xlu0 0
  %3065 = vperm.xlu0 %3064, %v2978
  %v3066 = vpop.permute.xlu0 %3065
  %3069 = vset.pattern.permute.xlu0 0
  %3070 = vperm.xlu0 %3069, %v2979
  %v3071 = vpop.permute.xlu0 %3070
  %v3073 = vadd.f32 %v3049, %v3056
  %v3074 = vadd.f32 %v3050, %v3061
  %v3075 = vadd.f32 %v3051, %v3066
  %v3076 = vadd.f32 %v3052, %v3071
  %v3077 = vpack.c.bf16 %v3074, %v3073
  %v3078 = vpack.c.bf16 %v3076, %v3075
  %v3079 = vld [vmem:[%s4 + $0x1e0] sm:$0xff]
  %v3080 = vld [vmem:[%s4 + $0x1e8] sm:$0xff]
  %v3081 = vld [vmem:[%s4 + $0x1f0] sm:$0xff]
  %v3082 = vld [vmem:[%s4 + $0x1f8] sm:$0xff]
  %v3083 = vld [vmem:[%s4 + $0x200] sm:$0xff]
  %v3084 = vld [vmem:[%s4 + $0x208] sm:$0xff]
  %v3085 = vld [vmem:[%s4 + $0x210] sm:$0xff]
  %v3086 = vld [vmem:[%s4 + $0x218] sm:$0xff]
  %3088 = vset.pattern.permute.xlu0 0
  %3089 = vperm.xlu0 %3088, %v3079
  %v3090 = vpop.permute.xlu0 %3089
  %3093 = vset.pattern.permute.xlu0 0
  %3094 = vperm.xlu0 %3093, %v3080
  %v3095 = vpop.permute.xlu0 %3094
  %3098 = vset.pattern.permute.xlu0 0
  %3099 = vperm.xlu0 %3098, %v3081
  %v3100 = vpop.permute.xlu0 %3099
  %3103 = vset.pattern.permute.xlu0 0
  %3104 = vperm.xlu0 %3103, %v3082
  %v3105 = vpop.permute.xlu0 %3104
  %3108 = vset.pattern.permute.xlu0 0
  %3109 = vperm.xlu0 %3108, %v3083
  %v3110 = vpop.permute.xlu0 %3109
  %3113 = vset.pattern.permute.xlu0 0
  %3114 = vperm.xlu0 %3113, %v3084
  %v3115 = vpop.permute.xlu0 %3114
  %3118 = vset.pattern.permute.xlu0 0
  %3119 = vperm.xlu0 %3118, %v3085
  %v3120 = vpop.permute.xlu0 %3119
  %3123 = vset.pattern.permute.xlu0 0
  %3124 = vperm.xlu0 %3123, %v3086
  %v3125 = vpop.permute.xlu0 %3124
  %v3135 = vunpack.c.l.b16 %v1701
  %v3136 = vunpack.c.l.b16 %v1702
  %v3137 = vunpack.c.l.b16 %v1703
  %v3138 = vunpack.c.l.b16 %v1704
  %v3139 = vunpack.c.l.b16 %v1705
  %v3140 = vunpack.c.l.b16 %v1706
  %v3141 = vunpack.c.l.b16 %v1707
  %v3142 = vunpack.c.l.b16 %v1708
  %v3143 = vpack.c.b16 %v3136, %v3135
  %v3144 = vpack.c.b16 %v3138, %v3137
  %v3145 = vpack.c.b16 %v3140, %v3139
  %v3146 = vpack.c.b16 %v3142, %v3141
  %v3148 = vsel %vm262, %v3143, 0
  %v3151 = vsel %vm262, %v3144, 0
  %v3154 = vsel %vm262, %v3145, 0
  %v3157 = vsel %vm262, %v3146, 0
  %3159 = vmatprep.subr.bf16.mxu0 0
  %3160 = vmatpush1.bf16.msra.mxu0 0
  %3161 = vmatprep.subr.bf16.mxu0 0
  %3162 = vmatpush1.bf16.msra.mxu0 0
  %3163 = vmatprep.subr.bf16.mxu0 0
  %3164 = vmatpush1.bf16.msra.mxu0 0
  %3165 = vmatprep.subr.bf16.mxu0 0
  %3166 = vmatpush1.bf16.msra.mxu0 0
  %3167 = vmatprep.subr.bf16.mxu0 0
  %3168 = vmatpush1.bf16.msra.mxu0 0
  %3169 = vmatprep.subr.bf16.mxu0 0
  %3170 = vmatpush1.bf16.msra.mxu0 0
  %3171 = vmatprep.subr.bf16.mxu0 0
  %3172 = vmatpush1.bf16.msra.mxu0 %v3078
  %3173 = vmatprep.subr.bf16.mxu0 0
  %3174 = vmatpush1.bf16.msra.mxu0 %v3077
  %3175 = vmatprep.subr.bf16.mxu0 0
  %3176 = vmatpush2.bf16.msra.mxu0 0
  %3177 = vmatprep.subr.bf16.mxu0 0
  %3178 = vmatpush2.bf16.msra.mxu0 0
  %3179 = vmatprep.subr.bf16.mxu0 0
  %3180 = vmatpush2.bf16.msra.mxu0 0
  %3181 = vmatprep.subr.bf16.mxu0 0
  %3182 = vmatpush2.bf16.msra.mxu0 0
  %3183 = vmatprep.subr.bf16.mxu0 0
  %3184 = vmatpush2.bf16.msra.mxu0 0
  %3185 = vmatprep.subr.bf16.mxu0 0
  %3186 = vmatpush2.bf16.msra.mxu0 0
  %3187 = vmatprep.subr.bf16.mxu0 0
  %3188 = vmatpush2.bf16.msra.mxu0 0
  %3189 = vmatprep.subr.bf16.mxu0 0
  %3190 = vmatpush2.bf16.msra.mxu0 0
  %3191 = vmatprep.mubr.bf16.mxu0 0
  %3192 = vmatmul.mubr.bf16.gmra.mxu0 %v3148
  %v3193 = vpop.f32.mrf.mxu0
  %v3194 = vadd.f32 %v3090, %v3193
  %v3195 = vpop.f32.mrf.mxu0
  %v3196 = vpop.f32.mrf.mxu0
  %v3197 = vadd.f32 %v3095, %v3196
  %v3198 = vpop.f32.mrf.mxu0
  %3199 = vmatprep.mubr.bf16.mxu0 0
  %3200 = vmatmul.mubr.bf16.gmra.mxu0 %v3151
  %v3201 = vpop.f32.mrf.mxu0
  %v3202 = vadd.f32 %v3100, %v3201
  %v3203 = vpop.f32.mrf.mxu0
  %v3204 = vpop.f32.mrf.mxu0
  %v3205 = vadd.f32 %v3105, %v3204
  %v3206 = vpop.f32.mrf.mxu0
  %3207 = vmatprep.mubr.bf16.mxu0 0
  %3208 = vmatmul.mubr.bf16.gmra.mxu0 %v3154
  %v3209 = vpop.f32.mrf.mxu0
  %v3210 = vadd.f32 %v3110, %v3209
  %v3211 = vpop.f32.mrf.mxu0
  %v3212 = vpop.f32.mrf.mxu0
  %v3213 = vadd.f32 %v3115, %v3212
  %v3214 = vpop.f32.mrf.mxu0
  %3215 = vmatprep.mubr.bf16.mxu0 0
  %3216 = vmatmul.mubr.bf16.gmra.mxu0 %v3157
  %v3217 = vpop.f32.mrf.mxu0
  %v3218 = vadd.f32 %v3120, %v3217
  %v3219 = vpop.f32.mrf.mxu0
  %v3220 = vpop.f32.mrf.mxu0
  %v3221 = vadd.f32 %v3125, %v3220
  %v3222 = vpop.f32.mrf.mxu0
  %3223 = vdwg.mxu0
  %v3224 = vmax.f32 %v3194, 0.0
  %v3225 = vmax.f32 %v3197, 0.0
  %v3226 = vmax.f32 %v3202, 0.0
  %v3227 = vmax.f32 %v3205, 0.0
  %v3228 = vmax.f32 %v3210, 0.0
  %v3229 = vmax.f32 %v3213, 0.0
  %v3230 = vmax.f32 %v3218, 0.0
  %v3231 = vmax.f32 %v3221, 0.0
  %s3232 = scalar_lea.vmem %s3, 16
  %v3233 = vld [vmem:[%s3232] sm:$0xf]
  %v3234 = vld [vmem:[%s3232 + $0x4] sm:$0xf]
  %v3235 = vld [vmem:[%s3232 + $0x8] sm:$0xf]
  %v3236 = vld [vmem:[%s3232 + $0xc] sm:$0xf]
  %v3237 = vpack.c.bf16 %v3225, %v3224
  %v3238 = vpack.c.bf16 %v3227, %v3226
  %v3239 = vpack.c.bf16 %v3229, %v3228
  %v3240 = vpack.c.bf16 %v3231, %v3230
  %v3245 = vunpack.c.l.b16 %v3233
  %v3246 = vunpack.c.l.b16 %v3234
  %v3247 = vunpack.c.l.b16 %v3235
  %v3248 = vunpack.c.l.b16 %v3236
  %v3249 = vpack.c.b16 %v3246, %v3245
  %v3250 = vpack.c.b16 %v3248, %v3247
  %v3252 = vsel %vm1596, %v3249, 0
  %v3255 = vsel %vm1596, %v3250, 0
  %3257 = vmatprep.subr.bf16.mxu0 0
  %3258 = vmatpush1.bf16.msra.mxu0 0
  %3259 = vmatprep.subr.bf16.mxu0 0
  %3260 = vmatpush1.bf16.msra.mxu0 0
  %3261 = vmatprep.subr.bf16.mxu0 0
  %3262 = vmatpush1.bf16.msra.mxu0 0
  %3263 = vmatprep.subr.bf16.mxu0 0
  %3264 = vmatpush1.bf16.msra.mxu0 0
  %3265 = vmatprep.subr.bf16.mxu0 0
  %3266 = vmatpush1.bf16.msra.mxu0 %v3240
  %3267 = vmatprep.subr.bf16.mxu0 0
  %3268 = vmatpush1.bf16.msra.mxu0 %v3239
  %3269 = vmatprep.subr.bf16.mxu0 0
  %3270 = vmatpush1.bf16.msra.mxu0 %v3238
  %3271 = vmatprep.subr.bf16.mxu0 0
  %3272 = vmatpush1.bf16.msra.mxu0 %v3237
  %3273 = vmatprep.subr.bf16.mxu0 0
  %3274 = vmatpush2.bf16.msra.mxu0 0
  %3275 = vmatprep.subr.bf16.mxu0 0
  %3276 = vmatpush2.bf16.msra.mxu0 0
  %3277 = vmatprep.subr.bf16.mxu0 0
  %3278 = vmatpush2.bf16.msra.mxu0 0
  %3279 = vmatprep.subr.bf16.mxu0 0
  %3280 = vmatpush2.bf16.msra.mxu0 0
  %3281 = vmatprep.subr.bf16.mxu0 0
  %3282 = vmatpush2.bf16.msra.mxu0 0
  %3283 = vmatprep.subr.bf16.mxu0 0
  %3284 = vmatpush2.bf16.msra.mxu0 0
  %3285 = vmatprep.subr.bf16.mxu0 0
  %3286 = vmatpush2.bf16.msra.mxu0 0
  %3287 = vmatprep.subr.bf16.mxu0 0
  %3288 = vmatpush2.bf16.msra.mxu0 0
  %3289 = vmatprep.mubr.bf16.mxu0 0
  %3290 = vmatmul.mubr.bf16.gmra.mxu0 %v3252
  %v3291 = vpop.f32.mrf.mxu0
  %v3292 = vadd.f32 0.0, %v3291
  %v3293 = vpop.f32.mrf.mxu0
  %v3294 = vpop.f32.mrf.mxu0
  %v3295 = vadd.f32 0.0, %v3294
  %v3296 = vpop.f32.mrf.mxu0
  %3297 = vmatprep.mubr.bf16.mxu0 0
  %3298 = vmatmul.mubr.bf16.gmra.mxu0 %v3255
  %v3299 = vpop.f32.mrf.mxu0
  %v3300 = vadd.f32 0.0, %v3299
  %v3301 = vpop.f32.mrf.mxu0
  %v3302 = vpop.f32.mrf.mxu0
  %v3303 = vadd.f32 0.0, %v3302
  %v3304 = vpop.f32.mrf.mxu0
  %3305 = vdwg.mxu0
  %v3306 = vadd.f32 %v2968, %v3292
  %v3307 = vadd.f32 %v2969, %v3295
  %v3308 = vadd.f32 %v2970, %v3300
  %v3309 = vadd.f32 %v2971, %v3303
  %v3310 = vld [vmem:[%s4 + $0x220] sm:$0xff]
  %v3311 = vld [vmem:[%s4 + $0x228] sm:$0xff]
  %v3312 = vld [vmem:[%s4 + $0x230] sm:$0xff]
  %v3313 = vld [vmem:[%s4 + $0x238] sm:$0xff]
  %3315 = vset.pattern.permute.xlu0 0
  %3316 = vperm.xlu0 %3315, %v3310
  %v3317 = vpop.permute.xlu0 %3316
  %3320 = vset.pattern.permute.xlu0 0
  %3321 = vperm.xlu0 %3320, %v3311
  %v3322 = vpop.permute.xlu0 %3321
  %3325 = vset.pattern.permute.xlu0 0
  %3326 = vperm.xlu0 %3325, %v3312
  %v3327 = vpop.permute.xlu0 %3326
  %3330 = vset.pattern.permute.xlu0 0
  %3331 = vperm.xlu0 %3330, %v3313
  %v3332 = vpop.permute.xlu0 %3331
  %v3334 = vadd.f32 %v3306, %v3317
  %v3335 = vadd.f32 %v3307, %v3322
  %v3336 = vadd.f32 %v3308, %v3327
  %v3337 = vadd.f32 %v3309, %v3332
  %v3338 = vld [vmem:[%s4 + $0x2c0] sm:$0xff]
  %v3339 = vld [vmem:[%s4 + $0x2c8] sm:$0xff]
  %v3340 = vld [vmem:[%s4 + $0x2d0] sm:$0xff]
  %v3341 = vld [vmem:[%s4 + $0x2d8] sm:$0xff]
  %v3342 = vld [vmem:[%s4 + $0x2e0] sm:$0xff]
  %v3343 = vld [vmem:[%s4 + $0x2e8] sm:$0xff]
  %v3344 = vld [vmem:[%s4 + $0x2f0] sm:$0xff]
  %v3345 = vld [vmem:[%s4 + $0x2f8] sm:$0xff]
  %v3346 = vsel %vm59, %v3334, 0.0
  %v3347 = vsel %vm59, %v3335, 0.0
  %v3348 = vadd.f32 %v3346, %v3347
  %v3349 = vsel %vm59, %v3336, 0.0
  %v3350 = vadd.f32 %v3348, %v3349
  %v3351 = vsel %vm59, %v3337, 0.0
  %v3352 = vadd.f32 %v3350, %v3351
  %v3353 = vrot.slane %v3352, 4
  %v3354 = vadd.f32 %v3352, %v3353
  %v3355 = vrot.slane %v3354, 2
  %v3356 = vadd.f32 %v3354, %v3355
  %v3357 = vrot.slane %v3356, 1
  %v3358 = vadd.f32 %v3356, %v3357
  %v3359 = vmul.f32 %v3358, %v73
  %v3360 = vsub.f32 %v3334, %v3359
  %v3361 = vsub.f32 %v3335, %v3359
  %v3362 = vsub.f32 %v3336, %v3359
  %v3363 = vsub.f32 %v3337, %v3359
  %v3364 = vmul.f32 %v3360, %v3360
  %v3365 = vmul.f32 %v3361, %v3361
  %v3366 = vmul.f32 %v3362, %v3362
  %v3367 = vmul.f32 %v3363, %v3363
  %v3368 = vsel %vm59, %v3364, 0.0
  %v3369 = vsel %vm59, %v3365, 0.0
  %v3370 = vadd.f32 %v3368, %v3369
  %v3371 = vsel %vm59, %v3366, 0.0
  %v3372 = vadd.f32 %v3370, %v3371
  %v3373 = vsel %vm59, %v3367, 0.0
  %v3374 = vadd.f32 %v3372, %v3373
  %v3375 = vrot.slane %v3374, 4
  %v3376 = vadd.f32 %v3374, %v3375
  %v3377 = vrot.slane %v3376, 2
  %v3378 = vadd.f32 %v3376, %v3377
  %v3379 = vrot.slane %v3378, 1
  %v3380 = vadd.f32 %v3378, %v3379
  %v3381 = vmul.f32 %v3380, 0.032258064
  %v3382 = vrsqrt.pop %v3381
  %v3383 = vmul.f32 %v3381, %v3382
  %vm3384 = vcmp.eq.f32.partialorder %v3381, inf
  %v3385 = vsel %vm3384, %v3381, %v3383
  %vm3386 = vcmp.eq.f32.partialorder %v3381, 0.0
  %v3387 = vand.u32 %v3381, 2147483648
  %v3388 = vsel %vm3386, %v3387, %v3385
  %v3389 = vadd.f32 %v3388, 1e-06
  %v3390 = vrcp.pop %v3389
  %3392 = vset.pattern.permute.xlu0 0
  %3393 = vperm.xlu0 %3392, %v3338
  %v3394 = vpop.permute.xlu0 %3393
  %3397 = vset.pattern.permute.xlu0 0
  %3398 = vperm.xlu0 %3397, %v3339
  %v3399 = vpop.permute.xlu0 %3398
  %3402 = vset.pattern.permute.xlu0 0
  %3403 = vperm.xlu0 %3402, %v3340
  %v3404 = vpop.permute.xlu0 %3403
  %3407 = vset.pattern.permute.xlu0 0
  %3408 = vperm.xlu0 %3407, %v3341
  %v3409 = vpop.permute.xlu0 %3408
  %v3411 = vmul.f32 %v3394, %v3360
  %v3412 = vmul.f32 %v3399, %v3361
  %v3413 = vmul.f32 %v3404, %v3362
  %v3414 = vmul.f32 %v3409, %v3363
  %v3415 = vmul.f32 %v3411, %v3390
  %v3416 = vmul.f32 %v3412, %v3390
  %v3417 = vmul.f32 %v3413, %v3390
  %v3418 = vmul.f32 %v3414, %v3390
  %3420 = vset.pattern.permute.xlu0 0
  %3421 = vperm.xlu0 %3420, %v3342
  %v3422 = vpop.permute.xlu0 %3421
  %3425 = vset.pattern.permute.xlu0 0
  %3426 = vperm.xlu0 %3425, %v3343
  %v3427 = vpop.permute.xlu0 %3426
  %3430 = vset.pattern.permute.xlu0 0
  %3431 = vperm.xlu0 %3430, %v3344
  %v3432 = vpop.permute.xlu0 %3431
  %3435 = vset.pattern.permute.xlu0 0
  %3436 = vperm.xlu0 %3435, %v3345
  %v3437 = vpop.permute.xlu0 %3436
  %v3439 = vadd.f32 %v3415, %v3422
  %v3440 = vadd.f32 %v3416, %v3427
  %v3441 = vadd.f32 %v3417, %v3432
  %v3442 = vadd.f32 %v3418, %v3437
  %3443 = vst.msk [vmem:[%s5] sm:$0xff] %vm59, %v3439
  %3444 = vst.msk [vmem:[%s5 + $0x8] sm:$0xff] %vm59, %v3440
  %3445 = vst.msk [vmem:[%s5 + $0x10] sm:$0xff] %vm59, %v3441
  %3446 = vst.msk [vmem:[%s5 + $0x18] sm:$0xff] %vm59, %v3442
  // Predicated region
  $region22: #{tpu_custom_call.1} parent=0 // pred_check
    _
  $region23: #{tpu_custom_call.1} parent=0 // pred_check_branch
    %3448 = sbr.rel (0) target = $region25
  $region24: #{tpu_custom_call.1} parent=0 // pred_region
    _
  $region25: #{tpu_custom_call.1} parent=0 // pred_fallthru
    _
  // Predicated region
  $region26: #{tpu_custom_call.1} parent=0 // pred_check
    _
  $region27: #{tpu_custom_call.1} parent=0 // pred_check_branch
    %3450 = sbr.rel (0) target = $region29
  $region28: #{tpu_custom_call.1} parent=0 // pred_region
    _
  $region29: #{tpu_custom_call.1} parent=0 // pred_fallthru
    _

</llo_original>
